<compile_context>
chip_gen: v7x
topology: tpu7x:2x2x1
jax: 0.10.0
libtpu: 0.0.40
codegen_flags: <defaults>
</compile_context>

<pallas_src>
import functools
import math

import jax
import jax.numpy as jnp
from jax.experimental import pallas as pl
from jax.experimental.pallas import tpu as pltpu

_VMEM_LIMIT = 32 * 1024 * 1024   # explicit scoped-VMEM budget; tiles sized well under it
_LN_EPS = 1e-5


def _ceil_to(x, m):
    return ((x + m - 1) // m) * m


def _pad2d(x, rows, cols):
    r, c = x.shape
    if r == rows and c == cols:
        return x
    return jnp.pad(x, ((0, rows - r), (0, cols - c)))


# ----------------------------------------------------------------------------- in-kernel math

def _erf(x):
    # Abramowitz & Stegun 7.1.26 rational approximation, |err| <= 1.5e-7 (f32 resolution).
    # Used so the exact (erf) GELU of nn.GELU() can be fused in-kernel without relying
    # on a Mosaic erf lowering.
    p = 0.3275911
    a1, a2, a3, a4, a5 = 0.254829592, -0.284496736, 1.421413741, -1.453152027, 1.061405429
    ax = jnp.abs(x)
    t = 1.0 / (1.0 + p * ax)
    poly = ((((a5 * t + a4) * t + a3) * t + a2) * t + a1) * t
    y = 1.0 - poly * jnp.exp(-ax * ax)
    return jnp.where(x < 0, -y, y)


def _apply_activation(acc, activation):
    if activation == "relu":
        return jnp.maximum(acc, 0.0)
    if activation == "gelu":   # exact-erf GELU (matches nn.GELU()) to f32 precision
        return 0.5 * acc * (1.0 + _erf(acc * 0.7071067811865476))
    return acc


# ----------------------------------------------------------------------------- kernels

def _matmul_kernel(*refs, activation, has_residual):
    """Tiled y = x @ w (+ b) [+ activation] [+ residual], f32 accumulation in VMEM."""
    if has_residual:
        x_ref, w_ref, b_ref, r_ref, o_ref, acc_ref = refs
    else:
        x_ref, w_ref, b_ref, o_ref, acc_ref = refs
        r_ref = None

    @pl.when(pl.program_id(2) == 0)
    def _init():
        acc_ref[...] = jnp.zeros_like(acc_ref)

    acc_ref[...] += jnp.dot(x_ref[...], w_ref[...], preferred_element_type=jnp.float32)

    @pl.when(pl.program_id(2) == pl.num_programs(2) - 1)
    def _epilogue():
        acc = acc_ref[...] + b_ref[...].astype(jnp.float32)
        acc = _apply_activation(acc, activation)
        if has_residual:
            acc = acc + r_ref[...].astype(jnp.float32)
        o_ref[...] = acc.astype(o_ref.dtype)


def matmul(x, w, b, *, activation=None, residual=None, out_dtype=jnp.bfloat16,
           tm=256, tn=256, tk=512):
    """y = act(x @ w + b) (+ residual).  x: [M, K], w: [K, N], b: [N]."""
    M, K = x.shape
    K2, N = w.shape
    assert K == K2
    tm = min(tm, _ceil_to(M, 8))
    tn = min(tn, _ceil_to(N, 128))
    tk = min(tk, _ceil_to(K, 128))
    Mp, Np, Kp = _ceil_to(M, tm), _ceil_to(N, tn), _ceil_to(K, tk)

    xp = _pad2d(x.astype(jnp.bfloat16), Mp, Kp)            # bf16 MXU operands
    wp = _pad2d(w.astype(jnp.bfloat16), Kp, Np)
    bp = _pad2d(b.reshape(1, N).astype(jnp.float32), 1, Np)

    args = [xp, wp, bp]
    in_specs = [
        pl.BlockSpec((tm, tk), lambda i, j, k: (i, k)),
        pl.BlockSpec((tk, tn), lambda i, j, k: (k, j)),
        pl.BlockSpec((1, tn), lambda i, j, k: (0, j)),
    ]
    if residual is not None:
        args.append(_pad2d(residual.astype(jnp.float32), Mp, Np))
        in_specs.append(pl.BlockSpec((tm, tn), lambda i, j, k: (i, j)))

    out = pl.pallas_call(
        functools.partial(_matmul_kernel, activation=activation,
                          has_residual=residual is not None),
        grid=(Mp // tm, Np // tn, Kp // tk),
        in_specs=in_specs,
        out_specs=pl.BlockSpec((tm, tn), lambda i, j, k: (i, j)),
        out_shape=jax.ShapeDtypeStruct((Mp, Np), out_dtype),
        scratch_shapes=[pltpu.VMEM((tm, tn), jnp.float32)],
        compiler_params=pltpu.CompilerParams(
            dimension_semantics=("parallel", "parallel", "arbitrary"),
            vmem_limit_bytes=_VMEM_LIMIT),
    )(*args)
    return out[:M, :N]


def _ln_matmul_kernel(x_ref, g_ref, bln_ref, w_ref, b_ref, o_ref, *, eps, activation):
    """Fused LayerNorm (f32 stats) + matmul (bf16 MXU) + bias + activation."""
    x = x_ref[...].astype(jnp.float32)
    mean = jnp.mean(x, axis=-1, keepdims=True)
    xc = x - mean
    var = jnp.mean(xc * xc, axis=-1, keepdims=True)        # biased var (PyTorch LayerNorm)
    xn = xc * jax.lax.rsqrt(var + eps) * g_ref[...] + bln_ref[...]
    acc = jnp.dot(xn.astype(jnp.bfloat16), w_ref[...], preferred_element_type=jnp.float32)
    acc = acc + b_ref[...].astype(jnp.float32)
    acc = _apply_activation(acc, activation)
    o_ref[...] = acc.astype(o_ref.dtype)


def ln_matmul(x, gamma, beta, w, b, *, activation=None, out_dtype=jnp.bfloat16,
              eps=_LN_EPS, tm=256, tn=256):
    """y = act(LayerNorm(x) @ w + b).  x: [M, D] (full D needed for LN stats)."""
    M, D = x.shape
    D2, N = w.shape
    assert D == D2
    tm = min(tm, _ceil_to(M, 8))
    tn = min(tn, _ceil_to(N, 128))
    Mp, Np = _ceil_to(M, tm), _ceil_to(N, tn)

    xp = _pad2d(x, Mp, D)                                   # residual stream stays f32
    wp = _pad2d(w.astype(jnp.bfloat16), D, Np)
    bp = _pad2d(b.reshape(1, N).astype(jnp.float32), 1, Np)
    g2 = gamma.reshape(1, D).astype(jnp.float32)
    bt2 = beta.reshape(1, D).astype(jnp.float32)

    out = pl.pallas_call(
        functools.partial(_ln_matmul_kernel, eps=eps, activation=activation),
        grid=(Mp // tm, Np // tn),
        in_specs=[
            pl.BlockSpec((tm, D), lambda i, j: (i, 0)),
            pl.BlockSpec((1, D), lambda i, j: (0, 0)),
            pl.BlockSpec((1, D), lambda i, j: (0, 0)),
            pl.BlockSpec((D, tn), lambda i, j: (0, j)),
            pl.BlockSpec((1, tn), lambda i, j: (0, j)),
        ],
        out_specs=pl.BlockSpec((tm, tn), lambda i, j: (i, j)),
        out_shape=jax.ShapeDtypeStruct((Mp, Np), out_dtype),
        compiler_params=pltpu.CompilerParams(
            dimension_semantics=("parallel", "parallel"),
            vmem_limit_bytes=_VMEM_LIMIT),
    )(xp, g2, bt2, wp, bp)
    return out[:M, :N]


def _layernorm_kernel(x_ref, g_ref, b_ref, o_ref, *, eps):
    x = x_ref[...].astype(jnp.float32)
    mean = jnp.mean(x, axis=-1, keepdims=True)
    xc = x - mean
    var = jnp.mean(xc * xc, axis=-1, keepdims=True)
    inv = jax.lax.rsqrt(var + eps)
    o_ref[...] = (xc * inv * g_ref[...] + b_ref[...]).astype(o_ref.dtype)


def layernorm(x2d, gamma, beta, eps=_LN_EPS, tm=512):
    """Standalone LayerNorm over the last dim, row-tiled.  x2d: [M, D] -> f32 [M, D]."""
    M, D = x2d.shape
    tm = min(tm, _ceil_to(M, 8))
    Mp = _ceil_to(M, tm)
    xp = _pad2d(x2d, Mp, D)
    out = pl.pallas_call(
        functools.partial(_layernorm_kernel, eps=eps),
        grid=(Mp // tm,),
        in_specs=[
            pl.BlockSpec((tm, D), lambda i: (i, 0)),
            pl.BlockSpec((1, D), lambda i: (0, 0)),
            pl.BlockSpec((1, D), lambda i: (0, 0)),
        ],
        out_specs=pl.BlockSpec((tm, D), lambda i: (i, 0)),
        out_shape=jax.ShapeDtypeStruct((Mp, D), jnp.float32),
        compiler_params=pltpu.CompilerParams(
            dimension_semantics=("parallel",), vmem_limit_bytes=_VMEM_LIMIT),
    )(xp, gamma.reshape(1, D).astype(jnp.float32), beta.reshape(1, D).astype(jnp.float32))
    return out[:M]


def _attention_kernel(q_ref, kt_ref, v_ref, o_ref, *, scale):
    # refs are (S, dh) / (dh, S) for one (batch, head) pair; K is pre-transposed so the
    # QK^T contraction is MXU-native (no in-kernel XLU relayout).
    s = jnp.dot(q_ref[...], kt_ref[...], preferred_element_type=jnp.float32) * scale
    m = jnp.max(s, axis=-1, keepdims=True)
    p = jnp.exp(s - m)
    l = jnp.sum(p, axis=-1, keepdims=True)
    out = jnp.dot(p.astype(v_ref.dtype), v_ref[...], preferred_element_type=jnp.float32)
    o_ref[...] = (out * pl.reciprocal(l, approx=True)).astype(o_ref.dtype)


def attention(q, kt, v):
    """Softmax attention, grid over (B, H).  q/v: [B,H,S,dh], kt: [B,H,dh,S]."""
    B, H, S, dh = q.shape
    scale = 1.0 / math.sqrt(dh)
    qv_spec = pl.BlockSpec((None, None, S, dh), lambda b, h: (b, h, 0, 0))
    kt_spec = pl.BlockSpec((None, None, dh, S), lambda b, h: (b, h, 0, 0))
    # TODO(synk): switch to flash-attention (kv-tiled online softmax) once S exceeds ~512.
    return pl.pallas_call(
        functools.partial(_attention_kernel, scale=scale),
        grid=(B, H),
        in_specs=[qv_spec, kt_spec, qv_spec],
        out_specs=qv_spec,
        out_shape=jax.ShapeDtypeStruct((B, H, S, dh), jnp.bfloat16),
        compiler_params=pltpu.CompilerParams(
            dimension_semantics=("parallel", "parallel"),
            vmem_limit_bytes=_VMEM_LIMIT),
    )(q, kt, v)


# ----------------------------------------------------------------------------- glue / params

def extract_patches(x, p):
    """NCHW -> [B, N, C*p*p] with channel-major flattening (matches Conv2d weight layout)."""
    B, C, H, W = x.shape
    h, w = H // p, W // p
    x = x.reshape(B, C, h, p, w, p)
    x = x.transpose(0, 2, 4, 1, 3, 5)            # B, h, w, C, p, p
    return x.reshape(B, h * w, C * p * p)


def trunc_normal(key, shape, std=0.02):
    return std * jax.random.truncated_normal(key, -2.0, 2.0, shape, jnp.float32)


def init_params(key, *, img_size, patch_size, in_chans, embed_dim, depth,
                num_heads, mlp_ratio, num_classes, head_hidden=512):
    num_patches = (img_size // patch_size) ** 2
    mlp_hidden = int(embed_dim * mlp_ratio)
    keys = iter(jax.random.split(key, 5 + depth * 4))
    wdt = jnp.bfloat16   # MXU operand dtype (f32 accumulation happens inside the kernels)

    params = {
        "patch_w": trunc_normal(next(keys), (in_chans * patch_size * patch_size, embed_dim)).astype(wdt),
        "patch_b": jnp.zeros((embed_dim,), jnp.float32),
        "cls_token": trunc_normal(next(keys), (1, 1, embed_dim)),
        "pos_embed": trunc_normal(next(keys), (1, num_patches + 1, embed_dim)),
        "norm_g": jnp.ones((embed_dim,), jnp.float32),
        "norm_b": jnp.zeros((embed_dim,), jnp.float32),
        # dynamically-created classification head: Linear(D,512) -> ReLU -> Linear(512,num_classes)
        "head_w1": trunc_normal(next(keys), (embed_dim, head_hidden)).astype(wdt),
        "head_b1": jnp.zeros((head_hidden,), jnp.float32),
        "head_w2": trunc_normal(next(keys), (head_hidden, num_classes)).astype(wdt),
        "head_b2": jnp.zeros((num_classes,), jnp.float32),
        "blocks": [],
    }
    for _ in range(depth):
        params["blocks"].append({
            "ln1_g": jnp.ones((embed_dim,), jnp.float32),
            "ln1_b": jnp.zeros((embed_dim,), jnp.float32),
            "qkv_w": trunc_normal(next(keys), (embed_dim, 3 * embed_dim)).astype(wdt),
            "qkv_b": jnp.zeros((3 * embed_dim,), jnp.float32),
            "proj_w": trunc_normal(next(keys), (embed_dim, embed_dim)).astype(wdt),
            "proj_b": jnp.zeros((embed_dim,), jnp.float32),
            "ln2_g": jnp.ones((embed_dim,), jnp.float32),
            "ln2_b": jnp.zeros((embed_dim,), jnp.float32),
            "mlp_w1": trunc_normal(next(keys), (embed_dim, mlp_hidden)).astype(wdt),
            "mlp_b1": jnp.zeros((mlp_hidden,), jnp.float32),
            "mlp_w2": trunc_normal(next(keys), (mlp_hidden, embed_dim)).astype(wdt),
            "mlp_b2": jnp.zeros((embed_dim,), jnp.float32),
        })
    return params


def medical_foundation_forward(params, images, *, patch_size, num_heads):
    """Classification-path forward of MedicalFoundationModel (use_llm=False, eval)."""
    B, C, H, W = images.shape
    D = params["pos_embed"].shape[-1]
    dh = D // num_heads

    # patch embedding (Conv2d kernel=stride=patch_size == patch-matmul, fused bias)
    patches = extract_patches(images, patch_size)            # [B, N, C*p*p]
    N = patches.shape[1]
    x = matmul(patches.reshape(B * N, -1), params["patch_w"], params["patch_b"],
               out_dtype=jnp.float32)
    x = x.reshape(B, N, D)

    # cls token + positional embedding (residual stream stays f32)
    cls = jnp.broadcast_to(params["cls_token"], (B, 1, D))
    x = jnp.concatenate([cls, x], axis=1) + params["pos_embed"]   # [B, S, D] f32
    S = N + 1
    x2d = x.reshape(B * S, D)

    for blk in params["blocks"]:
        # --- attention sub-block:  LN1 + QKV fused; proj fused with bias + residual ---
        qkv = ln_matmul(x2d, blk["ln1_g"], blk["ln1_b"], blk["qkv_w"], blk["qkv_b"],
                        out_dtype=jnp.bfloat16)               # [B*S, 3D] bf16
        qkv = qkv.reshape(B, S, 3, num_heads, dh)
        q = qkv[:, :, 0].transpose(0, 2, 1, 3)                # [B, H, S, dh]
        kt = qkv[:, :, 1].transpose(0, 2, 3, 1)               # [B, H, dh, S] (pre-transposed)
        v = qkv[:, :, 2].transpose(0, 2, 1, 3)
        # TODO(synk): emit attention-ready layouts straight from the QKV kernel's out_spec
        # to remove these XLA transposes entirely.
        attn = attention(q, kt, v)                            # [B, H, S, dh] bf16
        attn2d = attn.transpose(0, 2, 1, 3).reshape(B * S, D)
        x2d = matmul(attn2d, blk["proj_w"], blk["proj_b"], residual=x2d,
                     out_dtype=jnp.float32)                   # new residual stream (f32)

        # --- MLP sub-block:  LN2 + MLP1 + exact GELU fused; MLP2 fused with residual ---
        h1 = ln_matmul(x2d, blk["ln2_g"], blk["ln2_b"], blk["mlp_w1"], blk["mlp_b1"],
                       activation="gelu", out_dtype=jnp.bfloat16)   # [B*S, 4D] bf16
        x2d = matmul(h1, blk["mlp_w2"], blk["mlp_b2"], residual=x2d,
                     out_dtype=jnp.float32)

    # final norm -> features; classification head on the CLS token
    features = layernorm(x2d, params["norm_g"], params["norm_b"]).reshape(B, S, D)
    cls_feat = features[:, 0]                                 # [B, D]
    hidden = matmul(cls_feat, params["head_w1"], params["head_b1"],
                    activation="relu", out_dtype=jnp.float32)
    logits = matmul(hidden, params["head_w2"], params["head_b2"],
                    out_dtype=jnp.float32)                    # [B, num_classes] (lane-padded inside)

    return {"features": features, "llm_outputs": None, "logits": logits}


# ----------------------------------------------------------------------------- main

if __name__ == "__main__":
    key = jax.random.PRNGKey(0)
    kp, kx = jax.random.split(key)

    # small shapes consistent with the module's forward
    B, C, IMG, PATCH = 2, 3, 16, 8            # num_patches = 4, seq = 5
    EMBED, DEPTH, HEADS, MLP_RATIO = 64, 2, 4, 4.0
    NUM_CLASSES = 2                            # default in forward() when not provided

    params = init_params(kp, img_size=IMG, patch_size=PATCH, in_chans=C,
                         embed_dim=EMBED, depth=DEPTH, num_heads=HEADS,
                         mlp_ratio=MLP_RATIO, num_classes=NUM_CLASSES)
    images = jax.random.normal(kx, (B, C, IMG, IMG), jnp.float32)

    forward = jax.jit(functools.partial(medical_foundation_forward,
                                        patch_size=PATCH, num_heads=HEADS))
    out = forward(params, images)
    jax.block_until_ready(out)

    assert out["features"].shape == (B, (IMG // PATCH) ** 2 + 1, EMBED)
    assert out["logits"].shape == (B, NUM_CLASSES)
    print("KERNEL_OK")
</pallas_src>

<mosaic_0001>
module attributes {stable_mosaic.version = 11 : i64} {
  func.func @_matmul_kernel(%arg0: i32, %arg1: i32, %arg2: i32, %arg3: memref<8x256xbf16, #tpu.memory_space<vmem>>, %arg4: memref<256x128xbf16, #tpu.memory_space<vmem>>, %arg5: memref<1x128xf32, #tpu.memory_space<vmem>>, %arg6: memref<8x128xf32, #tpu.memory_space<vmem>>, %arg7: memref<8x128xf32, #tpu.memory_space<vmem>>) attributes {dimension_semantics = [#tpu.dimension_semantics<parallel>, #tpu.dimension_semantics<parallel>, #tpu.dimension_semantics<arbitrary>], iteration_bounds = array<i64: 1, 1, 1>, scalar_prefetch = 0 : i64, scratch_operands = 1 : i64, tpu.core_type = #tpu.core_type<tc>, window_params = [{transform_indices = @transform_0, window_bounds = array<i64: 8, 256>}, {transform_indices = @transform_1, window_bounds = array<i64: 256, 128>}, {transform_indices = @transform_2, window_bounds = array<i64: 1, 128>}, {transform_indices = @transform_3, window_bounds = array<i64: 8, 128>}]} {
    %c0_i32 = arith.constant 0 : i32
    %0 = arith.cmpi eq, %arg2, %c0_i32 : i32
    %1 = arith.extui %0 : i1 to i32
    %c0_i32_0 = arith.constant 0 : i32
    %2 = arith.cmpi ne, %1, %c0_i32_0 : i32
    scf.if %2 {
      %cst_10 = arith.constant 0.000000e+00 : f32
      %12 = vector.broadcast %cst_10 : f32 to vector<8x128xf32>
      %c0_11 = arith.constant 0 : index
      %c0_12 = arith.constant 0 : index
      %13 = vector.load %arg7[%c0_11, %c0_12] : memref<8x128xf32, #tpu.memory_space<vmem>>, vector<8x128xf32>
      tpu.vector_store %arg7[%c0_11, %c0_12], %12 {strides = array<i32>} : memref<8x128xf32, #tpu.memory_space<vmem>>, vector<8x128xf32>,
    } else {
    }
    %c0 = arith.constant 0 : index
    %c0_1 = arith.constant 0 : index
    %3 = vector.load %arg7[%c0, %c0_1] : memref<8x128xf32, #tpu.memory_space<vmem>>, vector<8x128xf32>
    %c0_2 = arith.constant 0 : index
    %c0_3 = arith.constant 0 : index
    %4 = vector.load %arg3[%c0_2, %c0_3] : memref<8x256xbf16, #tpu.memory_space<vmem>>, vector<8x256xbf16>
    %c0_4 = arith.constant 0 : index
    %c0_5 = arith.constant 0 : index
    %5 = vector.load %arg4[%c0_4, %c0_5] : memref<256x128xbf16, #tpu.memory_space<vmem>>, vector<256x128xbf16>
    %cst = arith.constant dense<0.000000e+00> : vector<8x128xf32>
    %6 = tpu.matmul %4, %5, %cst {dimension_numbers = #tpu.dot_dimension_numbers<[1], [0], [0], [1], [0, 0, 1, 1], [], []>} : vector<8x256xbf16>, vector<256x128xbf16>, vector<8x128xf32> -> vector<8x128xf32>
    %7 = arith.addf %3, %6 : vector<8x128xf32>
    %c0_6 = arith.constant 0 : index
    %c0_7 = arith.constant 0 : index
    %8 = vector.load %arg7[%c0_6, %c0_7] : memref<8x128xf32, #tpu.memory_space<vmem>>, vector<8x128xf32>
    tpu.vector_store %arg7[%c0_6, %c0_7], %7 {strides = array<i32>} : memref<8x128xf32, #tpu.memory_space<vmem>>, vector<8x128xf32>,
    %c0_i32_8 = arith.constant 0 : i32
    %9 = arith.cmpi eq, %arg2, %c0_i32_8 : i32
    %10 = arith.extui %9 : i1 to i32
    %c0_i32_9 = arith.constant 0 : i32
    %11 = arith.cmpi ne, %10, %c0_i32_9 : i32
    scf.if %11 {
      %c0_10 = arith.constant 0 : index
      %c0_11 = arith.constant 0 : index
      %12 = vector.load %arg7[%c0_10, %c0_11] : memref<8x128xf32, #tpu.memory_space<vmem>>, vector<8x128xf32>
      %c0_12 = arith.constant 0 : index
      %c0_13 = arith.constant 0 : index
      %13 = vector.load %arg5[%c0_12, %c0_13] : memref<1x128xf32, #tpu.memory_space<vmem>>, vector<1x128xf32>
      %14 = vector.broadcast %13 : vector<1x128xf32> to vector<8x128xf32>
      %15 = arith.addf %12, %14 : vector<8x128xf32>
      %c0_14 = arith.constant 0 : index
      %c0_15 = arith.constant 0 : index
      %16 = vector.load %arg6[%c0_14, %c0_15] : memref<8x128xf32, #tpu.memory_space<vmem>>, vector<8x128xf32>
      tpu.vector_store %arg6[%c0_14, %c0_15], %15 {strides = array<i32>} : memref<8x128xf32, #tpu.memory_space<vmem>>, vector<8x128xf32>,
    } else {
    }
    return
  }
  func.func @transform_0(%arg0: i32, %arg1: i32, %arg2: i32) -> (i32, i32) {
    %c0_i32 = arith.constant 0 : i32
    return %arg0, %arg2 : i32, i32
  }
  func.func @transform_1(%arg0: i32, %arg1: i32, %arg2: i32) -> (i32, i32) {
    %c0_i32 = arith.constant 0 : i32
    return %arg2, %arg1 : i32, i32
  }
  func.func @transform_2(%arg0: i32, %arg1: i32, %arg2: i32) -> (i32, i32) {
    %c0_i32 = arith.constant 0 : i32
    %c0_i32_0 = arith.constant 0 : i32
    return %c0_i32, %arg1 : i32, i32
  }
  func.func @transform_3(%arg0: i32, %arg1: i32, %arg2: i32) -> (i32, i32) {
    %c0_i32 = arith.constant 0 : i32
    return %arg0, %arg1 : i32, i32
  }
}

module attributes {stable_mosaic.version = 11 : i64} {
  func.func @_ln_matmul_kernel(%arg0: i32, %arg1: i32, %arg2: memref<16x64xf32, #tpu.memory_space<vmem>>, %arg3: memref<1x64xf32, #tpu.memory_space<vmem>>, %arg4: memref<1x64xf32, #tpu.memory_space<vmem>>, %arg5: memref<64x256xbf16, #tpu.memory_space<vmem>>, %arg6: memref<1x256xf32, #tpu.memory_space<vmem>>, %arg7: memref<16x256xbf16, #tpu.memory_space<vmem>>) attributes {dimension_semantics = [#tpu.dimension_semantics<parallel>, #tpu.dimension_semantics<parallel>], iteration_bounds = array<i64: 1, 1>, scalar_prefetch = 0 : i64, scratch_operands = 0 : i64, tpu.core_type = #tpu.core_type<tc>, window_params = [{transform_indices = @transform_0, window_bounds = array<i64: 16, 64>}, {pipeline_mode = #tpu.pipeline_mode<synchronous>, transform_indices = @transform_1, window_bounds = array<i64: 1, 64>}, {pipeline_mode = #tpu.pipeline_mode<synchronous>, transform_indices = @transform_2, window_bounds = array<i64: 1, 64>}, {transform_indices = @transform_3, window_bounds = array<i64: 64, 256>}, {transform_indices = @transform_4, window_bounds = array<i64: 1, 256>}, {transform_indices = @transform_5, window_bounds = array<i64: 16, 256>}]} {
    %c0 = arith.constant 0 : index
    %c0_0 = arith.constant 0 : index
    %0 = vector.load %arg2[%c0, %c0_0] : memref<16x64xf32, #tpu.memory_space<vmem>>, vector<16x64xf32>
    %cst = arith.constant dense<0.000000e+00> : vector<16xf32>
    %1 = vector.multi_reduction <add>, %0, %cst [1] : vector<16x64xf32> to vector<16xf32>
    %2 = vector.shape_cast %1 : vector<16xf32> to vector<16x1xf32>
    %cst_1 = arith.constant 6.400000e+01 : f32
    %3 = vector.broadcast %cst_1 : f32 to vector<16x1xf32>
    %4 = arith.divf %2, %3 : vector<16x1xf32>
    %5 = vector.broadcast %4 : vector<16x1xf32> to vector<16x64xf32>
    %6 = arith.subf %0, %5 : vector<16x64xf32>
    %7 = arith.mulf %6, %6 : vector<16x64xf32>
    %cst_2 = arith.constant dense<0.000000e+00> : vector<16xf32>
    %8 = vector.multi_reduction <add>, %7, %cst_2 [1] : vector<16x64xf32> to vector<16xf32>
    %9 = vector.shape_cast %8 : vector<16xf32> to vector<16x1xf32>
    %cst_3 = arith.constant 6.400000e+01 : f32
    %10 = vector.broadcast %cst_3 : f32 to vector<16x1xf32>
    %11 = arith.divf %9, %10 : vector<16x1xf32>
    %cst_4 = arith.constant 9.99999974E-6 : f32
    %12 = vector.broadcast %cst_4 : f32 to vector<16x1xf32>
    %13 = arith.addf %11, %12 : vector<16x1xf32>
    %14 = math.rsqrt %13 : vector<16x1xf32>
    %15 = vector.broadcast %14 : vector<16x1xf32> to vector<16x64xf32>
    %16 = arith.mulf %6, %15 : vector<16x64xf32>
    %c0_5 = arith.constant 0 : index
    %c0_6 = arith.constant 0 : index
    %17 = vector.load %arg3[%c0_5, %c0_6] : memref<1x64xf32, #tpu.memory_space<vmem>>, vector<1x64xf32>
    %18 = vector.broadcast %17 : vector<1x64xf32> to vector<16x64xf32>
    %19 = arith.mulf %16, %18 : vector<16x64xf32>
    %c0_7 = arith.constant 0 : index
    %c0_8 = arith.constant 0 : index
    %20 = vector.load %arg4[%c0_7, %c0_8] : memref<1x64xf32, #tpu.memory_space<vmem>>, vector<1x64xf32>
    %21 = vector.broadcast %20 : vector<1x64xf32> to vector<16x64xf32>
    %22 = arith.addf %19, %21 : vector<16x64xf32>
    %23 = arith.truncf %22 : vector<16x64xf32> to vector<16x64xbf16>
    %c0_9 = arith.constant 0 : index
    %c0_10 = arith.constant 0 : index
    %24 = vector.load %arg5[%c0_9, %c0_10] : memref<64x256xbf16, #tpu.memory_space<vmem>>, vector<64x256xbf16>
    %cst_11 = arith.constant dense<0.000000e+00> : vector<16x256xf32>
    %25 = tpu.matmul %23, %24, %cst_11 {dimension_numbers = #tpu.dot_dimension_numbers<[1], [0], [0], [1], [0, 0, 1, 1], [], []>} : vector<16x64xbf16>, vector<64x256xbf16>, vector<16x256xf32> -> vector<16x256xf32>
    %c0_12 = arith.constant 0 : index
    %c0_13 = arith.constant 0 : index
    %26 = vector.load %arg6[%c0_12, %c0_13] : memref<1x256xf32, #tpu.memory_space<vmem>>, vector<1x256xf32>
    %27 = vector.broadcast %26 : vector<1x256xf32> to vector<16x256xf32>
    %28 = arith.addf %25, %27 : vector<16x256xf32>
    %29 = arith.truncf %28 : vector<16x256xf32> to vector<16x256xbf16>
    %c0_14 = arith.constant 0 : index
    %c0_15 = arith.constant 0 : index
    %30 = vector.load %arg7[%c0_14, %c0_15] : memref<16x256xbf16, #tpu.memory_space<vmem>>, vector<16x256xbf16>
    tpu.vector_store %arg7[%c0_14, %c0_15], %29 {strides = array<i32>} : memref<16x256xbf16, #tpu.memory_space<vmem>>, vector<16x256xbf16>,
    return
  }
  func.func @transform_0(%arg0: i32, %arg1: i32) -> (i32, i32) {
    %c0_i32 = arith.constant 0 : i32
    %c0_i32_0 = arith.constant 0 : i32
    return %arg0, %c0_i32 : i32, i32
  }
  func.func @transform_1(%arg0: i32, %arg1: i32) -> (i32, i32) {
    %c0_i32 = arith.constant 0 : i32
    %c0_i32_0 = arith.constant 0 : i32
    %c0_i32_1 = arith.constant 0 : i32
    return %c0_i32, %c0_i32_0 : i32, i32
  }
  func.func @transform_2(%arg0: i32, %arg1: i32) -> (i32, i32) {
    %c0_i32 = arith.constant 0 : i32
    %c0_i32_0 = arith.constant 0 : i32
    %c0_i32_1 = arith.constant 0 : i32
    return %c0_i32, %c0_i32_0 : i32, i32
  }
  func.func @transform_3(%arg0: i32, %arg1: i32) -> (i32, i32) {
    %c0_i32 = arith.constant 0 : i32
    %c0_i32_0 = arith.constant 0 : i32
    return %c0_i32, %arg1 : i32, i32
  }
  func.func @transform_4(%arg0: i32, %arg1: i32) -> (i32, i32) {
    %c0_i32 = arith.constant 0 : i32
    %c0_i32_0 = arith.constant 0 : i32
    return %c0_i32, %arg1 : i32, i32
  }
  func.func @transform_5(%arg0: i32, %arg1: i32) -> (i32, i32) {
    %c0_i32 = arith.constant 0 : i32
    return %arg0, %arg1 : i32, i32
  }
}

module attributes {stable_mosaic.version = 11 : i64} {
  func.func @_attention_kernel(%arg0: i32, %arg1: i32, %arg2: memref<1x1x5x16xbf16, #tpu.memory_space<vmem>>, %arg3: memref<1x1x16x5xbf16, #tpu.memory_space<vmem>>, %arg4: memref<1x1x5x16xbf16, #tpu.memory_space<vmem>>, %arg5: memref<1x1x5x16xbf16, #tpu.memory_space<vmem>>) attributes {dimension_semantics = [#tpu.dimension_semantics<parallel>, #tpu.dimension_semantics<parallel>], iteration_bounds = array<i64: 2, 4>, scalar_prefetch = 0 : i64, scratch_operands = 0 : i64, tpu.core_type = #tpu.core_type<tc>, window_params = [{transform_indices = @transform_0, window_bounds = array<i64: 1, 1, 5, 16>}, {transform_indices = @transform_1, window_bounds = array<i64: 1, 1, 16, 5>}, {transform_indices = @transform_2, window_bounds = array<i64: 1, 1, 5, 16>}, {transform_indices = @transform_3, window_bounds = array<i64: 1, 1, 5, 16>}]} {
    %c0 = arith.constant 0 : index
    %c0_0 = arith.constant 0 : index
    %c0_1 = arith.constant 0 : index
    %c0_2 = arith.constant 0 : index
    %0 = vector.load %arg2[%c0, %c0_0, %c0_1, %c0_2] : memref<1x1x5x16xbf16, #tpu.memory_space<vmem>>, vector<1x1x5x16xbf16>
    %1 = vector.shape_cast %0 : vector<1x1x5x16xbf16> to vector<5x16xbf16>
    %c0_3 = arith.constant 0 : index
    %c0_4 = arith.constant 0 : index
    %c0_5 = arith.constant 0 : index
    %c0_6 = arith.constant 0 : index
    %2 = vector.load %arg3[%c0_3, %c0_4, %c0_5, %c0_6] : memref<1x1x16x5xbf16, #tpu.memory_space<vmem>>, vector<1x1x16x5xbf16>
    %3 = vector.shape_cast %2 : vector<1x1x16x5xbf16> to vector<16x5xbf16>
    %cst = arith.constant dense<0.000000e+00> : vector<5x5xf32>
    %4 = tpu.matmul %1, %3, %cst {dimension_numbers = #tpu.dot_dimension_numbers<[1], [0], [0], [1], [0, 0, 1, 1], [], []>} : vector<5x16xbf16>, vector<16x5xbf16>, vector<5x5xf32> -> vector<5x5xf32>
    %cst_7 = arith.constant 2.500000e-01 : f32
    %5 = vector.broadcast %cst_7 : f32 to vector<5x5xf32>
    %6 = arith.mulf %4, %5 : vector<5x5xf32>
    %cst_8 = arith.constant dense<0xFF800000> : vector<5xf32>
    %7 = vector.multi_reduction <maximumf>, %6, %cst_8 [1] : vector<5x5xf32> to vector<5xf32>
    %8 = vector.shape_cast %7 : vector<5xf32> to vector<5x1xf32>
    %9 = vector.broadcast %8 : vector<5x1xf32> to vector<5x5xf32>
    %10 = arith.subf %6, %9 : vector<5x5xf32>
    %11 = math.exp %10 : vector<5x5xf32>
    %cst_9 = arith.constant dense<0.000000e+00> : vector<5xf32>
    %12 = vector.multi_reduction <add>, %11, %cst_9 [1] : vector<5x5xf32> to vector<5xf32>
    %13 = vector.shape_cast %12 : vector<5xf32> to vector<5x1xf32>
    %14 = arith.truncf %11 : vector<5x5xf32> to vector<5x5xbf16>
    %c0_10 = arith.constant 0 : index
    %c0_11 = arith.constant 0 : index
    %c0_12 = arith.constant 0 : index
    %c0_13 = arith.constant 0 : index
    %15 = vector.load %arg4[%c0_10, %c0_11, %c0_12, %c0_13] : memref<1x1x5x16xbf16, #tpu.memory_space<vmem>>, vector<1x1x5x16xbf16>
    %16 = vector.shape_cast %15 : vector<1x1x5x16xbf16> to vector<5x16xbf16>
    %cst_14 = arith.constant dense<0.000000e+00> : vector<5x16xf32>
    %17 = tpu.matmul %14, %16, %cst_14 {dimension_numbers = #tpu.dot_dimension_numbers<[1], [0], [0], [1], [0, 0, 1, 1], [], []>} : vector<5x5xbf16>, vector<5x16xbf16>, vector<5x16xf32> -> vector<5x16xf32>
    %18 = tpu.reciprocal %13 {approx = true} : vector<5x1xf32> -> vector<5x1xf32>
    %19 = vector.broadcast %18 : vector<5x1xf32> to vector<5x16xf32>
    %20 = arith.mulf %17, %19 : vector<5x16xf32>
    %21 = arith.truncf %20 : vector<5x16xf32> to vector<5x16xbf16>
    %c0_15 = arith.constant 0 : index
    %c0_16 = arith.constant 0 : index
    %c0_17 = arith.constant 0 : index
    %c0_18 = arith.constant 0 : index
    %22 = vector.load %arg5[%c0_15, %c0_16, %c0_17, %c0_18] : memref<1x1x5x16xbf16, #tpu.memory_space<vmem>>, vector<1x1x5x16xbf16>
    %23 = vector.shape_cast %22 : vector<1x1x5x16xbf16> to vector<5x16xbf16>
    %24 = vector.shape_cast %21 : vector<5x16xbf16> to vector<1x1x5x16xbf16>
    tpu.vector_store %arg5[%c0_15, %c0_16, %c0_17, %c0_18], %24 {strides = array<i32>} : memref<1x1x5x16xbf16, #tpu.memory_space<vmem>>, vector<1x1x5x16xbf16>,
    return
  }
  func.func @transform_0(%arg0: i32, %arg1: i32) -> (i32, i32, i32, i32) {
    %c0_i32 = arith.constant 0 : i32
    %c0_i32_0 = arith.constant 0 : i32
    %c0_i32_1 = arith.constant 0 : i32
    return %arg0, %arg1, %c0_i32, %c0_i32_0 : i32, i32, i32, i32
  }
  func.func @transform_1(%arg0: i32, %arg1: i32) -> (i32, i32, i32, i32) {
    %c0_i32 = arith.constant 0 : i32
    %c0_i32_0 = arith.constant 0 : i32
    %c0_i32_1 = arith.constant 0 : i32
    return %arg0, %arg1, %c0_i32, %c0_i32_0 : i32, i32, i32, i32
  }
  func.func @transform_2(%arg0: i32, %arg1: i32) -> (i32, i32, i32, i32) {
    %c0_i32 = arith.constant 0 : i32
    %c0_i32_0 = arith.constant 0 : i32
    %c0_i32_1 = arith.constant 0 : i32
    return %arg0, %arg1, %c0_i32, %c0_i32_0 : i32, i32, i32, i32
  }
  func.func @transform_3(%arg0: i32, %arg1: i32) -> (i32, i32, i32, i32) {
    %c0_i32 = arith.constant 0 : i32
    %c0_i32_0 = arith.constant 0 : i32
    %c0_i32_1 = arith.constant 0 : i32
    return %arg0, %arg1, %c0_i32, %c0_i32_0 : i32, i32, i32, i32
  }
}

module attributes {stable_mosaic.version = 11 : i64} {
  func.func @_matmul_kernel(%arg0: i32, %arg1: i32, %arg2: i32, %arg3: memref<16x128xbf16, #tpu.memory_space<vmem>>, %arg4: memref<128x128xbf16, #tpu.memory_space<vmem>>, %arg5: memref<1x128xf32, #tpu.memory_space<vmem>>, %arg6: memref<16x128xf32, #tpu.memory_space<vmem>>, %arg7: memref<16x128xf32, #tpu.memory_space<vmem>>, %arg8: memref<16x128xf32, #tpu.memory_space<vmem>>) attributes {dimension_semantics = [#tpu.dimension_semantics<parallel>, #tpu.dimension_semantics<parallel>, #tpu.dimension_semantics<arbitrary>], iteration_bounds = array<i64: 1, 1, 1>, scalar_prefetch = 0 : i64, scratch_operands = 1 : i64, tpu.core_type = #tpu.core_type<tc>, window_params = [{transform_indices = @transform_0, window_bounds = array<i64: 16, 128>}, {transform_indices = @transform_1, window_bounds = array<i64: 128, 128>}, {transform_indices = @transform_2, window_bounds = array<i64: 1, 128>}, {transform_indices = @transform_3, window_bounds = array<i64: 16, 128>}, {transform_indices = @transform_4, window_bounds = array<i64: 16, 128>}]} {
    %c0_i32 = arith.constant 0 : i32
    %0 = arith.cmpi eq, %arg2, %c0_i32 : i32
    %1 = arith.extui %0 : i1 to i32
    %c0_i32_0 = arith.constant 0 : i32
    %2 = arith.cmpi ne, %1, %c0_i32_0 : i32
    scf.if %2 {
      %cst_10 = arith.constant 0.000000e+00 : f32
      %12 = vector.broadcast %cst_10 : f32 to vector<16x128xf32>
      %c0_11 = arith.constant 0 : index
      %c0_12 = arith.constant 0 : index
      %13 = vector.load %arg8[%c0_11, %c0_12] : memref<16x128xf32, #tpu.memory_space<vmem>>, vector<16x128xf32>
      tpu.vector_store %arg8[%c0_11, %c0_12], %12 {strides = array<i32>} : memref<16x128xf32, #tpu.memory_space<vmem>>, vector<16x128xf32>,
    } else {
    }
    %c0 = arith.constant 0 : index
    %c0_1 = arith.constant 0 : index
    %3 = vector.load %arg8[%c0, %c0_1] : memref<16x128xf32, #tpu.memory_space<vmem>>, vector<16x128xf32>
    %c0_2 = arith.constant 0 : index
    %c0_3 = arith.constant 0 : index
    %4 = vector.load %arg3[%c0_2, %c0_3] : memref<16x128xbf16, #tpu.memory_space<vmem>>, vector<16x128xbf16>
    %c0_4 = arith.constant 0 : index
    %c0_5 = arith.constant 0 : index
    %5 = vector.load %arg4[%c0_4, %c0_5] : memref<128x128xbf16, #tpu.memory_space<vmem>>, vector<128x128xbf16>
    %cst = arith.constant dense<0.000000e+00> : vector<16x128xf32>
    %6 = tpu.matmul %4, %5, %cst {dimension_numbers = #tpu.dot_dimension_numbers<[1], [0], [0], [1], [0, 0, 1, 1], [], []>} : vector<16x128xbf16>, vector<128x128xbf16>, vector<16x128xf32> -> vector<16x128xf32>
    %7 = arith.addf %3, %6 : vector<16x128xf32>
    %c0_6 = arith.constant 0 : index
    %c0_7 = arith.constant 0 : index
    %8 = vector.load %arg8[%c0_6, %c0_7] : memref<16x128xf32, #tpu.memory_space<vmem>>, vector<16x128xf32>
    tpu.vector_store %arg8[%c0_6, %c0_7], %7 {strides = array<i32>} : memref<16x128xf32, #tpu.memory_space<vmem>>, vector<16x128xf32>,
    %c0_i32_8 = arith.constant 0 : i32
    %9 = arith.cmpi eq, %arg2, %c0_i32_8 : i32
    %10 = arith.extui %9 : i1 to i32
    %c0_i32_9 = arith.constant 0 : i32
    %11 = arith.cmpi ne, %10, %c0_i32_9 : i32
    scf.if %11 {
      %c0_10 = arith.constant 0 : index
      %c0_11 = arith.constant 0 : index
      %12 = vector.load %arg8[%c0_10, %c0_11] : memref<16x128xf32, #tpu.memory_space<vmem>>, vector<16x128xf32>
      %c0_12 = arith.constant 0 : index
      %c0_13 = arith.constant 0 : index
      %13 = vector.load %arg5[%c0_12, %c0_13] : memref<1x128xf32, #tpu.memory_space<vmem>>, vector<1x128xf32>
      %14 = vector.broadcast %13 : vector<1x128xf32> to vector<16x128xf32>
      %15 = arith.addf %12, %14 : vector<16x128xf32>
      %c0_14 = arith.constant 0 : index
      %c0_15 = arith.constant 0 : index
      %16 = vector.load %arg6[%c0_14, %c0_15] : memref<16x128xf32, #tpu.memory_space<vmem>>, vector<16x128xf32>
      %17 = arith.addf %15, %16 : vector<16x128xf32>
      %c0_16 = arith.constant 0 : index
      %c0_17 = arith.constant 0 : index
      %18 = vector.load %arg7[%c0_16, %c0_17] : memref<16x128xf32, #tpu.memory_space<vmem>>, vector<16x128xf32>
      tpu.vector_store %arg7[%c0_16, %c0_17], %17 {strides = array<i32>} : memref<16x128xf32, #tpu.memory_space<vmem>>, vector<16x128xf32>,
    } else {
    }
    return
  }
  func.func @transform_0(%arg0: i32, %arg1: i32, %arg2: i32) -> (i32, i32) {
    %c0_i32 = arith.constant 0 : i32
    return %arg0, %arg2 : i32, i32
  }
  func.func @transform_1(%arg0: i32, %arg1: i32, %arg2: i32) -> (i32, i32) {
    %c0_i32 = arith.constant 0 : i32
    return %arg2, %arg1 : i32, i32
  }
  func.func @transform_2(%arg0: i32, %arg1: i32, %arg2: i32) -> (i32, i32) {
    %c0_i32 = arith.constant 0 : i32
    %c0_i32_0 = arith.constant 0 : i32
    return %c0_i32, %arg1 : i32, i32
  }
  func.func @transform_3(%arg0: i32, %arg1: i32, %arg2: i32) -> (i32, i32) {
    %c0_i32 = arith.constant 0 : i32
    return %arg0, %arg1 : i32, i32
  }
  func.func @transform_4(%arg0: i32, %arg1: i32, %arg2: i32) -> (i32, i32) {
    %c0_i32 = arith.constant 0 : i32
    return %arg0, %arg1 : i32, i32
  }
}

module attributes {stable_mosaic.version = 11 : i64} {
  func.func @_ln_matmul_kernel(%arg0: i32, %arg1: i32, %arg2: memref<16x64xf32, #tpu.memory_space<vmem>>, %arg3: memref<1x64xf32, #tpu.memory_space<vmem>>, %arg4: memref<1x64xf32, #tpu.memory_space<vmem>>, %arg5: memref<64x256xbf16, #tpu.memory_space<vmem>>, %arg6: memref<1x256xf32, #tpu.memory_space<vmem>>, %arg7: memref<16x256xbf16, #tpu.memory_space<vmem>>) attributes {dimension_semantics = [#tpu.dimension_semantics<parallel>, #tpu.dimension_semantics<parallel>], iteration_bounds = array<i64: 1, 1>, scalar_prefetch = 0 : i64, scratch_operands = 0 : i64, tpu.core_type = #tpu.core_type<tc>, window_params = [{transform_indices = @transform_0, window_bounds = array<i64: 16, 64>}, {pipeline_mode = #tpu.pipeline_mode<synchronous>, transform_indices = @transform_1, window_bounds = array<i64: 1, 64>}, {pipeline_mode = #tpu.pipeline_mode<synchronous>, transform_indices = @transform_2, window_bounds = array<i64: 1, 64>}, {transform_indices = @transform_3, window_bounds = array<i64: 64, 256>}, {transform_indices = @transform_4, window_bounds = array<i64: 1, 256>}, {transform_indices = @transform_5, window_bounds = array<i64: 16, 256>}]} {
    %c0 = arith.constant 0 : index
    %c0_0 = arith.constant 0 : index
    %0 = vector.load %arg2[%c0, %c0_0] : memref<16x64xf32, #tpu.memory_space<vmem>>, vector<16x64xf32>
    %cst = arith.constant dense<0.000000e+00> : vector<16xf32>
    %1 = vector.multi_reduction <add>, %0, %cst [1] : vector<16x64xf32> to vector<16xf32>
    %2 = vector.shape_cast %1 : vector<16xf32> to vector<16x1xf32>
    %cst_1 = arith.constant 6.400000e+01 : f32
    %3 = vector.broadcast %cst_1 : f32 to vector<16x1xf32>
    %4 = arith.divf %2, %3 : vector<16x1xf32>
    %5 = vector.broadcast %4 : vector<16x1xf32> to vector<16x64xf32>
    %6 = arith.subf %0, %5 : vector<16x64xf32>
    %7 = arith.mulf %6, %6 : vector<16x64xf32>
    %cst_2 = arith.constant dense<0.000000e+00> : vector<16xf32>
    %8 = vector.multi_reduction <add>, %7, %cst_2 [1] : vector<16x64xf32> to vector<16xf32>
    %9 = vector.shape_cast %8 : vector<16xf32> to vector<16x1xf32>
    %cst_3 = arith.constant 6.400000e+01 : f32
    %10 = vector.broadcast %cst_3 : f32 to vector<16x1xf32>
    %11 = arith.divf %9, %10 : vector<16x1xf32>
    %cst_4 = arith.constant 9.99999974E-6 : f32
    %12 = vector.broadcast %cst_4 : f32 to vector<16x1xf32>
    %13 = arith.addf %11, %12 : vector<16x1xf32>
    %14 = math.rsqrt %13 : vector<16x1xf32>
    %15 = vector.broadcast %14 : vector<16x1xf32> to vector<16x64xf32>
    %16 = arith.mulf %6, %15 : vector<16x64xf32>
    %c0_5 = arith.constant 0 : index
    %c0_6 = arith.constant 0 : index
    %17 = vector.load %arg3[%c0_5, %c0_6] : memref<1x64xf32, #tpu.memory_space<vmem>>, vector<1x64xf32>
    %18 = vector.broadcast %17 : vector<1x64xf32> to vector<16x64xf32>
    %19 = arith.mulf %16, %18 : vector<16x64xf32>
    %c0_7 = arith.constant 0 : index
    %c0_8 = arith.constant 0 : index
    %20 = vector.load %arg4[%c0_7, %c0_8] : memref<1x64xf32, #tpu.memory_space<vmem>>, vector<1x64xf32>
    %21 = vector.broadcast %20 : vector<1x64xf32> to vector<16x64xf32>
    %22 = arith.addf %19, %21 : vector<16x64xf32>
    %23 = arith.truncf %22 : vector<16x64xf32> to vector<16x64xbf16>
    %c0_9 = arith.constant 0 : index
    %c0_10 = arith.constant 0 : index
    %24 = vector.load %arg5[%c0_9, %c0_10] : memref<64x256xbf16, #tpu.memory_space<vmem>>, vector<64x256xbf16>
    %cst_11 = arith.constant dense<0.000000e+00> : vector<16x256xf32>
    %25 = tpu.matmul %23, %24, %cst_11 {dimension_numbers = #tpu.dot_dimension_numbers<[1], [0], [0], [1], [0, 0, 1, 1], [], []>} : vector<16x64xbf16>, vector<64x256xbf16>, vector<16x256xf32> -> vector<16x256xf32>
    %c0_12 = arith.constant 0 : index
    %c0_13 = arith.constant 0 : index
    %26 = vector.load %arg6[%c0_12, %c0_13] : memref<1x256xf32, #tpu.memory_space<vmem>>, vector<1x256xf32>
    %27 = vector.broadcast %26 : vector<1x256xf32> to vector<16x256xf32>
    %28 = arith.addf %25, %27 : vector<16x256xf32>
    %cst_14 = arith.constant 5.000000e-01 : f32
    %29 = vector.broadcast %cst_14 : f32 to vector<16x256xf32>
    %30 = arith.mulf %29, %28 : vector<16x256xf32>
    %cst_15 = arith.constant 0.707106769 : f32
    %31 = vector.broadcast %cst_15 : f32 to vector<16x256xf32>
    %32 = arith.mulf %28, %31 : vector<16x256xf32>
    %33 = math.absf %32 : vector<16x256xf32>
    %cst_16 = arith.constant 0.327591091 : f32
    %34 = vector.broadcast %cst_16 : f32 to vector<16x256xf32>
    %35 = arith.mulf %34, %33 : vector<16x256xf32>
    %cst_17 = arith.constant 1.000000e+00 : f32
    %36 = vector.broadcast %cst_17 : f32 to vector<16x256xf32>
    %37 = arith.addf %36, %35 : vector<16x256xf32>
    %cst_18 = arith.constant 1.000000e+00 : f32
    %38 = vector.broadcast %cst_18 : f32 to vector<16x256xf32>
    %39 = arith.divf %38, %37 : vector<16x256xf32>
    %cst_19 = arith.constant 1.06140542 : f32
    %40 = vector.broadcast %cst_19 : f32 to vector<16x256xf32>
    %41 = arith.mulf %40, %39 : vector<16x256xf32>
    %cst_20 = arith.constant -1.45315206 : f32
    %42 = vector.broadcast %cst_20 : f32 to vector<16x256xf32>
    %43 = arith.addf %41, %42 : vector<16x256xf32>
    %44 = arith.mulf %43, %39 : vector<16x256xf32>
    %cst_21 = arith.constant 1.42141378 : f32
    %45 = vector.broadcast %cst_21 : f32 to vector<16x256xf32>
    %46 = arith.addf %44, %45 : vector<16x256xf32>
    %47 = arith.mulf %46, %39 : vector<16x256xf32>
    %cst_22 = arith.constant -0.284496725 : f32
    %48 = vector.broadcast %cst_22 : f32 to vector<16x256xf32>
    %49 = arith.addf %47, %48 : vector<16x256xf32>
    %50 = arith.mulf %49, %39 : vector<16x256xf32>
    %cst_23 = arith.constant 0.254829586 : f32
    %51 = vector.broadcast %cst_23 : f32 to vector<16x256xf32>
    %52 = arith.addf %50, %51 : vector<16x256xf32>
    %53 = arith.mulf %52, %39 : vector<16x256xf32>
    %cst_24 = arith.constant 0.000000e+00 : f32
    %54 = vector.broadcast %cst_24 : f32 to vector<16x256xf32>
    %55 = arith.subf %54, %33 : vector<16x256xf32>
    %56 = arith.mulf %55, %33 : vector<16x256xf32>
    %57 = math.exp %56 : vector<16x256xf32>
    %58 = arith.mulf %53, %57 : vector<16x256xf32>
    %cst_25 = arith.constant 1.000000e+00 : f32
    %59 = vector.broadcast %cst_25 : f32 to vector<16x256xf32>
    %60 = arith.subf %59, %58 : vector<16x256xf32>
    %cst_26 = arith.constant 0.000000e+00 : f32
    %61 = vector.broadcast %cst_26 : f32 to vector<16x256xf32>
    %62 = arith.cmpf olt, %32, %61 : vector<16x256xf32>
    %cst_27 = arith.constant 0.000000e+00 : f32
    %63 = vector.broadcast %cst_27 : f32 to vector<16x256xf32>
    %64 = arith.subf %63, %60 : vector<16x256xf32>
    %65 = arith.select %62, %64, %60 : vector<16x256xi1>, vector<16x256xf32>
    %cst_28 = arith.constant 1.000000e+00 : f32
    %66 = vector.broadcast %cst_28 : f32 to vector<16x256xf32>
    %67 = arith.addf %66, %65 : vector<16x256xf32>
    %68 = arith.mulf %30, %67 : vector<16x256xf32>
    %69 = arith.truncf %68 : vector<16x256xf32> to vector<16x256xbf16>
    %c0_29 = arith.constant 0 : index
    %c0_30 = arith.constant 0 : index
    %70 = vector.load %arg7[%c0_29, %c0_30] : memref<16x256xbf16, #tpu.memory_space<vmem>>, vector<16x256xbf16>
    tpu.vector_store %arg7[%c0_29, %c0_30], %69 {strides = array<i32>} : memref<16x256xbf16, #tpu.memory_space<vmem>>, vector<16x256xbf16>,
    return
  }
  func.func @transform_0(%arg0: i32, %arg1: i32) -> (i32, i32) {
    %c0_i32 = arith.constant 0 : i32
    %c0_i32_0 = arith.constant 0 : i32
    return %arg0, %c0_i32 : i32, i32
  }
  func.func @transform_1(%arg0: i32, %arg1: i32) -> (i32, i32) {
    %c0_i32 = arith.constant 0 : i32
    %c0_i32_0 = arith.constant 0 : i32
    %c0_i32_1 = arith.constant 0 : i32
    return %c0_i32, %c0_i32_0 : i32, i32
  }
  func.func @transform_2(%arg0: i32, %arg1: i32) -> (i32, i32) {
    %c0_i32 = arith.constant 0 : i32
    %c0_i32_0 = arith.constant 0 : i32
    %c0_i32_1 = arith.constant 0 : i32
    return %c0_i32, %c0_i32_0 : i32, i32
  }
  func.func @transform_3(%arg0: i32, %arg1: i32) -> (i32, i32) {
    %c0_i32 = arith.constant 0 : i32
    %c0_i32_0 = arith.constant 0 : i32
    return %c0_i32, %arg1 : i32, i32
  }
  func.func @transform_4(%arg0: i32, %arg1: i32) -> (i32, i32) {
    %c0_i32 = arith.constant 0 : i32
    %c0_i32_0 = arith.constant 0 : i32
    return %c0_i32, %arg1 : i32, i32
  }
  func.func @transform_5(%arg0: i32, %arg1: i32) -> (i32, i32) {
    %c0_i32 = arith.constant 0 : i32
    return %arg0, %arg1 : i32, i32
  }
}

module attributes {stable_mosaic.version = 11 : i64} {
  func.func @_layernorm_kernel(%arg0: i32, %arg1: memref<16x64xf32, #tpu.memory_space<vmem>>, %arg2: memref<1x64xf32, #tpu.memory_space<vmem>>, %arg3: memref<1x64xf32, #tpu.memory_space<vmem>>, %arg4: memref<16x64xf32, #tpu.memory_space<vmem>>) attributes {dimension_semantics = [#tpu.dimension_semantics<parallel>], iteration_bounds = array<i64: 1>, scalar_prefetch = 0 : i64, scratch_operands = 0 : i64, tpu.core_type = #tpu.core_type<tc>, window_params = [{transform_indices = @transform_0, window_bounds = array<i64: 16, 64>}, {pipeline_mode = #tpu.pipeline_mode<synchronous>, transform_indices = @transform_1, window_bounds = array<i64: 1, 64>}, {pipeline_mode = #tpu.pipeline_mode<synchronous>, transform_indices = @transform_2, window_bounds = array<i64: 1, 64>}, {transform_indices = @transform_3, window_bounds = array<i64: 16, 64>}]} {
    %c0 = arith.constant 0 : index
    %c0_0 = arith.constant 0 : index
    %0 = vector.load %arg1[%c0, %c0_0] : memref<16x64xf32, #tpu.memory_space<vmem>>, vector<16x64xf32>
    %cst = arith.constant dense<0.000000e+00> : vector<16xf32>
    %1 = vector.multi_reduction <add>, %0, %cst [1] : vector<16x64xf32> to vector<16xf32>
    %2 = vector.shape_cast %1 : vector<16xf32> to vector<16x1xf32>
    %cst_1 = arith.constant 6.400000e+01 : f32
    %3 = vector.broadcast %cst_1 : f32 to vector<16x1xf32>
    %4 = arith.divf %2, %3 : vector<16x1xf32>
    %5 = vector.broadcast %4 : vector<16x1xf32> to vector<16x64xf32>
    %6 = arith.subf %0, %5 : vector<16x64xf32>
    %7 = arith.mulf %6, %6 : vector<16x64xf32>
    %cst_2 = arith.constant dense<0.000000e+00> : vector<16xf32>
    %8 = vector.multi_reduction <add>, %7, %cst_2 [1] : vector<16x64xf32> to vector<16xf32>
    %9 = vector.shape_cast %8 : vector<16xf32> to vector<16x1xf32>
    %cst_3 = arith.constant 6.400000e+01 : f32
    %10 = vector.broadcast %cst_3 : f32 to vector<16x1xf32>
    %11 = arith.divf %9, %10 : vector<16x1xf32>
    %cst_4 = arith.constant 9.99999974E-6 : f32
    %12 = vector.broadcast %cst_4 : f32 to vector<16x1xf32>
    %13 = arith.addf %11, %12 : vector<16x1xf32>
    %14 = math.rsqrt %13 : vector<16x1xf32>
    %15 = vector.broadcast %14 : vector<16x1xf32> to vector<16x64xf32>
    %16 = arith.mulf %6, %15 : vector<16x64xf32>
    %c0_5 = arith.constant 0 : index
    %c0_6 = arith.constant 0 : index
    %17 = vector.load %arg2[%c0_5, %c0_6] : memref<1x64xf32, #tpu.memory_space<vmem>>, vector<1x64xf32>
    %18 = vector.broadcast %17 : vector<1x64xf32> to vector<16x64xf32>
    %19 = arith.mulf %16, %18 : vector<16x64xf32>
    %c0_7 = arith.constant 0 : index
    %c0_8 = arith.constant 0 : index
    %20 = vector.load %arg3[%c0_7, %c0_8] : memref<1x64xf32, #tpu.memory_space<vmem>>, vector<1x64xf32>
    %21 = vector.broadcast %20 : vector<1x64xf32> to vector<16x64xf32>
    %22 = arith.addf %19, %21 : vector<16x64xf32>
    %c0_9 = arith.constant 0 : index
    %c0_10 = arith.constant 0 : index
    %23 = vector.load %arg4[%c0_9, %c0_10] : memref<16x64xf32, #tpu.memory_space<vmem>>, vector<16x64xf32>
    tpu.vector_store %arg4[%c0_9, %c0_10], %22 {strides = array<i32>} : memref<16x64xf32, #tpu.memory_space<vmem>>, vector<16x64xf32>,
    return
  }
  func.func @transform_0(%arg0: i32) -> (i32, i32) {
    %c0_i32 = arith.constant 0 : i32
    %c0_i32_0 = arith.constant 0 : i32
    return %arg0, %c0_i32 : i32, i32
  }
  func.func @transform_1(%arg0: i32) -> (i32, i32) {
    %c0_i32 = arith.constant 0 : i32
    %c0_i32_0 = arith.constant 0 : i32
    %c0_i32_1 = arith.constant 0 : i32
    return %c0_i32, %c0_i32_0 : i32, i32
  }
  func.func @transform_2(%arg0: i32) -> (i32, i32) {
    %c0_i32 = arith.constant 0 : i32
    %c0_i32_0 = arith.constant 0 : i32
    %c0_i32_1 = arith.constant 0 : i32
    return %c0_i32, %c0_i32_0 : i32, i32
  }
  func.func @transform_3(%arg0: i32) -> (i32, i32) {
    %c0_i32 = arith.constant 0 : i32
    %c0_i32_0 = arith.constant 0 : i32
    return %arg0, %c0_i32 : i32, i32
  }
}

module attributes {stable_mosaic.version = 11 : i64} {
  func.func @_matmul_kernel(%arg0: i32, %arg1: i32, %arg2: i32, %arg3: memref<16x256xbf16, #tpu.memory_space<vmem>>, %arg4: memref<256x128xbf16, #tpu.memory_space<vmem>>, %arg5: memref<1x128xf32, #tpu.memory_space<vmem>>, %arg6: memref<16x128xf32, #tpu.memory_space<vmem>>, %arg7: memref<16x128xf32, #tpu.memory_space<vmem>>, %arg8: memref<16x128xf32, #tpu.memory_space<vmem>>) attributes {dimension_semantics = [#tpu.dimension_semantics<parallel>, #tpu.dimension_semantics<parallel>, #tpu.dimension_semantics<arbitrary>], iteration_bounds = array<i64: 1, 1, 1>, scalar_prefetch = 0 : i64, scratch_operands = 1 : i64, tpu.core_type = #tpu.core_type<tc>, window_params = [{transform_indices = @transform_0, window_bounds = array<i64: 16, 256>}, {transform_indices = @transform_1, window_bounds = array<i64: 256, 128>}, {transform_indices = @transform_2, window_bounds = array<i64: 1, 128>}, {transform_indices = @transform_3, window_bounds = array<i64: 16, 128>}, {transform_indices = @transform_4, window_bounds = array<i64: 16, 128>}]} {
    %c0_i32 = arith.constant 0 : i32
    %0 = arith.cmpi eq, %arg2, %c0_i32 : i32
    %1 = arith.extui %0 : i1 to i32
    %c0_i32_0 = arith.constant 0 : i32
    %2 = arith.cmpi ne, %1, %c0_i32_0 : i32
    scf.if %2 {
      %cst_10 = arith.constant 0.000000e+00 : f32
      %12 = vector.broadcast %cst_10 : f32 to vector<16x128xf32>
      %c0_11 = arith.constant 0 : index
      %c0_12 = arith.constant 0 : index
      %13 = vector.load %arg8[%c0_11, %c0_12] : memref<16x128xf32, #tpu.memory_space<vmem>>, vector<16x128xf32>
      tpu.vector_store %arg8[%c0_11, %c0_12], %12 {strides = array<i32>} : memref<16x128xf32, #tpu.memory_space<vmem>>, vector<16x128xf32>,
    } else {
    }
    %c0 = arith.constant 0 : index
    %c0_1 = arith.constant 0 : index
    %3 = vector.load %arg8[%c0, %c0_1] : memref<16x128xf32, #tpu.memory_space<vmem>>, vector<16x128xf32>
    %c0_2 = arith.constant 0 : index
    %c0_3 = arith.constant 0 : index
    %4 = vector.load %arg3[%c0_2, %c0_3] : memref<16x256xbf16, #tpu.memory_space<vmem>>, vector<16x256xbf16>
    %c0_4 = arith.constant 0 : index
    %c0_5 = arith.constant 0 : index
    %5 = vector.load %arg4[%c0_4, %c0_5] : memref<256x128xbf16, #tpu.memory_space<vmem>>, vector<256x128xbf16>
    %cst = arith.constant dense<0.000000e+00> : vector<16x128xf32>
    %6 = tpu.matmul %4, %5, %cst {dimension_numbers = #tpu.dot_dimension_numbers<[1], [0], [0], [1], [0, 0, 1, 1], [], []>} : vector<16x256xbf16>, vector<256x128xbf16>, vector<16x128xf32> -> vector<16x128xf32>
    %7 = arith.addf %3, %6 : vector<16x128xf32>
    %c0_6 = arith.constant 0 : index
    %c0_7 = arith.constant 0 : index
    %8 = vector.load %arg8[%c0_6, %c0_7] : memref<16x128xf32, #tpu.memory_space<vmem>>, vector<16x128xf32>
    tpu.vector_store %arg8[%c0_6, %c0_7], %7 {strides = array<i32>} : memref<16x128xf32, #tpu.memory_space<vmem>>, vector<16x128xf32>,
    %c0_i32_8 = arith.constant 0 : i32
    %9 = arith.cmpi eq, %arg2, %c0_i32_8 : i32
    %10 = arith.extui %9 : i1 to i32
    %c0_i32_9 = arith.constant 0 : i32
    %11 = arith.cmpi ne, %10, %c0_i32_9 : i32
    scf.if %11 {
      %c0_10 = arith.constant 0 : index
      %c0_11 = arith.constant 0 : index
      %12 = vector.load %arg8[%c0_10, %c0_11] : memref<16x128xf32, #tpu.memory_space<vmem>>, vector<16x128xf32>
      %c0_12 = arith.constant 0 : index
      %c0_13 = arith.constant 0 : index
      %13 = vector.load %arg5[%c0_12, %c0_13] : memref<1x128xf32, #tpu.memory_space<vmem>>, vector<1x128xf32>
      %14 = vector.broadcast %13 : vector<1x128xf32> to vector<16x128xf32>
      %15 = arith.addf %12, %14 : vector<16x128xf32>
      %c0_14 = arith.constant 0 : index
      %c0_15 = arith.constant 0 : index
      %16 = vector.load %arg6[%c0_14, %c0_15] : memref<16x128xf32, #tpu.memory_space<vmem>>, vector<16x128xf32>
      %17 = arith.addf %15, %16 : vector<16x128xf32>
      %c0_16 = arith.constant 0 : index
      %c0_17 = arith.constant 0 : index
      %18 = vector.load %arg7[%c0_16, %c0_17] : memref<16x128xf32, #tpu.memory_space<vmem>>, vector<16x128xf32>
      tpu.vector_store %arg7[%c0_16, %c0_17], %17 {strides = array<i32>} : memref<16x128xf32, #tpu.memory_space<vmem>>, vector<16x128xf32>,
    } else {
    }
    return
  }
  func.func @transform_0(%arg0: i32, %arg1: i32, %arg2: i32) -> (i32, i32) {
    %c0_i32 = arith.constant 0 : i32
    return %arg0, %arg2 : i32, i32
  }
  func.func @transform_1(%arg0: i32, %arg1: i32, %arg2: i32) -> (i32, i32) {
    %c0_i32 = arith.constant 0 : i32
    return %arg2, %arg1 : i32, i32
  }
  func.func @transform_2(%arg0: i32, %arg1: i32, %arg2: i32) -> (i32, i32) {
    %c0_i32 = arith.constant 0 : i32
    %c0_i32_0 = arith.constant 0 : i32
    return %c0_i32, %arg1 : i32, i32
  }
  func.func @transform_3(%arg0: i32, %arg1: i32, %arg2: i32) -> (i32, i32) {
    %c0_i32 = arith.constant 0 : i32
    return %arg0, %arg1 : i32, i32
  }
  func.func @transform_4(%arg0: i32, %arg1: i32, %arg2: i32) -> (i32, i32) {
    %c0_i32 = arith.constant 0 : i32
    return %arg0, %arg1 : i32, i32
  }
}

module attributes {stable_mosaic.version = 11 : i64} {
  func.func @_matmul_kernel(%arg0: i32, %arg1: i32, %arg2: i32, %arg3: memref<8x128xbf16, #tpu.memory_space<vmem>>, %arg4: memref<128x256xbf16, #tpu.memory_space<vmem>>, %arg5: memref<1x256xf32, #tpu.memory_space<vmem>>, %arg6: memref<8x256xf32, #tpu.memory_space<vmem>>, %arg7: memref<8x256xf32, #tpu.memory_space<vmem>>) attributes {dimension_semantics = [#tpu.dimension_semantics<parallel>, #tpu.dimension_semantics<parallel>, #tpu.dimension_semantics<arbitrary>], iteration_bounds = array<i64: 1, 2, 1>, scalar_prefetch = 0 : i64, scratch_operands = 1 : i64, tpu.core_type = #tpu.core_type<tc>, window_params = [{transform_indices = @transform_0, window_bounds = array<i64: 8, 128>}, {transform_indices = @transform_1, window_bounds = array<i64: 128, 256>}, {transform_indices = @transform_2, window_bounds = array<i64: 1, 256>}, {transform_indices = @transform_3, window_bounds = array<i64: 8, 256>}]} {
    %c0_i32 = arith.constant 0 : i32
    %0 = arith.cmpi eq, %arg2, %c0_i32 : i32
    %1 = arith.extui %0 : i1 to i32
    %c0_i32_0 = arith.constant 0 : i32
    %2 = arith.cmpi ne, %1, %c0_i32_0 : i32
    scf.if %2 {
      %cst_10 = arith.constant 0.000000e+00 : f32
      %12 = vector.broadcast %cst_10 : f32 to vector<8x256xf32>
      %c0_11 = arith.constant 0 : index
      %c0_12 = arith.constant 0 : index
      %13 = vector.load %arg7[%c0_11, %c0_12] : memref<8x256xf32, #tpu.memory_space<vmem>>, vector<8x256xf32>
      tpu.vector_store %arg7[%c0_11, %c0_12], %12 {strides = array<i32>} : memref<8x256xf32, #tpu.memory_space<vmem>>, vector<8x256xf32>,
    } else {
    }
    %c0 = arith.constant 0 : index
    %c0_1 = arith.constant 0 : index
    %3 = vector.load %arg7[%c0, %c0_1] : memref<8x256xf32, #tpu.memory_space<vmem>>, vector<8x256xf32>
    %c0_2 = arith.constant 0 : index
    %c0_3 = arith.constant 0 : index
    %4 = vector.load %arg3[%c0_2, %c0_3] : memref<8x128xbf16, #tpu.memory_space<vmem>>, vector<8x128xbf16>
    %c0_4 = arith.constant 0 : index
    %c0_5 = arith.constant 0 : index
    %5 = vector.load %arg4[%c0_4, %c0_5] : memref<128x256xbf16, #tpu.memory_space<vmem>>, vector<128x256xbf16>
    %cst = arith.constant dense<0.000000e+00> : vector<8x256xf32>
    %6 = tpu.matmul %4, %5, %cst {dimension_numbers = #tpu.dot_dimension_numbers<[1], [0], [0], [1], [0, 0, 1, 1], [], []>} : vector<8x128xbf16>, vector<128x256xbf16>, vector<8x256xf32> -> vector<8x256xf32>
    %7 = arith.addf %3, %6 : vector<8x256xf32>
    %c0_6 = arith.constant 0 : index
    %c0_7 = arith.constant 0 : index
    %8 = vector.load %arg7[%c0_6, %c0_7] : memref<8x256xf32, #tpu.memory_space<vmem>>, vector<8x256xf32>
    tpu.vector_store %arg7[%c0_6, %c0_7], %7 {strides = array<i32>} : memref<8x256xf32, #tpu.memory_space<vmem>>, vector<8x256xf32>,
    %c0_i32_8 = arith.constant 0 : i32
    %9 = arith.cmpi eq, %arg2, %c0_i32_8 : i32
    %10 = arith.extui %9 : i1 to i32
    %c0_i32_9 = arith.constant 0 : i32
    %11 = arith.cmpi ne, %10, %c0_i32_9 : i32
    scf.if %11 {
      %c0_10 = arith.constant 0 : index
      %c0_11 = arith.constant 0 : index
      %12 = vector.load %arg7[%c0_10, %c0_11] : memref<8x256xf32, #tpu.memory_space<vmem>>, vector<8x256xf32>
      %c0_12 = arith.constant 0 : index
      %c0_13 = arith.constant 0 : index
      %13 = vector.load %arg5[%c0_12, %c0_13] : memref<1x256xf32, #tpu.memory_space<vmem>>, vector<1x256xf32>
      %14 = vector.broadcast %13 : vector<1x256xf32> to vector<8x256xf32>
      %15 = arith.addf %12, %14 : vector<8x256xf32>
      %cst_14 = arith.constant 0.000000e+00 : f32
      %16 = vector.broadcast %cst_14 : f32 to vector<8x256xf32>
      %17 = arith.maximumf %15, %16 : vector<8x256xf32>
      %c0_15 = arith.constant 0 : index
      %c0_16 = arith.constant 0 : index
      %18 = vector.load %arg6[%c0_15, %c0_16] : memref<8x256xf32, #tpu.memory_space<vmem>>, vector<8x256xf32>
      tpu.vector_store %arg6[%c0_15, %c0_16], %17 {strides = array<i32>} : memref<8x256xf32, #tpu.memory_space<vmem>>, vector<8x256xf32>,
    } else {
    }
    return
  }
  func.func @transform_0(%arg0: i32, %arg1: i32, %arg2: i32) -> (i32, i32) {
    %c0_i32 = arith.constant 0 : i32
    return %arg0, %arg2 : i32, i32
  }
  func.func @transform_1(%arg0: i32, %arg1: i32, %arg2: i32) -> (i32, i32) {
    %c0_i32 = arith.constant 0 : i32
    return %arg2, %arg1 : i32, i32
  }
  func.func @transform_2(%arg0: i32, %arg1: i32, %arg2: i32) -> (i32, i32) {
    %c0_i32 = arith.constant 0 : i32
    %c0_i32_0 = arith.constant 0 : i32
    return %c0_i32, %arg1 : i32, i32
  }
  func.func @transform_3(%arg0: i32, %arg1: i32, %arg2: i32) -> (i32, i32) {
    %c0_i32 = arith.constant 0 : i32
    return %arg0, %arg1 : i32, i32
  }
}

module attributes {stable_mosaic.version = 11 : i64} {
  func.func @_matmul_kernel(%arg0: i32, %arg1: i32, %arg2: i32, %arg3: memref<8x512xbf16, #tpu.memory_space<vmem>>, %arg4: memref<512x128xbf16, #tpu.memory_space<vmem>>, %arg5: memref<1x128xf32, #tpu.memory_space<vmem>>, %arg6: memref<8x128xf32, #tpu.memory_space<vmem>>, %arg7: memref<8x128xf32, #tpu.memory_space<vmem>>) attributes {dimension_semantics = [#tpu.dimension_semantics<parallel>, #tpu.dimension_semantics<parallel>, #tpu.dimension_semantics<arbitrary>], iteration_bounds = array<i64: 1, 1, 1>, scalar_prefetch = 0 : i64, scratch_operands = 1 : i64, tpu.core_type = #tpu.core_type<tc>, window_params = [{transform_indices = @transform_0, window_bounds = array<i64: 8, 512>}, {transform_indices = @transform_1, window_bounds = array<i64: 512, 128>}, {transform_indices = @transform_2, window_bounds = array<i64: 1, 128>}, {transform_indices = @transform_3, window_bounds = array<i64: 8, 128>}]} {
    %c0_i32 = arith.constant 0 : i32
    %0 = arith.cmpi eq, %arg2, %c0_i32 : i32
    %1 = arith.extui %0 : i1 to i32
    %c0_i32_0 = arith.constant 0 : i32
    %2 = arith.cmpi ne, %1, %c0_i32_0 : i32
    scf.if %2 {
      %cst_10 = arith.constant 0.000000e+00 : f32
      %12 = vector.broadcast %cst_10 : f32 to vector<8x128xf32>
      %c0_11 = arith.constant 0 : index
      %c0_12 = arith.constant 0 : index
      %13 = vector.load %arg7[%c0_11, %c0_12] : memref<8x128xf32, #tpu.memory_space<vmem>>, vector<8x128xf32>
      tpu.vector_store %arg7[%c0_11, %c0_12], %12 {strides = array<i32>} : memref<8x128xf32, #tpu.memory_space<vmem>>, vector<8x128xf32>,
    } else {
    }
    %c0 = arith.constant 0 : index
    %c0_1 = arith.constant 0 : index
    %3 = vector.load %arg7[%c0, %c0_1] : memref<8x128xf32, #tpu.memory_space<vmem>>, vector<8x128xf32>
    %c0_2 = arith.constant 0 : index
    %c0_3 = arith.constant 0 : index
    %4 = vector.load %arg3[%c0_2, %c0_3] : memref<8x512xbf16, #tpu.memory_space<vmem>>, vector<8x512xbf16>
    %c0_4 = arith.constant 0 : index
    %c0_5 = arith.constant 0 : index
    %5 = vector.load %arg4[%c0_4, %c0_5] : memref<512x128xbf16, #tpu.memory_space<vmem>>, vector<512x128xbf16>
    %cst = arith.constant dense<0.000000e+00> : vector<8x128xf32>
    %6 = tpu.matmul %4, %5, %cst {dimension_numbers = #tpu.dot_dimension_numbers<[1], [0], [0], [1], [0, 0, 1, 1], [], []>} : vector<8x512xbf16>, vector<512x128xbf16>, vector<8x128xf32> -> vector<8x128xf32>
    %7 = arith.addf %3, %6 : vector<8x128xf32>
    %c0_6 = arith.constant 0 : index
    %c0_7 = arith.constant 0 : index
    %8 = vector.load %arg7[%c0_6, %c0_7] : memref<8x128xf32, #tpu.memory_space<vmem>>, vector<8x128xf32>
    tpu.vector_store %arg7[%c0_6, %c0_7], %7 {strides = array<i32>} : memref<8x128xf32, #tpu.memory_space<vmem>>, vector<8x128xf32>,
    %c0_i32_8 = arith.constant 0 : i32
    %9 = arith.cmpi eq, %arg2, %c0_i32_8 : i32
    %10 = arith.extui %9 : i1 to i32
    %c0_i32_9 = arith.constant 0 : i32
    %11 = arith.cmpi ne, %10, %c0_i32_9 : i32
    scf.if %11 {
      %c0_10 = arith.constant 0 : index
      %c0_11 = arith.constant 0 : index
      %12 = vector.load %arg7[%c0_10, %c0_11] : memref<8x128xf32, #tpu.memory_space<vmem>>, vector<8x128xf32>
      %c0_12 = arith.constant 0 : index
      %c0_13 = arith.constant 0 : index
      %13 = vector.load %arg5[%c0_12, %c0_13] : memref<1x128xf32, #tpu.memory_space<vmem>>, vector<1x128xf32>
      %14 = vector.broadcast %13 : vector<1x128xf32> to vector<8x128xf32>
      %15 = arith.addf %12, %14 : vector<8x128xf32>
      %c0_14 = arith.constant 0 : index
      %c0_15 = arith.constant 0 : index
      %16 = vector.load %arg6[%c0_14, %c0_15] : memref<8x128xf32, #tpu.memory_space<vmem>>, vector<8x128xf32>
      tpu.vector_store %arg6[%c0_14, %c0_15], %15 {strides = array<i32>} : memref<8x128xf32, #tpu.memory_space<vmem>>, vector<8x128xf32>,
    } else {
    }
    return
  }
  func.func @transform_0(%arg0: i32, %arg1: i32, %arg2: i32) -> (i32, i32) {
    %c0_i32 = arith.constant 0 : i32
    return %arg0, %arg2 : i32, i32
  }
  func.func @transform_1(%arg0: i32, %arg1: i32, %arg2: i32) -> (i32, i32) {
    %c0_i32 = arith.constant 0 : i32
    return %arg2, %arg1 : i32, i32
  }
  func.func @transform_2(%arg0: i32, %arg1: i32, %arg2: i32) -> (i32, i32) {
    %c0_i32 = arith.constant 0 : i32
    %c0_i32_0 = arith.constant 0 : i32
    return %c0_i32, %arg1 : i32, i32
  }
  func.func @transform_3(%arg0: i32, %arg1: i32, %arg2: i32) -> (i32, i32) {
    %c0_i32 = arith.constant 0 : i32
    return %arg0, %arg1 : i32, i32
  }
}

</mosaic_0001>

<llo_original>
// kernel: medical_foundation_forward.15
$region0: #{medical_foundation_forward.15}
  #allocation0 [shape = 'u32[]', space=smem, size = 0x4, offset = 0x4, fixed_abs, tag = 'smem constant byte address 0x4 - core index']
  #allocation1 [shape = 'u32[144,128]{1,0:T(1,128)}', space=vmem, size = 0x12000, scoped, tag = 'internal scratch']
  %s0 = inlined_call_operand.vmem [shape: f32[16,64], index: 0, kind: input, shape index: {}]
  %s1 = inlined_call_operand.vmem [shape: f32[1,64], index: 1, kind: input, shape index: {}]
  %s2 = inlined_call_operand.vmem [shape: f32[1,64], index: 2, kind: input, shape index: {}]
  %s3 = inlined_call_operand.vmem [shape: bf16[64,256], index: 3, kind: input, shape index: {}]
  %s4 = inlined_call_operand.vmem [shape: f32[1,256], index: 4, kind: input, shape index: {}]
  %s5 = inlined_call_operand.vmem [shape: bf16[16,256], index: 5, kind: output, shape index: {}]
  %s6 = sld [smem:[#allocation0]]
  $region30: #{medical_foundation_forward.15} parent=0
    _
  %s8 = ssub.s32 1, %s6
  %s9 = scalar_select 0, %s8, %s6
  // Predicated region
  $region2: #{medical_foundation_forward.15} parent=0 // pred_check
    _
  $region3: #{medical_foundation_forward.15} parent=0 // pred_check_branch
    %11 = sbr.rel (0) target = $region5
  $region4: #{medical_foundation_forward.15} parent=0 // pred_region
    _
  $region5: #{medical_foundation_forward.15} parent=0 // pred_fallthru
    _
  // Predicated region
  $region6: #{medical_foundation_forward.15} parent=0 // pred_check
    _
  $region7: #{medical_foundation_forward.15} parent=0 // pred_check_branch
    %13 = sbr.rel (0) target = $region9
  $region8: #{medical_foundation_forward.15} parent=0 // pred_region
    _
  $region9: #{medical_foundation_forward.15} parent=0 // pred_fallthru
    _
  // Predicated region
  $region10: #{medical_foundation_forward.15} parent=0 // pred_check
    _
  $region11: #{medical_foundation_forward.15} parent=0 // pred_check_branch
    %15 = sbr.rel (0) target = $region13
  $region12: #{medical_foundation_forward.15} parent=0 // pred_region
    _
  $region13: #{medical_foundation_forward.15} parent=0 // pred_fallthru
    _
  // Predicated region
  $region14: #{medical_foundation_forward.15} parent=0 // pred_check
    _
  $region15: #{medical_foundation_forward.15} parent=0 // pred_check_branch
    %17 = sbr.rel (0) target = $region17
  $region16: #{medical_foundation_forward.15} parent=0 // pred_region
    _
  $region17: #{medical_foundation_forward.15} parent=0 // pred_fallthru
    _
  // Predicated region
  $region18: #{medical_foundation_forward.15} parent=0 // pred_check
    _
  $region19: #{medical_foundation_forward.15} parent=0 // pred_check_branch
    %19 = sbr.rel (0) target = $region21
  $region20: #{medical_foundation_forward.15} parent=0 // pred_region
    _
  $region21: #{medical_foundation_forward.15} parent=0 // pred_fallthru
    _
  %v21 = vld [vmem:[%s0] sm:$0xff]
  %v22 = vld [vmem:[%s0 + $0x8] sm:$0xff]
  %vm23 = vcmask 523264
  %v24 = vsel %vm23, %v21, 0.0
  %25 = vadd.xlane.f32.xlu0 %v24
  %v26 = vpop.xlane.xlu0 %25
  %v27 = vsel %vm23, %v22, 0.0
  %28 = vadd.xlane.f32.xlu0 %v27
  %v29 = vpop.xlane.xlu0 %28
  %v30 = vrcp.pop 64.0
  %v31 = vmul.f32 %v26, %v30
  %v32 = vmul.f32 %v29, %v30
  %v33 = vsub.f32 %v21, %v31
  %v34 = vsub.f32 %v22, %v32
  %v35 = vmul.f32 %v33, %v33
  %v36 = vmul.f32 %v34, %v34
  %v37 = vsel %vm23, %v35, 0.0
  %38 = vadd.xlane.f32.xlu0 %v37
  %v39 = vpop.xlane.xlu0 %38
  %v40 = vsel %vm23, %v36, 0.0
  %41 = vadd.xlane.f32.xlu0 %v40
  %v42 = vpop.xlane.xlu0 %41
  %v43 = vmul.f32 %v39, %v30
  %v44 = vmul.f32 %v42, %v30
  %v45 = vadd.f32 %v43, 1e-05
  %v46 = vadd.f32 %v44, 1e-05
  %v47 = vrsqrt.pop %v45
  %v48 = vrsqrt.pop %v46
  %v49 = vmul.f32 %v33, %v47
  %v50 = vmul.f32 %v34, %v48
  %v51 = vld [vmem:[%s1] sm:$0x1]
  %v53 = vlaneseq
  %v54 = vshrl.u32 %v53, 7
  %v55 = vsub.s32 0, %v54
  %v56 = vrot.slane %v51, %v55
  %v58 = vmul.f32 %v49, %v56
  %v59 = vmul.f32 %v50, %v56
  %v60 = vld [vmem:[%s2] sm:$0x1]
  %v62 = vlaneseq
  %v63 = vshrl.u32 %v62, 7
  %v64 = vsub.s32 0, %v63
  %v65 = vrot.slane %v60, %v64
  %v67 = vadd.f32 %v58, %v65
  %v68 = vadd.f32 %v59, %v65
  %v69 = vpack.c.bf16 %v68, %v67
  %v70 = vld [vmem:[%s3] sm:$0xff]
  %v71 = vld [vmem:[%s3 + $0x8] sm:$0xff]
  %v72 = vld [vmem:[%s3 + $0x10] sm:$0xff]
  %v73 = vld [vmem:[%s3 + $0x18] sm:$0xff]
  %v74 = vld [vmem:[%s3 + $0x20] sm:$0xff]
  %v75 = vld [vmem:[%s3 + $0x28] sm:$0xff]
  %v76 = vld [vmem:[%s3 + $0x30] sm:$0xff]
  %v77 = vld [vmem:[%s3 + $0x38] sm:$0xff]
  %v78 = vld [vmem:[%s4] sm:$0x3]
  %v80 = vlaneseq
  %v81 = vshrl.u32 %v80, 7
  %v82 = vsub.s32 0, %v81
  %v83 = vrot.slane %v78, %v82
  %v84 = vlaneseq
  %v85 = vshrl.u32 %v84, 7
  %v86 = vsub.s32 1, %v85
  %v87 = vrot.slane %v78, %v86
  %v98 = vunpack.c.l.b16 %v70
  %v99 = vunpack.c.h.b16 %v70
  %v100 = vunpack.c.l.b16 %v71
  %v101 = vunpack.c.h.b16 %v71
  %v102 = vunpack.c.l.b16 %v72
  %v103 = vunpack.c.h.b16 %v72
  %v104 = vunpack.c.l.b16 %v73
  %v105 = vunpack.c.h.b16 %v73
  %v106 = vunpack.c.l.b16 %v74
  %v107 = vunpack.c.h.b16 %v74
  %v108 = vunpack.c.l.b16 %v75
  %v109 = vunpack.c.h.b16 %v75
  %v110 = vunpack.c.l.b16 %v76
  %v111 = vunpack.c.h.b16 %v76
  %v112 = vunpack.c.l.b16 %v77
  %v113 = vunpack.c.h.b16 %v77
  %v114 = vpack.c.b16 %v100, %v98
  %v115 = vpack.c.b16 %v101, %v99
  %v116 = vpack.c.b16 %v104, %v102
  %v117 = vpack.c.b16 %v105, %v103
  %v118 = vpack.c.b16 %v108, %v106
  %v119 = vpack.c.b16 %v109, %v107
  %v120 = vpack.c.b16 %v112, %v110
  %v121 = vpack.c.b16 %v113, %v111
  %v131 = vsel %vm23, %v69, 0
  %133 = vmatprep.subr.bf16.mxu0 %v115
  %134 = vmatpush1.bf16.msra.mxu0 %v114
  %135 = vmatprep.subr.bf16.mxu0 %v117
  %136 = vmatpush1.bf16.msra.mxu0 %v116
  %137 = vmatprep.subr.bf16.mxu0 %v119
  %138 = vmatpush1.bf16.msra.mxu0 %v118
  %139 = vmatprep.subr.bf16.mxu0 %v121
  %140 = vmatpush1.bf16.msra.mxu0 %v120
  %141 = vmatprep.subr.bf16.mxu0 0
  %142 = vmatpush1.bf16.msra.mxu0 0
  %143 = vmatprep.subr.bf16.mxu0 0
  %144 = vmatpush1.bf16.msra.mxu0 0
  %145 = vmatprep.subr.bf16.mxu0 0
  %146 = vmatpush1.bf16.msra.mxu0 0
  %147 = vmatprep.subr.bf16.mxu0 0
  %148 = vmatpush1.bf16.msra.mxu0 0
  %149 = vmatprep.subr.bf16.mxu0 0
  %150 = vmatpush1.bf16.msra.mxu0 0
  %151 = vmatprep.subr.bf16.mxu0 0
  %152 = vmatpush1.bf16.msra.mxu0 0
  %153 = vmatprep.subr.bf16.mxu0 0
  %154 = vmatpush1.bf16.msra.mxu0 0
  %155 = vmatprep.subr.bf16.mxu0 0
  %156 = vmatpush1.bf16.msra.mxu0 0
  %157 = vmatprep.subr.bf16.mxu0 0
  %158 = vmatpush1.bf16.msra.mxu0 0
  %159 = vmatprep.subr.bf16.mxu0 0
  %160 = vmatpush1.bf16.msra.mxu0 0
  %161 = vmatprep.subr.bf16.mxu0 0
  %162 = vmatpush1.bf16.msra.mxu0 0
  %163 = vmatprep.subr.bf16.mxu0 0
  %164 = vmatpush1.bf16.msra.mxu0 0
  %165 = vmatprep.mubr.bf16.mxu0 0
  %166 = vmatmul.mubr.bf16.gmra.mrb[0].mxu0 %v131
  %v167 = vpop.f32.mrb[0].mxu0
  %v168 = vadd.f32 %v83, %v167
  %v169 = vpop.f32.mrb[0].mxu0
  %v170 = vadd.f32 %v87, %v169
  %v171 = vpop.f32.mrb[0].mxu0
  %v172 = vadd.f32 %v83, %v171
  %v173 = vpop.f32.mrb[0].mxu0
  %v174 = vadd.f32 %v87, %v173
  %175 = vdwg.mxu0
  %v176 = vpack.c.bf16 %v172, %v168
  %v177 = vpack.c.bf16 %v174, %v170
  %v180 = vunpack.c.l.b16 %v176
  %v181 = vunpack.c.l.b16 %v177
  %v182 = vunpack.c.h.b16 %v176
  %v183 = vunpack.c.h.b16 %v177
  %v184 = vpack.c.b16 %v181, %v180
  %v185 = vpack.c.b16 %v183, %v182
  %188 = vst [vmem:[%s5] sm:$0xff] %v184
  %189 = vst [vmem:[%s5 + $0x8] sm:$0xff] %v185
  // Predicated region
  $region22: #{medical_foundation_forward.15} parent=0 // pred_check
    _
  $region23: #{medical_foundation_forward.15} parent=0 // pred_check_branch
    %191 = sbr.rel (0) target = $region25
  $region24: #{medical_foundation_forward.15} parent=0 // pred_region
    _
  $region25: #{medical_foundation_forward.15} parent=0 // pred_fallthru
    _
  // Predicated region
  $region26: #{medical_foundation_forward.15} parent=0 // pred_check
    _
  $region27: #{medical_foundation_forward.15} parent=0 // pred_check_branch
    %193 = sbr.rel (0) target = $region29
  $region28: #{medical_foundation_forward.15} parent=0 // pred_region
    _
  $region29: #{medical_foundation_forward.15} parent=0 // pred_fallthru
    _

// kernel: medical_foundation_forward.14
$region0: #{medical_foundation_forward.14}
  #allocation0 [shape = 'u32[]', space=smem, size = 0x4, offset = 0x4, fixed_abs, tag = 'smem constant byte address 0x4 - core index']
  #allocation1 [shape = 'u32[144,128]{1,0:T(1,128)}', space=vmem, size = 0x12000, scoped, tag = 'internal scratch']
  #allocation2 [shape = 'f32[8,128]{1,0:T(8,128)}', space=vmem, size = 0x1000, scoped, tag = 'scratch operand']
  %s0 = inlined_call_operand.vmem [shape: bf16[8,256], index: 0, kind: input, shape index: {}]
  %s1 = inlined_call_operand.vmem [shape: bf16[256,128], index: 1, kind: input, shape index: {}]
  %s2 = inlined_call_operand.vmem [shape: f32[1,128], index: 2, kind: input, shape index: {}]
  %s3 = inlined_call_operand.vmem [shape: f32[8,128], index: 3, kind: output, shape index: {}]
  %s4 = sld [smem:[#allocation0]]
  $region30: #{medical_foundation_forward.14} parent=0
    _
  %s6 = ssub.s32 1, %s4
  %s7 = scalar_select 0, %s6, %s4
  // Predicated region
  $region2: #{medical_foundation_forward.14} parent=0 // pred_check
    _
  $region3: #{medical_foundation_forward.14} parent=0 // pred_check_branch
    %9 = sbr.rel (0) target = $region5
  $region4: #{medical_foundation_forward.14} parent=0 // pred_region
    _
  $region5: #{medical_foundation_forward.14} parent=0 // pred_fallthru
    _
  // Predicated region
  $region6: #{medical_foundation_forward.14} parent=0 // pred_check
    _
  $region7: #{medical_foundation_forward.14} parent=0 // pred_check_branch
    %11 = sbr.rel (0) target = $region9
  $region8: #{medical_foundation_forward.14} parent=0 // pred_region
    _
  $region9: #{medical_foundation_forward.14} parent=0 // pred_fallthru
    _
  // Predicated region
  $region10: #{medical_foundation_forward.14} parent=0 // pred_check
    _
  $region11: #{medical_foundation_forward.14} parent=0 // pred_check_branch
    %13 = sbr.rel (0) target = $region13
  $region12: #{medical_foundation_forward.14} parent=0 // pred_region
    _
  $region13: #{medical_foundation_forward.14} parent=0 // pred_fallthru
    _
  %p15 = scmp.eq.s32.totalorder 0, 0
  // Predicated region
  $region14: #{medical_foundation_forward.14} parent=0 // pred_check
    %p16 = pneg %p15
  $region15: #{medical_foundation_forward.14} parent=0 // pred_check_branch
    %18 = sbr.rel (%p16) target = $region17
  $region16: #{medical_foundation_forward.14} parent=0 // pred_region
    %19 = vst [vmem:[#allocation2] sm:$0xff] 0.0
  $region17: #{medical_foundation_forward.14} parent=0 // pred_fallthru
    _
  %v20 = vld [vmem:[#allocation2] sm:$0xff]
  %v21 = vld [vmem:[%s0] sm:$0xff]
  %v22 = vld [vmem:[%s1] sm:$0xf]
  %v23 = vld [vmem:[%s1 + $0x4] sm:$0xf]
  %v24 = vld [vmem:[%s1 + $0x8] sm:$0xf]
  %v25 = vld [vmem:[%s1 + $0xc] sm:$0xf]
  %v26 = vld [vmem:[%s1 + $0x10] sm:$0xf]
  %v27 = vld [vmem:[%s1 + $0x14] sm:$0xf]
  %v28 = vld [vmem:[%s1 + $0x18] sm:$0xf]
  %v29 = vld [vmem:[%s1 + $0x1c] sm:$0xf]
  %v30 = vld [vmem:[%s1 + $0x20] sm:$0xf]
  %v31 = vld [vmem:[%s1 + $0x24] sm:$0xf]
  %v32 = vld [vmem:[%s1 + $0x28] sm:$0xf]
  %v33 = vld [vmem:[%s1 + $0x2c] sm:$0xf]
  %v34 = vld [vmem:[%s1 + $0x30] sm:$0xf]
  %v35 = vld [vmem:[%s1 + $0x34] sm:$0xf]
  %v36 = vld [vmem:[%s1 + $0x38] sm:$0xf]
  %v37 = vld [vmem:[%s1 + $0x3c] sm:$0xf]
  %v38 = vld [vmem:[%s1 + $0x40] sm:$0xf]
  %v39 = vld [vmem:[%s1 + $0x44] sm:$0xf]
  %v40 = vld [vmem:[%s1 + $0x48] sm:$0xf]
  %v41 = vld [vmem:[%s1 + $0x4c] sm:$0xf]
  %v42 = vld [vmem:[%s1 + $0x50] sm:$0xf]
  %v43 = vld [vmem:[%s1 + $0x54] sm:$0xf]
  %v44 = vld [vmem:[%s1 + $0x58] sm:$0xf]
  %v45 = vld [vmem:[%s1 + $0x5c] sm:$0xf]
  %v46 = vld [vmem:[%s1 + $0x60] sm:$0xf]
  %v47 = vld [vmem:[%s1 + $0x64] sm:$0xf]
  %v48 = vld [vmem:[%s1 + $0x68] sm:$0xf]
  %v49 = vld [vmem:[%s1 + $0x6c] sm:$0xf]
  %v50 = vld [vmem:[%s1 + $0x70] sm:$0xf]
  %v51 = vld [vmem:[%s1 + $0x74] sm:$0xf]
  %v52 = vld [vmem:[%s1 + $0x78] sm:$0xf]
  %v53 = vld [vmem:[%s1 + $0x7c] sm:$0xf]
  %v55 = vunpack.c.l.b16 %v21
  %v56 = vunpack.c.h.b16 %v21
  %v57 = vpack.c.b16 %v55, %v55
  %v58 = vpack.c.b16 %v56, %v56
  %v93 = vunpack.c.l.b16 %v22
  %v94 = vunpack.c.l.b16 %v23
  %v95 = vunpack.c.l.b16 %v24
  %v96 = vunpack.c.l.b16 %v25
  %v97 = vunpack.c.l.b16 %v26
  %v98 = vunpack.c.l.b16 %v27
  %v99 = vunpack.c.l.b16 %v28
  %v100 = vunpack.c.l.b16 %v29
  %v101 = vunpack.c.l.b16 %v30
  %v102 = vunpack.c.l.b16 %v31
  %v103 = vunpack.c.l.b16 %v32
  %v104 = vunpack.c.l.b16 %v33
  %v105 = vunpack.c.l.b16 %v34
  %v106 = vunpack.c.l.b16 %v35
  %v107 = vunpack.c.l.b16 %v36
  %v108 = vunpack.c.l.b16 %v37
  %v109 = vunpack.c.l.b16 %v38
  %v110 = vunpack.c.l.b16 %v39
  %v111 = vunpack.c.l.b16 %v40
  %v112 = vunpack.c.l.b16 %v41
  %v113 = vunpack.c.l.b16 %v42
  %v114 = vunpack.c.l.b16 %v43
  %v115 = vunpack.c.l.b16 %v44
  %v116 = vunpack.c.l.b16 %v45
  %v117 = vunpack.c.l.b16 %v46
  %v118 = vunpack.c.l.b16 %v47
  %v119 = vunpack.c.l.b16 %v48
  %v120 = vunpack.c.l.b16 %v49
  %v121 = vunpack.c.l.b16 %v50
  %v122 = vunpack.c.l.b16 %v51
  %v123 = vunpack.c.l.b16 %v52
  %v124 = vunpack.c.l.b16 %v53
  %v125 = vpack.c.b16 %v94, %v93
  %v126 = vpack.c.b16 %v96, %v95
  %v127 = vpack.c.b16 %v98, %v97
  %v128 = vpack.c.b16 %v100, %v99
  %v129 = vpack.c.b16 %v102, %v101
  %v130 = vpack.c.b16 %v104, %v103
  %v131 = vpack.c.b16 %v106, %v105
  %v132 = vpack.c.b16 %v108, %v107
  %v133 = vpack.c.b16 %v110, %v109
  %v134 = vpack.c.b16 %v112, %v111
  %v135 = vpack.c.b16 %v114, %v113
  %v136 = vpack.c.b16 %v116, %v115
  %v137 = vpack.c.b16 %v118, %v117
  %v138 = vpack.c.b16 %v120, %v119
  %v139 = vpack.c.b16 %v122, %v121
  %v140 = vpack.c.b16 %v124, %v123
  %157 = vmatprep.subr.bf16.mxu0 0
  %158 = vmatpush1.bf16.msra.mxu0 %v125
  %159 = vmatprep.subr.bf16.mxu0 0
  %160 = vmatpush1.bf16.msra.mxu0 %v126
  %161 = vmatprep.subr.bf16.mxu0 0
  %162 = vmatpush1.bf16.msra.mxu0 %v127
  %163 = vmatprep.subr.bf16.mxu0 0
  %164 = vmatpush1.bf16.msra.mxu0 %v128
  %165 = vmatprep.subr.bf16.mxu0 0
  %166 = vmatpush1.bf16.msra.mxu0 %v129
  %167 = vmatprep.subr.bf16.mxu0 0
  %168 = vmatpush1.bf16.msra.mxu0 %v130
  %169 = vmatprep.subr.bf16.mxu0 0
  %170 = vmatpush1.bf16.msra.mxu0 %v131
  %171 = vmatprep.subr.bf16.mxu0 0
  %172 = vmatpush1.bf16.msra.mxu0 %v132
  %173 = vmatprep.subr.bf16.mxu0 0
  %174 = vmatpush1.bf16.msra.mxu0 %v133
  %175 = vmatprep.subr.bf16.mxu0 0
  %176 = vmatpush1.bf16.msra.mxu0 %v134
  %177 = vmatprep.subr.bf16.mxu0 0
  %178 = vmatpush1.bf16.msra.mxu0 %v135
  %179 = vmatprep.subr.bf16.mxu0 0
  %180 = vmatpush1.bf16.msra.mxu0 %v136
  %181 = vmatprep.subr.bf16.mxu0 0
  %182 = vmatpush1.bf16.msra.mxu0 %v137
  %183 = vmatprep.subr.bf16.mxu0 0
  %184 = vmatpush1.bf16.msra.mxu0 %v138
  %185 = vmatprep.subr.bf16.mxu0 0
  %186 = vmatpush1.bf16.msra.mxu0 %v139
  %187 = vmatprep.subr.bf16.mxu0 0
  %188 = vmatpush1.bf16.msra.mxu0 %v140
  %189 = vmatprep.mubr.bf16.mxu0 %v58
  %190 = vmatmul.mubr.bf16.gmra.mrb[0].mxu0 %v57
  %v191 = vpop.f32.mrb[0].mxu0
  %v192 = vadd.f32 0.0, %v191
  %v193 = vpop.f32.mrb[0].mxu0
  %v194 = vpop.f32.mrb[0].mxu0
  %v195 = vpop.f32.mrb[0].mxu0
  %196 = vdwg.mxu0
  %v197 = vadd.f32 %v20, %v192
  %198 = vst [vmem:[#allocation2] sm:$0xff] %v197
  // Predicated region
  $region18: #{medical_foundation_forward.14} parent=0 // pred_check
    %p199 = pneg %p15
  $region19: #{medical_foundation_forward.14} parent=0 // pred_check_branch
    %201 = sbr.rel (%p199) target = $region21
  $region20: #{medical_foundation_forward.14} parent=0 // pred_region
    %v202 = vld [vmem:[#allocation2] sm:$0xff]
    %v203 = vld [vmem:[%s2] sm:$0x1]
    %v205 = vlaneseq
    %v206 = vshrl.u32 %v205, 7
    %v207 = vsub.s32 0, %v206
    %v208 = vrot.slane %v203, %v207
    %v210 = vadd.f32 %v202, %v208
    %211 = vst [vmem:[%s3] sm:$0xff] %v210
  $region21: #{medical_foundation_forward.14} parent=0 // pred_fallthru
    _
  // Predicated region
  $region22: #{medical_foundation_forward.14} parent=0 // pred_check
    _
  $region23: #{medical_foundation_forward.14} parent=0 // pred_check_branch
    %213 = sbr.rel (0) target = $region25
  $region24: #{medical_foundation_forward.14} parent=0 // pred_region
    _
  $region25: #{medical_foundation_forward.14} parent=0 // pred_fallthru
    _
  // Predicated region
  $region26: #{medical_foundation_forward.14} parent=0 // pred_check
    _
  $region27: #{medical_foundation_forward.14} parent=0 // pred_check_branch
    %215 = sbr.rel (0) target = $region29
  $region28: #{medical_foundation_forward.14} parent=0 // pred_region
    _
  $region29: #{medical_foundation_forward.14} parent=0 // pred_fallthru
    _

// kernel: medical_foundation_forward.16
$region0: #{medical_foundation_forward.16}
  #allocation0 [shape = 'u32[]', space=smem, size = 0x4, offset = 0x4, fixed_abs, tag = 'smem constant byte address 0x4 - core index']
  #allocation1 [shape = 'u32[144,128]{1,0:T(1,128)}', space=vmem, size = 0x12000, scoped, tag = 'internal scratch']
  %s0 = inlined_call_operand.vmem [shape: bf16[2,4,5,16], index: 0, kind: input, shape index: {}]
  %s1 = inlined_call_operand.vmem [shape: bf16[2,4,16,5], index: 1, kind: input, shape index: {}]
  %s2 = inlined_call_operand.vmem [shape: bf16[2,4,5,16], index: 2, kind: input, shape index: {}]
  %s3 = inlined_call_operand.vmem [shape: bf16[2,4,5,16], index: 3, kind: output, shape index: {}]
  %s4 = sld [smem:[#allocation0]]
  $region45: #{medical_foundation_forward.16} parent=0
    _
  %s6 = ssub.s32 1, %s4
  %s7 = scalar_select 0, %s6, %s4
  loop: start=0, step=1, limit=10
  $region2: #{medical_foundation_forward.16} parent=0 // loop_pre_header
    _
  $region3: #{medical_foundation_forward.16} parent=0 // loop_header
    %s9 = sphi 0, %s13
    %p10 = scmp.ge.s32.totalorder %s9, 10
    %s16 = sphi 0, %s28
    %s17 = sphi 0, %s24
    %s18 = sphi 0, %s16
    %s19 = sphi 0, %s17
    %s20 = sphi 0, %s18
    %s21 = sphi 0, %s19
    %s33 = sphi 0, %s35
    %s36 = sphi 0, %s33
    %s37 = sphi 0, %s36
    %s53 = sphi 0, %s37
    %s61 = sphi 0, %s63
    %s64 = sphi 0, %s61
    %s65 = sphi 0, %s64
    %s81 = sphi 0, %s65
    %s89 = sphi 0, %s91
    %s92 = sphi 0, %s89
    %s93 = sphi 0, %s92
    %s109 = sphi 0, %s93
    %s117 = sphi 0, %s119
    %s120 = sphi 0, %s117
    %s121 = sphi 0, %s120
    %s137 = sphi 0, %s121
  $region4: #{medical_foundation_forward.16} parent=0 // loop_header_branch
    %12 = sbr.rel (%p10) target = $region8
  $region5: #{medical_foundation_forward.16} parent=0 // loop_body
    %s14 = ssub.s32 %s9, 1
    %s15 = ssub.s32 %s9, 2
    %s22 = sadd.s32 1, %s17
    %p23 = scmp.ge.s32.totalorder %s22, 4
    %s24 = scalar_select %p23, 0, %s22
    %s25 = sadd.s32 1, %s16
    %s26 = scalar_select %p23, %s25, %s16
    %p27 = scmp.ge.s32.totalorder %s26, 2
    %s28 = scalar_select %p27, 0, %s26
    %s29 = ssub.s32 %s16, %s28
    %s30 = ssub.s32 %s17, %s24
    %s31 = sor.u32 %s29, %s30
    %p32 = scmp.eq.s32.totalorder %s31, 0
    %s34 = sadd.s32 %s33, 1
    %s35 = scalar_select %p32, %s33, %s34
    %p38 = pneg %p32
    %p39 = scmp.eq.s32.totalorder %s9, 7
    %p40 = por %p38, %p39
    %p41 = scmp.ne.s32.totalorder %s33, %s36
    %p42 = scmp.eq.s32.totalorder %s9, 0
    %p43 = por %p41, %p42
    %p44 = scmp.ne.s32.totalorder %s33, %s36
    %p45 = scmp.eq.s32.totalorder %s14, 7
    %p46 = por %p44, %p45
    %p47 = scmp.ne.s32.totalorder %s36, %s37
    %p48 = scmp.eq.s32.totalorder %s14, 0
    %p49 = por %p47, %p48
    %p50 = scmp.ne.s32.totalorder %s36, %s37
    %p51 = scmp.eq.s32.totalorder %s15, 7
    %p52 = por %p50, %p51
    %p54 = scmp.ne.s32.totalorder %s37, %s53
    %p55 = scmp.eq.s32.totalorder %s15, 0
    %p56 = por %p54, %p55
    %s57 = ssub.s32 %s16, %s28
    %s58 = ssub.s32 %s17, %s24
    %s59 = sor.u32 %s57, %s58
    %p60 = scmp.eq.s32.totalorder %s59, 0
    %s62 = sadd.s32 %s61, 1
    %s63 = scalar_select %p60, %s61, %s62
    %p66 = pneg %p60
    %p67 = scmp.eq.s32.totalorder %s9, 7
    %p68 = por %p66, %p67
    %p69 = scmp.ne.s32.totalorder %s61, %s64
    %p70 = scmp.eq.s32.totalorder %s9, 0
    %p71 = por %p69, %p70
    %p72 = scmp.ne.s32.totalorder %s61, %s64
    %p73 = scmp.eq.s32.totalorder %s14, 7
    %p74 = por %p72, %p73
    %p75 = scmp.ne.s32.totalorder %s64, %s65
    %p76 = scmp.eq.s32.totalorder %s14, 0
    %p77 = por %p75, %p76
    %p78 = scmp.ne.s32.totalorder %s64, %s65
    %p79 = scmp.eq.s32.totalorder %s15, 7
    %p80 = por %p78, %p79
    %p82 = scmp.ne.s32.totalorder %s65, %s81
    %p83 = scmp.eq.s32.totalorder %s15, 0
    %p84 = por %p82, %p83
    %s85 = ssub.s32 %s16, %s28
    %s86 = ssub.s32 %s17, %s24
    %s87 = sor.u32 %s85, %s86
    %p88 = scmp.eq.s32.totalorder %s87, 0
    %s90 = sadd.s32 %s89, 1
    %s91 = scalar_select %p88, %s89, %s90
    %p94 = pneg %p88
    %p95 = scmp.eq.s32.totalorder %s9, 7
    %p96 = por %p94, %p95
    %p97 = scmp.ne.s32.totalorder %s89, %s92
    %p98 = scmp.eq.s32.totalorder %s9, 0
    %p99 = por %p97, %p98
    %p100 = scmp.ne.s32.totalorder %s89, %s92
    %p101 = scmp.eq.s32.totalorder %s14, 7
    %p102 = por %p100, %p101
    %p103 = scmp.ne.s32.totalorder %s92, %s93
    %p104 = scmp.eq.s32.totalorder %s14, 0
    %p105 = por %p103, %p104
    %p106 = scmp.ne.s32.totalorder %s92, %s93
    %p107 = scmp.eq.s32.totalorder %s15, 7
    %p108 = por %p106, %p107
    %p110 = scmp.ne.s32.totalorder %s93, %s109
    %p111 = scmp.eq.s32.totalorder %s15, 0
    %p112 = por %p110, %p111
    %s113 = ssub.s32 %s16, %s28
    %s114 = ssub.s32 %s17, %s24
    %s115 = sor.u32 %s113, %s114
    %p116 = scmp.eq.s32.totalorder %s115, 0
    %s118 = sadd.s32 %s117, 1
    %s119 = scalar_select %p116, %s117, %s118
    %p122 = pneg %p116
    %p123 = scmp.eq.s32.totalorder %s9, 7
    %p124 = por %p122, %p123
    %p125 = scmp.ne.s32.totalorder %s117, %s120
    %p126 = scmp.eq.s32.totalorder %s9, 0
    %p127 = por %p125, %p126
    %p128 = scmp.ne.s32.totalorder %s117, %s120
    %p129 = scmp.eq.s32.totalorder %s14, 7
    %p130 = por %p128, %p129
    %p131 = scmp.ne.s32.totalorder %s120, %s121
    %p132 = scmp.eq.s32.totalorder %s14, 0
    %p133 = por %p131, %p132
    %p134 = scmp.ne.s32.totalorder %s120, %s121
    %p135 = scmp.eq.s32.totalorder %s15, 7
    %p136 = por %p134, %p135
    %p138 = scmp.ne.s32.totalorder %s121, %s137
    %p139 = scmp.eq.s32.totalorder %s15, 0
    %p140 = por %p138, %p139
    %p141 = scmp.le.s32.totalorder 1, %s9
    %p142 = scmp.lt.s32.totalorder %s9, 9
    %p143 = pnand %p141, %p142
    %p144 = pneg %p143
    // Predicated region
    $region9: #{medical_foundation_forward.16} parent=5 // pred_check
      _
    $region10: #{medical_foundation_forward.16} parent=5 // pred_check_branch
      %146 = sbr.rel (%p143) target = $region12
    $region11: #{medical_foundation_forward.16} parent=5 // pred_region
      %s147 = ssub.s32 %s9, 1
    $region12: #{medical_foundation_forward.16} parent=5 // pred_fallthru
      _
    %p148 = scmp.lt.s32.totalorder %s9, 8
    // Predicated region
    $region13: #{medical_foundation_forward.16} parent=5 // pred_check
      %p149 = pneg %p148
    $region14: #{medical_foundation_forward.16} parent=5 // pred_check_branch
      %151 = sbr.rel (%p149) target = $region16
    $region15: #{medical_foundation_forward.16} parent=5 // pred_region
      // Predicated region
      $region17: #{medical_foundation_forward.16} parent=15 // pred_check
        %p152 = pneg %p43
      $region18: #{medical_foundation_forward.16} parent=15 // pred_check_branch
        %154 = sbr.rel (%p152) target = $region20
      $region19: #{medical_foundation_forward.16} parent=15 // pred_region
        %p155 = scmp.lt.s32.totalorder %s16, 1
        %s156 = scalar_select %p155, %s16, 1
        %p157 = scmp.lt.s32.totalorder %s17, 3
        %s158 = scalar_select %p157, %s17, 3
        %s159 = smul.addr %s156, 4
        %s160 = sadd.s32 %s158, %s159
        %s161 = smul.addr %s160, 4
        %s162 = scalar_lea.vmem %s0, %s161
      $region20: #{medical_foundation_forward.16} parent=15 // pred_fallthru
        _
      // Predicated region
      $region21: #{medical_foundation_forward.16} parent=15 // pred_check
        %p163 = pneg %p71
      $region22: #{medical_foundation_forward.16} parent=15 // pred_check_branch
        %165 = sbr.rel (%p163) target = $region24
      $region23: #{medical_foundation_forward.16} parent=15 // pred_region
        %p166 = scmp.lt.s32.totalorder %s16, 1
        %s167 = scalar_select %p166, %s16, 1
        %p168 = scmp.lt.s32.totalorder %s17, 3
        %s169 = scalar_select %p168, %s17, 3
        %s170 = smul.addr %s169, 2
        %s171 = smul.addr %s167, 8
        %s172 = sadd.s32 %s170, %s171
        %s173 = smul.addr %s172, 4
        %s174 = scalar_lea.vmem %s1, %s173
      $region24: #{medical_foundation_forward.16} parent=15 // pred_fallthru
        _
      // Predicated region
      $region25: #{medical_foundation_forward.16} parent=15 // pred_check
        %p175 = pneg %p99
      $region26: #{medical_foundation_forward.16} parent=15 // pred_check_branch
        %177 = sbr.rel (%p175) target = $region28
      $region27: #{medical_foundation_forward.16} parent=15 // pred_region
        %p178 = scmp.lt.s32.totalorder %s16, 1
        %s179 = scalar_select %p178, %s16, 1
        %p180 = scmp.lt.s32.totalorder %s17, 3
        %s181 = scalar_select %p180, %s17, 3
        %s182 = smul.addr %s179, 4
        %s183 = sadd.s32 %s181, %s182
        %s184 = smul.addr %s183, 4
        %s185 = scalar_lea.vmem %s2, %s184
      $region28: #{medical_foundation_forward.16} parent=15 // pred_fallthru
        _
    $region16: #{medical_foundation_forward.16} parent=5 // pred_fallthru
      _
    %p186 = scmp.le.s32.totalorder 1, %s9
    %p187 = scmp.lt.s32.totalorder %s9, 9
    %p188 = pnand %p186, %p187
    %p189 = pneg %p188
    // Predicated region
    $region29: #{medical_foundation_forward.16} parent=5 // pred_check
      _
    $region30: #{medical_foundation_forward.16} parent=5 // pred_check_branch
      %191 = sbr.rel (%p188) target = $region32
    $region31: #{medical_foundation_forward.16} parent=5 // pred_region
      %s192 = ssub.s32 %s9, 1
      %p193 = scmp.lt.s32.totalorder %s18, 1
      %s194 = scalar_select %p193, %s18, 1
      %p195 = scmp.lt.s32.totalorder %s19, 3
      %s196 = scalar_select %p195, %s19, 3
      %s197 = smul.addr %s194, 4
      %s198 = sadd.s32 %s196, %s197
      %s199 = smul.addr %s198, 4
      %s200 = scalar_lea.vmem %s0, %s199
      %p201 = pneg %p49
      %p202 = pneg %p46
      %p203 = scmp.lt.s32.totalorder %s18, 1
      %s204 = scalar_select %p203, %s18, 1
      %p205 = scmp.lt.s32.totalorder %s19, 3
      %s206 = scalar_select %p205, %s19, 3
      %s207 = smul.addr %s206, 2
      %s208 = smul.addr %s204, 8
      %s209 = sadd.s32 %s207, %s208
      %s210 = smul.addr %s209, 4
      %s211 = scalar_lea.vmem %s1, %s210
      %p212 = pneg %p77
      %p213 = pneg %p74
      %p214 = scmp.lt.s32.totalorder %s18, 1
      %s215 = scalar_select %p214, %s18, 1
      %p216 = scmp.lt.s32.totalorder %s19, 3
      %s217 = scalar_select %p216, %s19, 3
      %s218 = smul.addr %s215, 4
      %s219 = sadd.s32 %s217, %s218
      %s220 = smul.addr %s219, 4
      %s221 = scalar_lea.vmem %s2, %s220
      %p222 = pneg %p105
      %p223 = pneg %p102
      %p224 = pneg %p133
      %p225 = pneg %p130
      %p226 = scmp.lt.s32.totalorder %s18, 1
      %s227 = scalar_select %p226, %s18, 1
      %p228 = scmp.lt.s32.totalorder %s19, 3
      %s229 = scalar_select %p228, %s19, 3
      %s230 = smul.addr %s227, 4
      %s231 = sadd.s32 %s229, %s230
      %s232 = smul.addr %s231, 4
      %s233 = scalar_lea.vmem %s3, %s232
      %p234 = scmp.lt.s32.totalorder %s18, 1
      %s235 = scalar_select %p234, %s18, 1
      %p236 = scmp.lt.s32.totalorder %s19, 3
      %s237 = scalar_select %p236, %s19, 3
      %s238 = smul.addr %s235, 4
      %s239 = sadd.s32 %s237, %s238
      %s240 = smul.addr %s239, 4
      %s241 = scalar_lea.vmem %s0, %s240
      %p242 = scmp.lt.s32.totalorder %s18, 1
      %s243 = scalar_select %p242, %s18, 1
      %p244 = scmp.lt.s32.totalorder %s19, 3
      %s245 = scalar_select %p244, %s19, 3
      %s246 = smul.addr %s245, 2
      %s247 = smul.addr %s243, 8
      %s248 = sadd.s32 %s246, %s247
      %s249 = smul.addr %s248, 4
      %s250 = scalar_lea.vmem %s1, %s249
      %p251 = scmp.lt.s32.totalorder %s18, 1
      %s252 = scalar_select %p251, %s18, 1
      %p253 = scmp.lt.s32.totalorder %s19, 3
      %s254 = scalar_select %p253, %s19, 3
      %s255 = smul.addr %s252, 4
      %s256 = sadd.s32 %s254, %s255
      %s257 = smul.addr %s256, 4
      %s258 = scalar_lea.vmem %s2, %s257
      %p259 = scmp.lt.s32.totalorder %s18, 1
      %s260 = scalar_select %p259, %s18, 1
      %p261 = scmp.lt.s32.totalorder %s19, 3
      %s262 = scalar_select %p261, %s19, 3
      %s263 = smul.addr %s260, 4
      %s264 = sadd.s32 %s262, %s263
      %s265 = smul.addr %s264, 4
      %s266 = scalar_lea.vmem %s3, %s265
      %v268 = vld [vmem:[%s241] sm:$0x7]
      %v269 = vld [vmem:[%s250] sm:$0xf]
      %v270 = vld [vmem:[%s250 + $0x4] sm:$0xf]
      %v273 = vunpack.c.l.b16 %v269
      %v274 = vunpack.c.l.b16 %v270
      %v275 = vpack.c.b16 %v274, %v273
      %vm277 = vcmask 130048
      %v279 = vsel %vm277, %v268, 0
      %281 = vmatprep.subr.bf16.mxu0 0
      %282 = vmatpush1.bf16.msra.mxu0 %v275
      %283 = vmatprep.subr.bf16.mxu0 0
      %284 = vmatpush1.bf16.msra.mxu0 0
      %285 = vmatprep.subr.bf16.mxu0 0
      %286 = vmatpush1.bf16.msra.mxu0 0
      %287 = vmatprep.subr.bf16.mxu0 0
      %288 = vmatpush1.bf16.msra.mxu0 0
      %289 = vmatprep.subr.bf16.mxu0 0
      %290 = vmatpush1.bf16.msra.mxu0 0
      %291 = vmatprep.subr.bf16.mxu0 0
      %292 = vmatpush1.bf16.msra.mxu0 0
      %293 = vmatprep.subr.bf16.mxu0 0
      %294 = vmatpush1.bf16.msra.mxu0 0
      %295 = vmatprep.subr.bf16.mxu0 0
      %296 = vmatpush1.bf16.msra.mxu0 0
      %297 = vmatprep.subr.bf16.mxu0 0
      %298 = vmatpush1.bf16.msra.mxu0 0
      %299 = vmatprep.subr.bf16.mxu0 0
      %300 = vmatpush1.bf16.msra.mxu0 0
      %301 = vmatprep.subr.bf16.mxu0 0
      %302 = vmatpush1.bf16.msra.mxu0 0
      %303 = vmatprep.subr.bf16.mxu0 0
      %304 = vmatpush1.bf16.msra.mxu0 0
      %305 = vmatprep.subr.bf16.mxu0 0
      %306 = vmatpush1.bf16.msra.mxu0 0
      %307 = vmatprep.subr.bf16.mxu0 0
      %308 = vmatpush1.bf16.msra.mxu0 0
      %309 = vmatprep.subr.bf16.mxu0 0
      %310 = vmatpush1.bf16.msra.mxu0 0
      %311 = vmatprep.subr.bf16.mxu0 0
      %312 = vmatpush1.bf16.msra.mxu0 0
      %313 = vmatprep.mubr.bf16.mxu0 0
      %314 = vmatmul.mubr.bf16.gmra.mrb[0].mxu0 %v279
      %v315 = vpop.f32.mrb[0].mxu0
      %v316 = vadd.f32 0.0, %v315
      %v317 = vpop.f32.mrb[0].mxu0
      %v318 = vpop.f32.mrb[0].mxu0
      %v319 = vpop.f32.mrb[0].mxu0
      %320 = vdwg.mxu0
      %v321 = vmul.f32 %v316, 0.25
      %vm322 = vcmask 36864
      %v323 = vsel %vm322, %v321, -inf
      %324 = vmax.xlane.f32.xlu0 %v323
      %v325 = vpop.xlane.xlu0 %324
      %v326 = vsub.f32 %v321, %v325
      %v327 = vmul.f32 %v326, 1.442695
      %v328 = vpow.pop %v327
      %v329 = vsel %vm322, %v328, 0.0
      %330 = vadd.xlane.f32.xlu0 %v329
      %v331 = vpop.xlane.xlu0 %330
      %v332 = vpack.c.bf16 %v328, %v328
      %v333 = vld [vmem:[%s258] sm:$0x7]
      %vm334 = vcmask 39936
      %v336 = vsel %vm334, %v332, 0
      %vm338 = vcmask 1041408
      %vm339 = vcmask 1042432
      %v340 = vsel %vm338, 4294967295, 65535
      %v341 = vsel %vm339, %v340, 0
      %v343 = vand.u32 %v333, %v341
      %345 = vmatprep.subr.bf16.mxu0 0
      %346 = vmatpush1.bf16.msra.mxu0 %v343
      %347 = vmatprep.subr.bf16.mxu0 0
      %348 = vmatpush1.bf16.msra.mxu0 0
      %349 = vmatprep.subr.bf16.mxu0 0
      %350 = vmatpush1.bf16.msra.mxu0 0
      %351 = vmatprep.subr.bf16.mxu0 0
      %352 = vmatpush1.bf16.msra.mxu0 0
      %353 = vmatprep.subr.bf16.mxu0 0
      %354 = vmatpush1.bf16.msra.mxu0 0
      %355 = vmatprep.subr.bf16.mxu0 0
      %356 = vmatpush1.bf16.msra.mxu0 0
      %357 = vmatprep.subr.bf16.mxu0 0
      %358 = vmatpush1.bf16.msra.mxu0 0
      %359 = vmatprep.subr.bf16.mxu0 0
      %360 = vmatpush1.bf16.msra.mxu0 0
      %361 = vmatprep.subr.bf16.mxu0 0
      %362 = vmatpush1.bf16.msra.mxu0 0
      %363 = vmatprep.subr.bf16.mxu0 0
      %364 = vmatpush1.bf16.msra.mxu0 0
      %365 = vmatprep.subr.bf16.mxu0 0
      %366 = vmatpush1.bf16.msra.mxu0 0
      %367 = vmatprep.subr.bf16.mxu0 0
      %368 = vmatpush1.bf16.msra.mxu0 0
      %369 = vmatprep.subr.bf16.mxu0 0
      %370 = vmatpush1.bf16.msra.mxu0 0
      %371 = vmatprep.subr.bf16.mxu0 0
      %372 = vmatpush1.bf16.msra.mxu0 0
      %373 = vmatprep.subr.bf16.mxu0 0
      %374 = vmatpush1.bf16.msra.mxu0 0
      %375 = vmatprep.subr.bf16.mxu0 0
      %376 = vmatpush1.bf16.msra.mxu0 0
      %377 = vmatprep.mubr.bf16.mxu0 0
      %378 = vmatmul.mubr.bf16.gmra.mrb[0].mxu0 %v336
      %v379 = vpop.f32.mrb[0].mxu0
      %v380 = vadd.f32 0.0, %v379
      %v381 = vpop.f32.mrb[0].mxu0
      %v382 = vpop.f32.mrb[0].mxu0
      %v383 = vpop.f32.mrb[0].mxu0
      %384 = vdwg.mxu0
      %v385 = vrcp.pop %v331
      %v386 = vmul.f32 %v380, %v385
      %v387 = vpack.c.bf16 %v386, %v386
      %vm388 = vcmask 124928
      %vm389 = vsmask.f32 2304
      %vm390 = vmand %vm388, %vm389
      %v391 = vld [vmem:[%s266] sm:$0x7]
      %v392 = vsel %vm390, %v387, %v391
      %393 = vst [vmem:[%s266] sm:$0x7] %v392
      %p394 = scmp.lt.s32.totalorder %s18, 1
      %s395 = scalar_select %p394, %s18, 1
      %p396 = scmp.lt.s32.totalorder %s19, 3
      %s397 = scalar_select %p396, %s19, 3
      %s398 = smul.addr %s395, 4
      %s399 = sadd.s32 %s397, %s398
      %s400 = smul.addr %s399, 4
      %s401 = scalar_lea.vmem %s3, %s400
      // Predicated region
      $region33: #{medical_foundation_forward.16} parent=31 // pred_check
        %p402 = pneg %p130
      $region34: #{medical_foundation_forward.16} parent=31 // pred_check_branch
        %404 = sbr.rel (%p402) target = $region36
      $region35: #{medical_foundation_forward.16} parent=31 // pred_region
        _
      $region36: #{medical_foundation_forward.16} parent=31 // pred_fallthru
        _
    $region32: #{medical_foundation_forward.16} parent=5 // pred_fallthru
      _
    %p405 = scmp.le.s32.totalorder 2, %s9
    // Predicated region
    $region37: #{medical_foundation_forward.16} parent=5 // pred_check
      %p406 = pneg %p405
    $region38: #{medical_foundation_forward.16} parent=5 // pred_check_branch
      %408 = sbr.rel (%p406) target = $region40
    $region39: #{medical_foundation_forward.16} parent=5 // pred_region
      %s409 = ssub.s32 %s9, 2
      // Predicated region
      $region41: #{medical_foundation_forward.16} parent=39 // pred_check
        %p410 = pneg %p136
      $region42: #{medical_foundation_forward.16} parent=39 // pred_check_branch
        %412 = sbr.rel (%p410) target = $region44
      $region43: #{medical_foundation_forward.16} parent=39 // pred_region
        %p413 = scmp.lt.s32.totalorder %s20, 1
        %s414 = scalar_select %p413, %s20, 1
        %p415 = scmp.lt.s32.totalorder %s21, 3
        %s416 = scalar_select %p415, %s21, 3
        %s417 = smul.addr %s414, 4
        %s418 = sadd.s32 %s416, %s417
        %s419 = smul.addr %s418, 4
        %s420 = scalar_lea.vmem %s3, %s419
      $region44: #{medical_foundation_forward.16} parent=39 // pred_fallthru
        _
    $region40: #{medical_foundation_forward.16} parent=5 // pred_fallthru
      _
  $region6: #{medical_foundation_forward.16} parent=0 // loop_footer
    %s13 = sadd.s32 1, %s9
  $region7: #{medical_foundation_forward.16} parent=0 // loop_footer_branch
    %8 = sbr.rel target = $region3
  $region8: #{medical_foundation_forward.16} parent=0 // loop_exit
    _

// kernel: medical_foundation_forward.17
$region0: #{medical_foundation_forward.17}
  #allocation0 [shape = 'u32[]', space=smem, size = 0x4, offset = 0x4, fixed_abs, tag = 'smem constant byte address 0x4 - core index']
  #allocation1 [shape = 'u32[144,128]{1,0:T(1,128)}', space=vmem, size = 0x12000, scoped, tag = 'internal scratch']
  #allocation2 [shape = 'f32[16,128]{1,0:T(8,128)}', space=vmem, size = 0x2000, scoped, tag = 'scratch operand']
  %s0 = inlined_call_operand.vmem [shape: bf16[16,128], index: 0, kind: input, shape index: {}]
  %s1 = inlined_call_operand.vmem [shape: bf16[128,128], index: 1, kind: input, shape index: {}]
  %s2 = inlined_call_operand.vmem [shape: f32[1,128], index: 2, kind: input, shape index: {}]
  %s3 = inlined_call_operand.vmem [shape: f32[16,128], index: 3, kind: input, shape index: {}]
  %s4 = inlined_call_operand.vmem [shape: f32[16,128], index: 4, kind: output, shape index: {}]
  %s5 = sld [smem:[#allocation0]]
  $region34: #{medical_foundation_forward.17} parent=0
    _
  %s7 = ssub.s32 1, %s5
  %s8 = scalar_select 0, %s7, %s5
  // Predicated region
  $region2: #{medical_foundation_forward.17} parent=0 // pred_check
    _
  $region3: #{medical_foundation_forward.17} parent=0 // pred_check_branch
    %10 = sbr.rel (0) target = $region5
  $region4: #{medical_foundation_forward.17} parent=0 // pred_region
    _
  $region5: #{medical_foundation_forward.17} parent=0 // pred_fallthru
    _
  // Predicated region
  $region6: #{medical_foundation_forward.17} parent=0 // pred_check
    _
  $region7: #{medical_foundation_forward.17} parent=0 // pred_check_branch
    %12 = sbr.rel (0) target = $region9
  $region8: #{medical_foundation_forward.17} parent=0 // pred_region
    _
  $region9: #{medical_foundation_forward.17} parent=0 // pred_fallthru
    _
  // Predicated region
  $region10: #{medical_foundation_forward.17} parent=0 // pred_check
    _
  $region11: #{medical_foundation_forward.17} parent=0 // pred_check_branch
    %14 = sbr.rel (0) target = $region13
  $region12: #{medical_foundation_forward.17} parent=0 // pred_region
    _
  $region13: #{medical_foundation_forward.17} parent=0 // pred_fallthru
    _
  // Predicated region
  $region14: #{medical_foundation_forward.17} parent=0 // pred_check
    _
  $region15: #{medical_foundation_forward.17} parent=0 // pred_check_branch
    %16 = sbr.rel (0) target = $region17
  $region16: #{medical_foundation_forward.17} parent=0 // pred_region
    _
  $region17: #{medical_foundation_forward.17} parent=0 // pred_fallthru
    _
  %p18 = scmp.eq.s32.totalorder 0, 0
  // Predicated region
  $region18: #{medical_foundation_forward.17} parent=0 // pred_check
    %p19 = pneg %p18
  $region19: #{medical_foundation_forward.17} parent=0 // pred_check_branch
    %21 = sbr.rel (%p19) target = $region21
  $region20: #{medical_foundation_forward.17} parent=0 // pred_region
    %22 = vst [vmem:[#allocation2] sm:$0xff] 0.0
    %23 = vst [vmem:[#allocation2 + $0x8] sm:$0xff] 0.0
  $region21: #{medical_foundation_forward.17} parent=0 // pred_fallthru
    _
  %v24 = vld [vmem:[#allocation2] sm:$0xff]
  %v25 = vld [vmem:[#allocation2 + $0x8] sm:$0xff]
  %v26 = vld [vmem:[%s0] sm:$0xf]
  %v27 = vld [vmem:[%s0 + $0x4] sm:$0xf]
  %v28 = vld [vmem:[%s1] sm:$0xf]
  %v29 = vld [vmem:[%s1 + $0x4] sm:$0xf]
  %v30 = vld [vmem:[%s1 + $0x8] sm:$0xf]
  %v31 = vld [vmem:[%s1 + $0xc] sm:$0xf]
  %v32 = vld [vmem:[%s1 + $0x10] sm:$0xf]
  %v33 = vld [vmem:[%s1 + $0x14] sm:$0xf]
  %v34 = vld [vmem:[%s1 + $0x18] sm:$0xf]
  %v35 = vld [vmem:[%s1 + $0x1c] sm:$0xf]
  %v36 = vld [vmem:[%s1 + $0x20] sm:$0xf]
  %v37 = vld [vmem:[%s1 + $0x24] sm:$0xf]
  %v38 = vld [vmem:[%s1 + $0x28] sm:$0xf]
  %v39 = vld [vmem:[%s1 + $0x2c] sm:$0xf]
  %v40 = vld [vmem:[%s1 + $0x30] sm:$0xf]
  %v41 = vld [vmem:[%s1 + $0x34] sm:$0xf]
  %v42 = vld [vmem:[%s1 + $0x38] sm:$0xf]
  %v43 = vld [vmem:[%s1 + $0x3c] sm:$0xf]
  %v46 = vunpack.c.l.b16 %v26
  %v47 = vunpack.c.l.b16 %v27
  %v48 = vpack.c.b16 %v47, %v46
  %v66 = vunpack.c.l.b16 %v28
  %v67 = vunpack.c.l.b16 %v29
  %v68 = vunpack.c.l.b16 %v30
  %v69 = vunpack.c.l.b16 %v31
  %v70 = vunpack.c.l.b16 %v32
  %v71 = vunpack.c.l.b16 %v33
  %v72 = vunpack.c.l.b16 %v34
  %v73 = vunpack.c.l.b16 %v35
  %v74 = vunpack.c.l.b16 %v36
  %v75 = vunpack.c.l.b16 %v37
  %v76 = vunpack.c.l.b16 %v38
  %v77 = vunpack.c.l.b16 %v39
  %v78 = vunpack.c.l.b16 %v40
  %v79 = vunpack.c.l.b16 %v41
  %v80 = vunpack.c.l.b16 %v42
  %v81 = vunpack.c.l.b16 %v43
  %v82 = vpack.c.b16 %v67, %v66
  %v83 = vpack.c.b16 %v69, %v68
  %v84 = vpack.c.b16 %v71, %v70
  %v85 = vpack.c.b16 %v73, %v72
  %v86 = vpack.c.b16 %v75, %v74
  %v87 = vpack.c.b16 %v77, %v76
  %v88 = vpack.c.b16 %v79, %v78
  %v89 = vpack.c.b16 %v81, %v80
  %98 = vmatprep.subr.bf16.mxu0 0
  %99 = vmatpush1.bf16.msra.mxu0 %v82
  %100 = vmatprep.subr.bf16.mxu0 0
  %101 = vmatpush1.bf16.msra.mxu0 %v83
  %102 = vmatprep.subr.bf16.mxu0 0
  %103 = vmatpush1.bf16.msra.mxu0 %v84
  %104 = vmatprep.subr.bf16.mxu0 0
  %105 = vmatpush1.bf16.msra.mxu0 %v85
  %106 = vmatprep.subr.bf16.mxu0 0
  %107 = vmatpush1.bf16.msra.mxu0 %v86
  %108 = vmatprep.subr.bf16.mxu0 0
  %109 = vmatpush1.bf16.msra.mxu0 %v87
  %110 = vmatprep.subr.bf16.mxu0 0
  %111 = vmatpush1.bf16.msra.mxu0 %v88
  %112 = vmatprep.subr.bf16.mxu0 0
  %113 = vmatpush1.bf16.msra.mxu0 %v89
  %114 = vmatprep.subr.bf16.mxu0 0
  %115 = vmatpush1.bf16.msra.mxu0 0
  %116 = vmatprep.subr.bf16.mxu0 0
  %117 = vmatpush1.bf16.msra.mxu0 0
  %118 = vmatprep.subr.bf16.mxu0 0
  %119 = vmatpush1.bf16.msra.mxu0 0
  %120 = vmatprep.subr.bf16.mxu0 0
  %121 = vmatpush1.bf16.msra.mxu0 0
  %122 = vmatprep.subr.bf16.mxu0 0
  %123 = vmatpush1.bf16.msra.mxu0 0
  %124 = vmatprep.subr.bf16.mxu0 0
  %125 = vmatpush1.bf16.msra.mxu0 0
  %126 = vmatprep.subr.bf16.mxu0 0
  %127 = vmatpush1.bf16.msra.mxu0 0
  %128 = vmatprep.subr.bf16.mxu0 0
  %129 = vmatpush1.bf16.msra.mxu0 0
  %130 = vmatprep.mubr.bf16.mxu0 0
  %131 = vmatmul.mubr.bf16.gmra.mrb[0].mxu0 %v48
  %v132 = vpop.f32.mrb[0].mxu0
  %v133 = vadd.f32 0.0, %v132
  %v134 = vpop.f32.mrb[0].mxu0
  %v135 = vpop.f32.mrb[0].mxu0
  %v136 = vadd.f32 0.0, %v135
  %v137 = vpop.f32.mrb[0].mxu0
  %138 = vdwg.mxu0
  %v139 = vadd.f32 %v24, %v133
  %v140 = vadd.f32 %v25, %v136
  %141 = vst [vmem:[#allocation2] sm:$0xff] %v139
  %142 = vst [vmem:[#allocation2 + $0x8] sm:$0xff] %v140
  // Predicated region
  $region22: #{medical_foundation_forward.17} parent=0 // pred_check
    %p143 = pneg %p18
  $region23: #{medical_foundation_forward.17} parent=0 // pred_check_branch
    %145 = sbr.rel (%p143) target = $region25
  $region24: #{medical_foundation_forward.17} parent=0 // pred_region
    %v146 = vld [vmem:[#allocation2] sm:$0xff]
    %v147 = vld [vmem:[#allocation2 + $0x8] sm:$0xff]
    %v148 = vld [vmem:[%s2] sm:$0x1]
    %v150 = vlaneseq
    %v151 = vshrl.u32 %v150, 7
    %v152 = vsub.s32 0, %v151
    %v153 = vrot.slane %v148, %v152
    %v155 = vadd.f32 %v146, %v153
    %v156 = vadd.f32 %v147, %v153
    %v157 = vld [vmem:[%s3] sm:$0xff]
    %v158 = vld [vmem:[%s3 + $0x8] sm:$0xff]
    %v159 = vadd.f32 %v155, %v157
    %v160 = vadd.f32 %v156, %v158
    %161 = vst [vmem:[%s4] sm:$0xff] %v159
    %162 = vst [vmem:[%s4 + $0x8] sm:$0xff] %v160
  $region25: #{medical_foundation_forward.17} parent=0 // pred_fallthru
    _
  // Predicated region
  $region26: #{medical_foundation_forward.17} parent=0 // pred_check
    _
  $region27: #{medical_foundation_forward.17} parent=0 // pred_check_branch
    %164 = sbr.rel (0) target = $region29
  $region28: #{medical_foundation_forward.17} parent=0 // pred_region
    _
  $region29: #{medical_foundation_forward.17} parent=0 // pred_fallthru
    _
  // Predicated region
  $region30: #{medical_foundation_forward.17} parent=0 // pred_check
    _
  $region31: #{medical_foundation_forward.17} parent=0 // pred_check_branch
    %166 = sbr.rel (0) target = $region33
  $region32: #{medical_foundation_forward.17} parent=0 // pred_region
    _
  $region33: #{medical_foundation_forward.17} parent=0 // pred_fallthru
    _

// kernel: medical_foundation_forward.25
$region0: #{medical_foundation_forward.25}
  #allocation0 [shape = 'u32[]', space=smem, size = 0x4, offset = 0x4, fixed_abs, tag = 'smem constant byte address 0x4 - core index']
  #allocation1 [shape = 'u32[144,128]{1,0:T(1,128)}', space=vmem, size = 0x12000, scoped, tag = 'internal scratch']
  %s0 = inlined_call_operand.vmem [shape: f32[16,64], index: 0, kind: input, shape index: {}]
  %s1 = inlined_call_operand.vmem [shape: f32[1,64], index: 1, kind: input, shape index: {}]
  %s2 = inlined_call_operand.vmem [shape: f32[1,64], index: 2, kind: input, shape index: {}]
  %s3 = inlined_call_operand.vmem [shape: f32[16,64], index: 3, kind: output, shape index: {}]
  %s4 = sld [smem:[#allocation0]]
  $region22: #{medical_foundation_forward.25} parent=0
    _
  %s6 = ssub.s32 1, %s4
  %s7 = scalar_select 0, %s6, %s4
  // Predicated region
  $region2: #{medical_foundation_forward.25} parent=0 // pred_check
    _
  $region3: #{medical_foundation_forward.25} parent=0 // pred_check_branch
    %9 = sbr.rel (0) target = $region5
  $region4: #{medical_foundation_forward.25} parent=0 // pred_region
    _
  $region5: #{medical_foundation_forward.25} parent=0 // pred_fallthru
    _
  // Predicated region
  $region6: #{medical_foundation_forward.25} parent=0 // pred_check
    _
  $region7: #{medical_foundation_forward.25} parent=0 // pred_check_branch
    %11 = sbr.rel (0) target = $region9
  $region8: #{medical_foundation_forward.25} parent=0 // pred_region
    _
  $region9: #{medical_foundation_forward.25} parent=0 // pred_fallthru
    _
  // Predicated region
  $region10: #{medical_foundation_forward.25} parent=0 // pred_check
    _
  $region11: #{medical_foundation_forward.25} parent=0 // pred_check_branch
    %13 = sbr.rel (0) target = $region13
  $region12: #{medical_foundation_forward.25} parent=0 // pred_region
    _
  $region13: #{medical_foundation_forward.25} parent=0 // pred_fallthru
    _
  %v14 = vld [vmem:[%s0] sm:$0xff]
  %v15 = vld [vmem:[%s0 + $0x8] sm:$0xff]
  %vm16 = vcmask 523264
  %v17 = vsel %vm16, %v14, 0.0
  %18 = vadd.xlane.f32.xlu0 %v17
  %v19 = vpop.xlane.xlu0 %18
  %v20 = vsel %vm16, %v15, 0.0
  %21 = vadd.xlane.f32.xlu0 %v20
  %v22 = vpop.xlane.xlu0 %21
  %v23 = vrcp.pop 64.0
  %v24 = vmul.f32 %v19, %v23
  %v25 = vmul.f32 %v22, %v23
  %v26 = vsub.f32 %v14, %v24
  %v27 = vsub.f32 %v15, %v25
  %v28 = vmul.f32 %v26, %v26
  %v29 = vmul.f32 %v27, %v27
  %v30 = vsel %vm16, %v28, 0.0
  %31 = vadd.xlane.f32.xlu0 %v30
  %v32 = vpop.xlane.xlu0 %31
  %v33 = vsel %vm16, %v29, 0.0
  %34 = vadd.xlane.f32.xlu0 %v33
  %v35 = vpop.xlane.xlu0 %34
  %v36 = vmul.f32 %v32, %v23
  %v37 = vmul.f32 %v35, %v23
  %v38 = vadd.f32 %v36, 1e-05
  %v39 = vadd.f32 %v37, 1e-05
  %v40 = vrsqrt.pop %v38
  %v41 = vrsqrt.pop %v39
  %v42 = vmul.f32 %v26, %v40
  %v43 = vmul.f32 %v27, %v41
  %v44 = vld [vmem:[%s1] sm:$0x1]
  %v46 = vlaneseq
  %v47 = vshrl.u32 %v46, 7
  %v48 = vsub.s32 0, %v47
  %v49 = vrot.slane %v44, %v48
  %v51 = vmul.f32 %v42, %v49
  %v52 = vmul.f32 %v43, %v49
  %v53 = vld [vmem:[%s2] sm:$0x1]
  %v55 = vlaneseq
  %v56 = vshrl.u32 %v55, 7
  %v57 = vsub.s32 0, %v56
  %v58 = vrot.slane %v53, %v57
  %v60 = vadd.f32 %v51, %v58
  %v61 = vadd.f32 %v52, %v58
  %62 = vst.msk [vmem:[%s3] sm:$0xff] %vm16, %v60
  %63 = vst.msk [vmem:[%s3 + $0x8] sm:$0xff] %vm16, %v61
  // Predicated region
  $region14: #{medical_foundation_forward.25} parent=0 // pred_check
    _
  $region15: #{medical_foundation_forward.25} parent=0 // pred_check_branch
    %65 = sbr.rel (0) target = $region17
  $region16: #{medical_foundation_forward.25} parent=0 // pred_region
    _
  $region17: #{medical_foundation_forward.25} parent=0 // pred_fallthru
    _
  // Predicated region
  $region18: #{medical_foundation_forward.25} parent=0 // pred_check
    _
  $region19: #{medical_foundation_forward.25} parent=0 // pred_check_branch
    %67 = sbr.rel (0) target = $region21
  $region20: #{medical_foundation_forward.25} parent=0 // pred_region
    _
  $region21: #{medical_foundation_forward.25} parent=0 // pred_fallthru
    _

// kernel: medical_foundation_forward.18
$region0: #{medical_foundation_forward.18}
  #allocation0 [shape = 'u32[]', space=smem, size = 0x4, offset = 0x4, fixed_abs, tag = 'smem constant byte address 0x4 - core index']
  #allocation1 [shape = 'u32[144,128]{1,0:T(1,128)}', space=vmem, size = 0x12000, scoped, tag = 'internal scratch']
  %s0 = inlined_call_operand.vmem [shape: f32[16,64], index: 0, kind: input, shape index: {}]
  %s1 = inlined_call_operand.vmem [shape: f32[1,64], index: 1, kind: input, shape index: {}]
  %s2 = inlined_call_operand.vmem [shape: f32[1,64], index: 2, kind: input, shape index: {}]
  %s3 = inlined_call_operand.vmem [shape: bf16[64,256], index: 3, kind: input, shape index: {}]
  %s4 = inlined_call_operand.vmem [shape: f32[1,256], index: 4, kind: input, shape index: {}]
  %s5 = inlined_call_operand.vmem [shape: bf16[16,256], index: 5, kind: output, shape index: {}]
  %s6 = sld [smem:[#allocation0]]
  $region30: #{medical_foundation_forward.18} parent=0
    _
  %s8 = ssub.s32 1, %s6
  %s9 = scalar_select 0, %s8, %s6
  // Predicated region
  $region2: #{medical_foundation_forward.18} parent=0 // pred_check
    _
  $region3: #{medical_foundation_forward.18} parent=0 // pred_check_branch
    %11 = sbr.rel (0) target = $region5
  $region4: #{medical_foundation_forward.18} parent=0 // pred_region
    _
  $region5: #{medical_foundation_forward.18} parent=0 // pred_fallthru
    _
  // Predicated region
  $region6: #{medical_foundation_forward.18} parent=0 // pred_check
    _
  $region7: #{medical_foundation_forward.18} parent=0 // pred_check_branch
    %13 = sbr.rel (0) target = $region9
  $region8: #{medical_foundation_forward.18} parent=0 // pred_region
    _
  $region9: #{medical_foundation_forward.18} parent=0 // pred_fallthru
    _
  // Predicated region
  $region10: #{medical_foundation_forward.18} parent=0 // pred_check
    _
  $region11: #{medical_foundation_forward.18} parent=0 // pred_check_branch
    %15 = sbr.rel (0) target = $region13
  $region12: #{medical_foundation_forward.18} parent=0 // pred_region
    _
  $region13: #{medical_foundation_forward.18} parent=0 // pred_fallthru
    _
  // Predicated region
  $region14: #{medical_foundation_forward.18} parent=0 // pred_check
    _
  $region15: #{medical_foundation_forward.18} parent=0 // pred_check_branch
    %17 = sbr.rel (0) target = $region17
  $region16: #{medical_foundation_forward.18} parent=0 // pred_region
    _
  $region17: #{medical_foundation_forward.18} parent=0 // pred_fallthru
    _
  // Predicated region
  $region18: #{medical_foundation_forward.18} parent=0 // pred_check
    _
  $region19: #{medical_foundation_forward.18} parent=0 // pred_check_branch
    %19 = sbr.rel (0) target = $region21
  $region20: #{medical_foundation_forward.18} parent=0 // pred_region
    _
  $region21: #{medical_foundation_forward.18} parent=0 // pred_fallthru
    _
  %v21 = vld [vmem:[%s0] sm:$0xff]
  %v22 = vld [vmem:[%s0 + $0x8] sm:$0xff]
  %vm23 = vcmask 523264
  %v24 = vsel %vm23, %v21, 0.0
  %25 = vadd.xlane.f32.xlu0 %v24
  %v26 = vpop.xlane.xlu0 %25
  %v27 = vsel %vm23, %v22, 0.0
  %28 = vadd.xlane.f32.xlu0 %v27
  %v29 = vpop.xlane.xlu0 %28
  %v30 = vrcp.pop 64.0
  %v31 = vmul.f32 %v26, %v30
  %v32 = vmul.f32 %v29, %v30
  %v33 = vsub.f32 %v21, %v31
  %v34 = vsub.f32 %v22, %v32
  %v35 = vmul.f32 %v33, %v33
  %v36 = vmul.f32 %v34, %v34
  %v37 = vsel %vm23, %v35, 0.0
  %38 = vadd.xlane.f32.xlu0 %v37
  %v39 = vpop.xlane.xlu0 %38
  %v40 = vsel %vm23, %v36, 0.0
  %41 = vadd.xlane.f32.xlu0 %v40
  %v42 = vpop.xlane.xlu0 %41
  %v43 = vmul.f32 %v39, %v30
  %v44 = vmul.f32 %v42, %v30
  %v45 = vadd.f32 %v43, 1e-05
  %v46 = vadd.f32 %v44, 1e-05
  %v47 = vrsqrt.pop %v45
  %v48 = vrsqrt.pop %v46
  %v49 = vmul.f32 %v33, %v47
  %v50 = vmul.f32 %v34, %v48
  %v51 = vld [vmem:[%s1] sm:$0x1]
  %v53 = vlaneseq
  %v54 = vshrl.u32 %v53, 7
  %v55 = vsub.s32 0, %v54
  %v56 = vrot.slane %v51, %v55
  %v58 = vmul.f32 %v49, %v56
  %v59 = vmul.f32 %v50, %v56
  %v60 = vld [vmem:[%s2] sm:$0x1]
  %v62 = vlaneseq
  %v63 = vshrl.u32 %v62, 7
  %v64 = vsub.s32 0, %v63
  %v65 = vrot.slane %v60, %v64
  %v67 = vadd.f32 %v58, %v65
  %v68 = vadd.f32 %v59, %v65
  %v69 = vpack.c.bf16 %v68, %v67
  %v70 = vld [vmem:[%s3] sm:$0xff]
  %v71 = vld [vmem:[%s3 + $0x8] sm:$0xff]
  %v72 = vld [vmem:[%s3 + $0x10] sm:$0xff]
  %v73 = vld [vmem:[%s3 + $0x18] sm:$0xff]
  %v74 = vld [vmem:[%s3 + $0x20] sm:$0xff]
  %v75 = vld [vmem:[%s3 + $0x28] sm:$0xff]
  %v76 = vld [vmem:[%s3 + $0x30] sm:$0xff]
  %v77 = vld [vmem:[%s3 + $0x38] sm:$0xff]
  %v78 = vld [vmem:[%s4] sm:$0x3]
  %v80 = vlaneseq
  %v81 = vshrl.u32 %v80, 7
  %v82 = vsub.s32 0, %v81
  %v83 = vrot.slane %v78, %v82
  %v84 = vlaneseq
  %v85 = vshrl.u32 %v84, 7
  %v86 = vsub.s32 1, %v85
  %v87 = vrot.slane %v78, %v86
  %v98 = vunpack.c.l.b16 %v70
  %v99 = vunpack.c.h.b16 %v70
  %v100 = vunpack.c.l.b16 %v71
  %v101 = vunpack.c.h.b16 %v71
  %v102 = vunpack.c.l.b16 %v72
  %v103 = vunpack.c.h.b16 %v72
  %v104 = vunpack.c.l.b16 %v73
  %v105 = vunpack.c.h.b16 %v73
  %v106 = vunpack.c.l.b16 %v74
  %v107 = vunpack.c.h.b16 %v74
  %v108 = vunpack.c.l.b16 %v75
  %v109 = vunpack.c.h.b16 %v75
  %v110 = vunpack.c.l.b16 %v76
  %v111 = vunpack.c.h.b16 %v76
  %v112 = vunpack.c.l.b16 %v77
  %v113 = vunpack.c.h.b16 %v77
  %v114 = vpack.c.b16 %v100, %v98
  %v115 = vpack.c.b16 %v101, %v99
  %v116 = vpack.c.b16 %v104, %v102
  %v117 = vpack.c.b16 %v105, %v103
  %v118 = vpack.c.b16 %v108, %v106
  %v119 = vpack.c.b16 %v109, %v107
  %v120 = vpack.c.b16 %v112, %v110
  %v121 = vpack.c.b16 %v113, %v111
  %v131 = vsel %vm23, %v69, 0
  %133 = vmatprep.subr.bf16.mxu0 %v115
  %134 = vmatpush1.bf16.msra.mxu0 %v114
  %135 = vmatprep.subr.bf16.mxu0 %v117
  %136 = vmatpush1.bf16.msra.mxu0 %v116
  %137 = vmatprep.subr.bf16.mxu0 %v119
  %138 = vmatpush1.bf16.msra.mxu0 %v118
  %139 = vmatprep.subr.bf16.mxu0 %v121
  %140 = vmatpush1.bf16.msra.mxu0 %v120
  %141 = vmatprep.subr.bf16.mxu0 0
  %142 = vmatpush1.bf16.msra.mxu0 0
  %143 = vmatprep.subr.bf16.mxu0 0
  %144 = vmatpush1.bf16.msra.mxu0 0
  %145 = vmatprep.subr.bf16.mxu0 0
  %146 = vmatpush1.bf16.msra.mxu0 0
  %147 = vmatprep.subr.bf16.mxu0 0
  %148 = vmatpush1.bf16.msra.mxu0 0
  %149 = vmatprep.subr.bf16.mxu0 0
  %150 = vmatpush1.bf16.msra.mxu0 0
  %151 = vmatprep.subr.bf16.mxu0 0
  %152 = vmatpush1.bf16.msra.mxu0 0
  %153 = vmatprep.subr.bf16.mxu0 0
  %154 = vmatpush1.bf16.msra.mxu0 0
  %155 = vmatprep.subr.bf16.mxu0 0
  %156 = vmatpush1.bf16.msra.mxu0 0
  %157 = vmatprep.subr.bf16.mxu0 0
  %158 = vmatpush1.bf16.msra.mxu0 0
  %159 = vmatprep.subr.bf16.mxu0 0
  %160 = vmatpush1.bf16.msra.mxu0 0
  %161 = vmatprep.subr.bf16.mxu0 0
  %162 = vmatpush1.bf16.msra.mxu0 0
  %163 = vmatprep.subr.bf16.mxu0 0
  %164 = vmatpush1.bf16.msra.mxu0 0
  %165 = vmatprep.mubr.bf16.mxu0 0
  %166 = vmatmul.mubr.bf16.gmra.mrb[0].mxu0 %v131
  %v167 = vpop.f32.mrb[0].mxu0
  %v168 = vadd.f32 %v83, %v167
  %v169 = vpop.f32.mrb[0].mxu0
  %v170 = vadd.f32 %v87, %v169
  %v171 = vpop.f32.mrb[0].mxu0
  %v172 = vadd.f32 %v83, %v171
  %v173 = vpop.f32.mrb[0].mxu0
  %v174 = vadd.f32 %v87, %v173
  %175 = vdwg.mxu0
  %v176 = vmul.f32 %v168, 0.5
  %v177 = vmul.f32 %v170, 0.5
  %v178 = vmul.f32 %v172, 0.5
  %v179 = vmul.f32 %v174, 0.5
  %v180 = vmul.f32 %v168, 0.70710677
  %v181 = vmul.f32 %v170, 0.70710677
  %v182 = vmul.f32 %v172, 0.70710677
  %v183 = vmul.f32 %v174, 0.70710677
  %v184 = vand.u32 2147483647, %v180
  %v185 = vand.u32 2147483647, %v181
  %v186 = vand.u32 2147483647, %v182
  %v187 = vand.u32 2147483647, %v183
  %v188 = vmul.f32 %v184, 0.3275911
  %v189 = vmul.f32 %v185, 0.3275911
  %v190 = vmul.f32 %v186, 0.3275911
  %v191 = vmul.f32 %v187, 0.3275911
  %v192 = vadd.f32 %v188, 1.0
  %v193 = vadd.f32 %v189, 1.0
  %v194 = vadd.f32 %v190, 1.0
  %v195 = vadd.f32 %v191, 1.0
  %v196 = vrcp.pop %v192
  %v197 = vmul.f32 1.0, %v196
  %v198 = vrcp.pop %v193
  %v199 = vmul.f32 1.0, %v198
  %v200 = vrcp.pop %v194
  %v201 = vmul.f32 1.0, %v200
  %v202 = vrcp.pop %v195
  %v203 = vmul.f32 1.0, %v202
  %v204 = vmul.f32 %v197, 1.0614054
  %v205 = vmul.f32 %v199, 1.0614054
  %v206 = vmul.f32 %v201, 1.0614054
  %v207 = vmul.f32 %v203, 1.0614054
  %v208 = vadd.f32 %v204, -1.4531521
  %v209 = vadd.f32 %v205, -1.4531521
  %v210 = vadd.f32 %v206, -1.4531521
  %v211 = vadd.f32 %v207, -1.4531521
  %v212 = vmul.f32 %v208, %v197
  %v213 = vmul.f32 %v209, %v199
  %v214 = vmul.f32 %v210, %v201
  %v215 = vmul.f32 %v211, %v203
  %v216 = vadd.f32 %v212, 1.4214138
  %v217 = vadd.f32 %v213, 1.4214138
  %v218 = vadd.f32 %v214, 1.4214138
  %v219 = vadd.f32 %v215, 1.4214138
  %v220 = vmul.f32 %v216, %v197
  %v221 = vmul.f32 %v217, %v199
  %v222 = vmul.f32 %v218, %v201
  %v223 = vmul.f32 %v219, %v203
  %v224 = vadd.f32 %v220, -0.28449672
  %v225 = vadd.f32 %v221, -0.28449672
  %v226 = vadd.f32 %v222, -0.28449672
  %v227 = vadd.f32 %v223, -0.28449672
  %v228 = vmul.f32 %v224, %v197
  %v229 = vmul.f32 %v225, %v199
  %v230 = vmul.f32 %v226, %v201
  %v231 = vmul.f32 %v227, %v203
  %v232 = vadd.f32 %v228, 0.2548296
  %v233 = vadd.f32 %v229, 0.2548296
  %v234 = vadd.f32 %v230, 0.2548296
  %v235 = vadd.f32 %v231, 0.2548296
  %v236 = vmul.f32 %v232, %v197
  %v237 = vmul.f32 %v233, %v199
  %v238 = vmul.f32 %v234, %v201
  %v239 = vmul.f32 %v235, %v203
  %v240 = vsub.f32 0.0, %v184
  %v241 = vsub.f32 0.0, %v185
  %v242 = vsub.f32 0.0, %v186
  %v243 = vsub.f32 0.0, %v187
  %v244 = vmul.f32 %v240, %v184
  %v245 = vmul.f32 %v241, %v185
  %v246 = vmul.f32 %v242, %v186
  %v247 = vmul.f32 %v243, %v187
  %v248 = vmul.f32 %v244, 1.442695
  %v249 = vpow.pop %v248
  %v250 = vmul.f32 %v245, 1.442695
  %v251 = vpow.pop %v250
  %v252 = vmul.f32 %v246, 1.442695
  %v253 = vpow.pop %v252
  %v254 = vmul.f32 %v247, 1.442695
  %v255 = vpow.pop %v254
  %v256 = vmul.f32 %v236, %v249
  %v257 = vmul.f32 %v237, %v251
  %v258 = vmul.f32 %v238, %v253
  %v259 = vmul.f32 %v239, %v255
  %v260 = vsub.f32 1.0, %v256
  %v261 = vsub.f32 1.0, %v257
  %v262 = vsub.f32 1.0, %v258
  %v263 = vsub.f32 1.0, %v259
  %vm264 = vcmp.lt.f32.partialorder %v180, 0.0
  %vm265 = vcmp.lt.f32.partialorder %v181, 0.0
  %vm266 = vcmp.lt.f32.partialorder %v182, 0.0
  %vm267 = vcmp.lt.f32.partialorder %v183, 0.0
  %v268 = vsub.f32 0.0, %v260
  %v269 = vsub.f32 0.0, %v261
  %v270 = vsub.f32 0.0, %v262
  %v271 = vsub.f32 0.0, %v263
  %v272 = vsel %vm264, %v268, %v260
  %v273 = vsel %vm265, %v269, %v261
  %v274 = vsel %vm266, %v270, %v262
  %v275 = vsel %vm267, %v271, %v263
  %v276 = vadd.f32 %v272, 1.0
  %v277 = vadd.f32 %v273, 1.0
  %v278 = vadd.f32 %v274, 1.0
  %v279 = vadd.f32 %v275, 1.0
  %v280 = vmul.f32 %v176, %v276
  %v281 = vmul.f32 %v177, %v277
  %v282 = vmul.f32 %v178, %v278
  %v283 = vmul.f32 %v179, %v279
  %v284 = vpack.c.bf16 %v282, %v280
  %v285 = vpack.c.bf16 %v283, %v281
  %v288 = vunpack.c.l.b16 %v284
  %v289 = vunpack.c.l.b16 %v285
  %v290 = vunpack.c.h.b16 %v284
  %v291 = vunpack.c.h.b16 %v285
  %v292 = vpack.c.b16 %v289, %v288
  %v293 = vpack.c.b16 %v291, %v290
  %296 = vst [vmem:[%s5] sm:$0xff] %v292
  %297 = vst [vmem:[%s5 + $0x8] sm:$0xff] %v293
  // Predicated region
  $region22: #{medical_foundation_forward.18} parent=0 // pred_check
    _
  $region23: #{medical_foundation_forward.18} parent=0 // pred_check_branch
    %299 = sbr.rel (0) target = $region25
  $region24: #{medical_foundation_forward.18} parent=0 // pred_region
    _
  $region25: #{medical_foundation_forward.18} parent=0 // pred_fallthru
    _
  // Predicated region
  $region26: #{medical_foundation_forward.18} parent=0 // pred_check
    _
  $region27: #{medical_foundation_forward.18} parent=0 // pred_check_branch
    %301 = sbr.rel (0) target = $region29
  $region28: #{medical_foundation_forward.18} parent=0 // pred_region
    _
  $region29: #{medical_foundation_forward.18} parent=0 // pred_fallthru
    _

// kernel: medical_foundation_forward.19
$region0: #{medical_foundation_forward.19}
  #allocation0 [shape = 'u32[]', space=smem, size = 0x4, offset = 0x4, fixed_abs, tag = 'smem constant byte address 0x4 - core index']
  #allocation1 [shape = 'u32[144,128]{1,0:T(1,128)}', space=vmem, size = 0x12000, scoped, tag = 'internal scratch']
  #allocation2 [shape = 'f32[16,128]{1,0:T(8,128)}', space=vmem, size = 0x2000, scoped, tag = 'scratch operand']
  %s0 = inlined_call_operand.vmem [shape: bf16[16,256], index: 0, kind: input, shape index: {}]
  %s1 = inlined_call_operand.vmem [shape: bf16[256,128], index: 1, kind: input, shape index: {}]
  %s2 = inlined_call_operand.vmem [shape: f32[1,128], index: 2, kind: input, shape index: {}]
  %s3 = inlined_call_operand.vmem [shape: f32[16,128], index: 3, kind: input, shape index: {}]
  %s4 = inlined_call_operand.vmem [shape: f32[16,128], index: 4, kind: output, shape index: {}]
  %s5 = sld [smem:[#allocation0]]
  $region34: #{medical_foundation_forward.19} parent=0
    _
  %s7 = ssub.s32 1, %s5
  %s8 = scalar_select 0, %s7, %s5
  // Predicated region
  $region2: #{medical_foundation_forward.19} parent=0 // pred_check
    _
  $region3: #{medical_foundation_forward.19} parent=0 // pred_check_branch
    %10 = sbr.rel (0) target = $region5
  $region4: #{medical_foundation_forward.19} parent=0 // pred_region
    _
  $region5: #{medical_foundation_forward.19} parent=0 // pred_fallthru
    _
  // Predicated region
  $region6: #{medical_foundation_forward.19} parent=0 // pred_check
    _
  $region7: #{medical_foundation_forward.19} parent=0 // pred_check_branch
    %12 = sbr.rel (0) target = $region9
  $region8: #{medical_foundation_forward.19} parent=0 // pred_region
    _
  $region9: #{medical_foundation_forward.19} parent=0 // pred_fallthru
    _
  // Predicated region
  $region10: #{medical_foundation_forward.19} parent=0 // pred_check
    _
  $region11: #{medical_foundation_forward.19} parent=0 // pred_check_branch
    %14 = sbr.rel (0) target = $region13
  $region12: #{medical_foundation_forward.19} parent=0 // pred_region
    _
  $region13: #{medical_foundation_forward.19} parent=0 // pred_fallthru
    _
  // Predicated region
  $region14: #{medical_foundation_forward.19} parent=0 // pred_check
    _
  $region15: #{medical_foundation_forward.19} parent=0 // pred_check_branch
    %16 = sbr.rel (0) target = $region17
  $region16: #{medical_foundation_forward.19} parent=0 // pred_region
    _
  $region17: #{medical_foundation_forward.19} parent=0 // pred_fallthru
    _
  %p18 = scmp.eq.s32.totalorder 0, 0
  // Predicated region
  $region18: #{medical_foundation_forward.19} parent=0 // pred_check
    %p19 = pneg %p18
  $region19: #{medical_foundation_forward.19} parent=0 // pred_check_branch
    %21 = sbr.rel (%p19) target = $region21
  $region20: #{medical_foundation_forward.19} parent=0 // pred_region
    %22 = vst [vmem:[#allocation2] sm:$0xff] 0.0
    %23 = vst [vmem:[#allocation2 + $0x8] sm:$0xff] 0.0
  $region21: #{medical_foundation_forward.19} parent=0 // pred_fallthru
    _
  %v24 = vld [vmem:[#allocation2] sm:$0xff]
  %v25 = vld [vmem:[#allocation2 + $0x8] sm:$0xff]
  %v26 = vld [vmem:[%s0] sm:$0xff]
  %v27 = vld [vmem:[%s0 + $0x8] sm:$0xff]
  %v28 = vld [vmem:[%s1] sm:$0xf]
  %v29 = vld [vmem:[%s1 + $0x4] sm:$0xf]
  %v30 = vld [vmem:[%s1 + $0x8] sm:$0xf]
  %v31 = vld [vmem:[%s1 + $0xc] sm:$0xf]
  %v32 = vld [vmem:[%s1 + $0x10] sm:$0xf]
  %v33 = vld [vmem:[%s1 + $0x14] sm:$0xf]
  %v34 = vld [vmem:[%s1 + $0x18] sm:$0xf]
  %v35 = vld [vmem:[%s1 + $0x1c] sm:$0xf]
  %v36 = vld [vmem:[%s1 + $0x20] sm:$0xf]
  %v37 = vld [vmem:[%s1 + $0x24] sm:$0xf]
  %v38 = vld [vmem:[%s1 + $0x28] sm:$0xf]
  %v39 = vld [vmem:[%s1 + $0x2c] sm:$0xf]
  %v40 = vld [vmem:[%s1 + $0x30] sm:$0xf]
  %v41 = vld [vmem:[%s1 + $0x34] sm:$0xf]
  %v42 = vld [vmem:[%s1 + $0x38] sm:$0xf]
  %v43 = vld [vmem:[%s1 + $0x3c] sm:$0xf]
  %v44 = vld [vmem:[%s1 + $0x40] sm:$0xf]
  %v45 = vld [vmem:[%s1 + $0x44] sm:$0xf]
  %v46 = vld [vmem:[%s1 + $0x48] sm:$0xf]
  %v47 = vld [vmem:[%s1 + $0x4c] sm:$0xf]
  %v48 = vld [vmem:[%s1 + $0x50] sm:$0xf]
  %v49 = vld [vmem:[%s1 + $0x54] sm:$0xf]
  %v50 = vld [vmem:[%s1 + $0x58] sm:$0xf]
  %v51 = vld [vmem:[%s1 + $0x5c] sm:$0xf]
  %v52 = vld [vmem:[%s1 + $0x60] sm:$0xf]
  %v53 = vld [vmem:[%s1 + $0x64] sm:$0xf]
  %v54 = vld [vmem:[%s1 + $0x68] sm:$0xf]
  %v55 = vld [vmem:[%s1 + $0x6c] sm:$0xf]
  %v56 = vld [vmem:[%s1 + $0x70] sm:$0xf]
  %v57 = vld [vmem:[%s1 + $0x74] sm:$0xf]
  %v58 = vld [vmem:[%s1 + $0x78] sm:$0xf]
  %v59 = vld [vmem:[%s1 + $0x7c] sm:$0xf]
  %v62 = vunpack.c.l.b16 %v26
  %v63 = vunpack.c.h.b16 %v26
  %v64 = vunpack.c.l.b16 %v27
  %v65 = vunpack.c.h.b16 %v27
  %v66 = vpack.c.b16 %v64, %v62
  %v67 = vpack.c.b16 %v65, %v63
  %v102 = vunpack.c.l.b16 %v28
  %v103 = vunpack.c.l.b16 %v29
  %v104 = vunpack.c.l.b16 %v30
  %v105 = vunpack.c.l.b16 %v31
  %v106 = vunpack.c.l.b16 %v32
  %v107 = vunpack.c.l.b16 %v33
  %v108 = vunpack.c.l.b16 %v34
  %v109 = vunpack.c.l.b16 %v35
  %v110 = vunpack.c.l.b16 %v36
  %v111 = vunpack.c.l.b16 %v37
  %v112 = vunpack.c.l.b16 %v38
  %v113 = vunpack.c.l.b16 %v39
  %v114 = vunpack.c.l.b16 %v40
  %v115 = vunpack.c.l.b16 %v41
  %v116 = vunpack.c.l.b16 %v42
  %v117 = vunpack.c.l.b16 %v43
  %v118 = vunpack.c.l.b16 %v44
  %v119 = vunpack.c.l.b16 %v45
  %v120 = vunpack.c.l.b16 %v46
  %v121 = vunpack.c.l.b16 %v47
  %v122 = vunpack.c.l.b16 %v48
  %v123 = vunpack.c.l.b16 %v49
  %v124 = vunpack.c.l.b16 %v50
  %v125 = vunpack.c.l.b16 %v51
  %v126 = vunpack.c.l.b16 %v52
  %v127 = vunpack.c.l.b16 %v53
  %v128 = vunpack.c.l.b16 %v54
  %v129 = vunpack.c.l.b16 %v55
  %v130 = vunpack.c.l.b16 %v56
  %v131 = vunpack.c.l.b16 %v57
  %v132 = vunpack.c.l.b16 %v58
  %v133 = vunpack.c.l.b16 %v59
  %v134 = vpack.c.b16 %v103, %v102
  %v135 = vpack.c.b16 %v105, %v104
  %v136 = vpack.c.b16 %v107, %v106
  %v137 = vpack.c.b16 %v109, %v108
  %v138 = vpack.c.b16 %v111, %v110
  %v139 = vpack.c.b16 %v113, %v112
  %v140 = vpack.c.b16 %v115, %v114
  %v141 = vpack.c.b16 %v117, %v116
  %v142 = vpack.c.b16 %v119, %v118
  %v143 = vpack.c.b16 %v121, %v120
  %v144 = vpack.c.b16 %v123, %v122
  %v145 = vpack.c.b16 %v125, %v124
  %v146 = vpack.c.b16 %v127, %v126
  %v147 = vpack.c.b16 %v129, %v128
  %v148 = vpack.c.b16 %v131, %v130
  %v149 = vpack.c.b16 %v133, %v132
  %166 = vmatprep.subr.bf16.mxu0 0
  %167 = vmatpush1.bf16.msra.mxu0 %v134
  %168 = vmatprep.subr.bf16.mxu0 0
  %169 = vmatpush1.bf16.msra.mxu0 %v135
  %170 = vmatprep.subr.bf16.mxu0 0
  %171 = vmatpush1.bf16.msra.mxu0 %v136
  %172 = vmatprep.subr.bf16.mxu0 0
  %173 = vmatpush1.bf16.msra.mxu0 %v137
  %174 = vmatprep.subr.bf16.mxu0 0
  %175 = vmatpush1.bf16.msra.mxu0 %v138
  %176 = vmatprep.subr.bf16.mxu0 0
  %177 = vmatpush1.bf16.msra.mxu0 %v139
  %178 = vmatprep.subr.bf16.mxu0 0
  %179 = vmatpush1.bf16.msra.mxu0 %v140
  %180 = vmatprep.subr.bf16.mxu0 0
  %181 = vmatpush1.bf16.msra.mxu0 %v141
  %182 = vmatprep.subr.bf16.mxu0 0
  %183 = vmatpush1.bf16.msra.mxu0 %v142
  %184 = vmatprep.subr.bf16.mxu0 0
  %185 = vmatpush1.bf16.msra.mxu0 %v143
  %186 = vmatprep.subr.bf16.mxu0 0
  %187 = vmatpush1.bf16.msra.mxu0 %v144
  %188 = vmatprep.subr.bf16.mxu0 0
  %189 = vmatpush1.bf16.msra.mxu0 %v145
  %190 = vmatprep.subr.bf16.mxu0 0
  %191 = vmatpush1.bf16.msra.mxu0 %v146
  %192 = vmatprep.subr.bf16.mxu0 0
  %193 = vmatpush1.bf16.msra.mxu0 %v147
  %194 = vmatprep.subr.bf16.mxu0 0
  %195 = vmatpush1.bf16.msra.mxu0 %v148
  %196 = vmatprep.subr.bf16.mxu0 0
  %197 = vmatpush1.bf16.msra.mxu0 %v149
  %198 = vmatprep.mubr.bf16.mxu0 %v67
  %199 = vmatmul.mubr.bf16.gmra.mrb[0].mxu0 %v66
  %v200 = vpop.f32.mrb[0].mxu0
  %v201 = vadd.f32 0.0, %v200
  %v202 = vpop.f32.mrb[0].mxu0
  %v203 = vpop.f32.mrb[0].mxu0
  %v204 = vadd.f32 0.0, %v203
  %v205 = vpop.f32.mrb[0].mxu0
  %206 = vdwg.mxu0
  %v207 = vadd.f32 %v24, %v201
  %v208 = vadd.f32 %v25, %v204
  %209 = vst [vmem:[#allocation2] sm:$0xff] %v207
  %210 = vst [vmem:[#allocation2 + $0x8] sm:$0xff] %v208
  // Predicated region
  $region22: #{medical_foundation_forward.19} parent=0 // pred_check
    %p211 = pneg %p18
  $region23: #{medical_foundation_forward.19} parent=0 // pred_check_branch
    %213 = sbr.rel (%p211) target = $region25
  $region24: #{medical_foundation_forward.19} parent=0 // pred_region
    %v214 = vld [vmem:[#allocation2] sm:$0xff]
    %v215 = vld [vmem:[#allocation2 + $0x8] sm:$0xff]
    %v216 = vld [vmem:[%s2] sm:$0x1]
    %v218 = vlaneseq
    %v219 = vshrl.u32 %v218, 7
    %v220 = vsub.s32 0, %v219
    %v221 = vrot.slane %v216, %v220
    %v223 = vadd.f32 %v214, %v221
    %v224 = vadd.f32 %v215, %v221
    %v225 = vld [vmem:[%s3] sm:$0xff]
    %v226 = vld [vmem:[%s3 + $0x8] sm:$0xff]
    %v227 = vadd.f32 %v223, %v225
    %v228 = vadd.f32 %v224, %v226
    %229 = vst [vmem:[%s4] sm:$0xff] %v227
    %230 = vst [vmem:[%s4 + $0x8] sm:$0xff] %v228
  $region25: #{medical_foundation_forward.19} parent=0 // pred_fallthru
    _
  // Predicated region
  $region26: #{medical_foundation_forward.19} parent=0 // pred_check
    _
  $region27: #{medical_foundation_forward.19} parent=0 // pred_check_branch
    %232 = sbr.rel (0) target = $region29
  $region28: #{medical_foundation_forward.19} parent=0 // pred_region
    _
  $region29: #{medical_foundation_forward.19} parent=0 // pred_fallthru
    _
  // Predicated region
  $region30: #{medical_foundation_forward.19} parent=0 // pred_check
    _
  $region31: #{medical_foundation_forward.19} parent=0 // pred_check_branch
    %234 = sbr.rel (0) target = $region33
  $region32: #{medical_foundation_forward.19} parent=0 // pred_region
    _
  $region33: #{medical_foundation_forward.19} parent=0 // pred_fallthru
    _

// kernel: medical_foundation_forward.26
$region0: #{medical_foundation_forward.26}
  #allocation0 [shape = 'u32[]', space=smem, size = 0x4, offset = 0x4, fixed_abs, tag = 'smem constant byte address 0x4 - core index']
  #allocation1 [shape = 'u32[144,128]{1,0:T(1,128)}', space=vmem, size = 0x12000, scoped, tag = 'internal scratch']
  #allocation2 [shape = 'f32[8,256]{1,0:T(8,128)}', space=vmem, size = 0x2000, scoped, tag = 'scratch operand']
  %s0 = inlined_call_operand.vmem [shape: bf16[8,128], index: 0, kind: input, shape index: {}]
  %s1 = inlined_call_operand.vmem [shape: bf16[128,512], index: 1, kind: input, shape index: {}]
  %s2 = inlined_call_operand.vmem [shape: f32[1,512], index: 2, kind: input, shape index: {}]
  %s3 = inlined_call_operand.vmem [shape: f32[8,512], index: 3, kind: output, shape index: {}]
  %s4 = sld [smem:[#allocation0]]
  $region91: #{medical_foundation_forward.26} parent=0
    _
  %s6 = ssub.s32 1, %s4
  %s7 = scalar_select 0, %s6, %s4
  $region1: #{medical_foundation_forward.26} parent=0
    #allocation3 [shape = 'u8[131072]{0}', space=vmem, size = 0x20000, scoped, tag = 'input window, operand 1']
    loop: start=0, step=1, limit=4
    $region2: #{medical_foundation_forward.26} parent=1 // loop_pre_header
      _
    $region3: #{medical_foundation_forward.26} parent=1 // loop_header
      %s9 = sphi 0, %s13
      %p10 = scmp.ge.s32.totalorder %s9, 4
      %s16 = sphi 0, %s35
      %s17 = sphi 0, %s31
      %s18 = sphi 0, %s27
      %s19 = sphi 0, %s16
      %s20 = sphi 0, %s17
      %s21 = sphi 0, %s18
      %s22 = sphi 0, %s19
      %s23 = sphi 0, %s20
      %s24 = sphi 0, %s21
      %s40 = sphi 0, %s42
      %s43 = sphi 0, %s40
      %s44 = sphi 0, %s43
      %s60 = sphi 0, %s44
      %s68 = sphi 0, %s70
      %s71 = sphi 0, %s68
      %s72 = sphi 0, %s71
      %s88 = sphi 0, %s72
      %s94 = sphi 0, %s96
      %s97 = sphi 0, %s94
      %s98 = sphi 0, %s97
      %s114 = sphi 0, %s98
      %s122 = sphi 0, %s124
      %s125 = sphi 0, %s122
      %s126 = sphi 0, %s125
      %s142 = sphi 0, %s126
    $region4: #{medical_foundation_forward.26} parent=1 // loop_header_branch
      %12 = sbr.rel (%p10) target = $region8
    $region5: #{medical_foundation_forward.26} parent=1 // loop_body
      %s14 = ssub.s32 %s9, 1
      %s15 = ssub.s32 %s9, 2
      %s25 = sadd.s32 1, %s18
      %p26 = scmp.ge.s32.totalorder %s25, 1
      %s27 = scalar_select %p26, 0, %s25
      %s28 = sadd.s32 1, %s17
      %s29 = scalar_select %p26, %s28, %s17
      %p30 = scmp.ge.s32.totalorder %s29, 2
      %s31 = scalar_select %p30, 0, %s29
      %s32 = sadd.s32 1, %s16
      %s33 = scalar_select %p30, %s32, %s16
      %p34 = scmp.ge.s32.totalorder %s33, 1
      %s35 = scalar_select %p34, 0, %s33
      %s36 = ssub.s32 %s16, %s35
      %s37 = ssub.s32 %s18, %s27
      %s38 = sor.u32 %s36, %s37
      %p39 = scmp.eq.s32.totalorder %s38, 0
      %s41 = sadd.s32 %s40, 1
      %s42 = scalar_select %p39, %s40, %s41
      %p45 = pneg %p39
      %p46 = scmp.eq.s32.totalorder %s9, 1
      %p47 = por %p45, %p46
      %p48 = scmp.ne.s32.totalorder %s40, %s43
      %p49 = scmp.eq.s32.totalorder %s9, 0
      %p50 = por %p48, %p49
      %p51 = scmp.ne.s32.totalorder %s40, %s43
      %p52 = scmp.eq.s32.totalorder %s14, 1
      %p53 = por %p51, %p52
      %p54 = scmp.ne.s32.totalorder %s43, %s44
      %p55 = scmp.eq.s32.totalorder %s14, 0
      %p56 = por %p54, %p55
      %p57 = scmp.ne.s32.totalorder %s43, %s44
      %p58 = scmp.eq.s32.totalorder %s15, 1
      %p59 = por %p57, %p58
      %p61 = scmp.ne.s32.totalorder %s44, %s60
      %p62 = scmp.eq.s32.totalorder %s15, 0
      %p63 = por %p61, %p62
      %s64 = ssub.s32 %s18, %s27
      %s65 = ssub.s32 %s17, %s31
      %s66 = sor.u32 %s64, %s65
      %p67 = scmp.eq.s32.totalorder %s66, 0
      %s69 = sadd.s32 %s68, 1
      %s70 = scalar_select %p67, %s68, %s69
      %p73 = pneg %p67
      %p74 = scmp.eq.s32.totalorder %s9, 1
      %p75 = por %p73, %p74
      %p76 = scmp.ne.s32.totalorder %s68, %s71
      %p77 = scmp.eq.s32.totalorder %s9, 0
      %p78 = por %p76, %p77
      %p79 = scmp.ne.s32.totalorder %s68, %s71
      %p80 = scmp.eq.s32.totalorder %s14, 1
      %p81 = por %p79, %p80
      %p82 = scmp.ne.s32.totalorder %s71, %s72
      %p83 = scmp.eq.s32.totalorder %s14, 0
      %p84 = por %p82, %p83
      %p85 = scmp.ne.s32.totalorder %s71, %s72
      %p86 = scmp.eq.s32.totalorder %s15, 1
      %p87 = por %p85, %p86
      %p89 = scmp.ne.s32.totalorder %s72, %s88
      %p90 = scmp.eq.s32.totalorder %s15, 0
      %p91 = por %p89, %p90
      %s92 = ssub.s32 %s17, %s31
      %p93 = scmp.eq.s32.totalorder %s92, 0
      %s95 = sadd.s32 %s94, 1
      %s96 = scalar_select %p93, %s94, %s95
      %p99 = pneg %p93
      %p100 = scmp.eq.s32.totalorder %s9, 1
      %p101 = por %p99, %p100
      %p102 = scmp.ne.s32.totalorder %s94, %s97
      %p103 = scmp.eq.s32.totalorder %s9, 0
      %p104 = por %p102, %p103
      %p105 = scmp.ne.s32.totalorder %s94, %s97
      %p106 = scmp.eq.s32.totalorder %s14, 1
      %p107 = por %p105, %p106
      %p108 = scmp.ne.s32.totalorder %s97, %s98
      %p109 = scmp.eq.s32.totalorder %s14, 0
      %p110 = por %p108, %p109
      %p111 = scmp.ne.s32.totalorder %s97, %s98
      %p112 = scmp.eq.s32.totalorder %s15, 1
      %p113 = por %p111, %p112
      %p115 = scmp.ne.s32.totalorder %s98, %s114
      %p116 = scmp.eq.s32.totalorder %s15, 0
      %p117 = por %p115, %p116
      %s118 = ssub.s32 %s16, %s35
      %s119 = ssub.s32 %s17, %s31
      %s120 = sor.u32 %s118, %s119
      %p121 = scmp.eq.s32.totalorder %s120, 0
      %s123 = sadd.s32 %s122, 1
      %s124 = scalar_select %p121, %s122, %s123
      %p127 = pneg %p121
      %p128 = scmp.eq.s32.totalorder %s9, 1
      %p129 = por %p127, %p128
      %p130 = scmp.ne.s32.totalorder %s122, %s125
      %p131 = scmp.eq.s32.totalorder %s9, 0
      %p132 = por %p130, %p131
      %p133 = scmp.ne.s32.totalorder %s122, %s125
      %p134 = scmp.eq.s32.totalorder %s14, 1
      %p135 = por %p133, %p134
      %p136 = scmp.ne.s32.totalorder %s125, %s126
      %p137 = scmp.eq.s32.totalorder %s14, 0
      %p138 = por %p136, %p137
      %p139 = scmp.ne.s32.totalorder %s125, %s126
      %p140 = scmp.eq.s32.totalorder %s15, 1
      %p141 = por %p139, %p140
      %p143 = scmp.ne.s32.totalorder %s126, %s142
      %p144 = scmp.eq.s32.totalorder %s15, 0
      %p145 = por %p143, %p144
      %p146 = scmp.le.s32.totalorder 1, %s9
      %p147 = scmp.lt.s32.totalorder %s9, 3
      %p148 = pnand %p146, %p147
      %p149 = pneg %p148
      // Predicated region
      $region9: #{medical_foundation_forward.26} parent=5 // pred_check
        _
      $region10: #{medical_foundation_forward.26} parent=5 // pred_check_branch
        %151 = sbr.rel (%p148) target = $region12
      $region11: #{medical_foundation_forward.26} parent=5 // pred_region
        %s152 = ssub.s32 %s9, 1
        // Predicated region
        $region13: #{medical_foundation_forward.26} parent=11 // pred_check
          %p153 = pneg %p56
        $region14: #{medical_foundation_forward.26} parent=11 // pred_check_branch
          %155 = sbr.rel (%p153) target = $region16
        $region15: #{medical_foundation_forward.26} parent=11 // pred_region
          %p156 = scmp.lt.s32.totalorder %s19, 0
          %s157 = scalar_select %p156, %s19, 0
          %p158 = scmp.lt.s32.totalorder %s21, 0
          %s159 = scalar_select %p158, %s21, 0
          %s160 = sadd.s32 %s159, %s157
          %s161 = smul.addr %s160, 4
          %s162 = scalar_lea.vmem %s0, %s161
        $region16: #{medical_foundation_forward.26} parent=11 // pred_fallthru
          _
      $region12: #{medical_foundation_forward.26} parent=5 // pred_fallthru
        _
      %p163 = scmp.lt.s32.totalorder %s9, 2
      // Predicated region
      $region17: #{medical_foundation_forward.26} parent=5 // pred_check
        %p164 = pneg %p163
      $region18: #{medical_foundation_forward.26} parent=5 // pred_check_branch
        %166 = sbr.rel (%p164) target = $region20
      $region19: #{medical_foundation_forward.26} parent=5 // pred_region
        // Predicated region
        $region21: #{medical_foundation_forward.26} parent=19 // pred_check
          %p167 = pneg %p78
        $region22: #{medical_foundation_forward.26} parent=19 // pred_check_branch
          %169 = sbr.rel (%p167) target = $region24
        $region23: #{medical_foundation_forward.26} parent=19 // pred_region
          %s170 = sand.u32 %s68, 1
          %s171 = sand.u32 %s68, 1
          %s172 = smul.addr %s171, 128
          %s173 = scalar_lea.vmem [#allocation3], %s172
          %s174 = smul.u32 16, %s18
          %s175 = smul.u32 2, %s17
          %s176 = smul.addr %s174, 4
          %s177 = sadd.s32 %s175, %s176
          %s178 = smul.addr %s177, 4
          %s179 = scalar_lea.vmem %s1, %s178
          // Predicated region
          $region25: #{medical_foundation_forward.26} parent=23 // pred_check
            _
          $region26: #{medical_foundation_forward.26} parent=23 // pred_check_branch
            %181 = sbr.rel (0) target = $region28
          $region27: #{medical_foundation_forward.26} parent=23 // pred_region
            // Predicated region
            $region29: #{medical_foundation_forward.26} parent=27 // pred_check
              _
            $region30: #{medical_foundation_forward.26} parent=27 // pred_check_branch
              %183 = sbr.rel (0) target = $region32
            $region31: #{medical_foundation_forward.26} parent=27 // pred_region
              // Predicated region
              $region44: #{medical_foundation_forward.26} parent=31 // pred_check
                _
              $region45: #{medical_foundation_forward.26} parent=31 // pred_check_branch
                %228 = sbr.rel (0) target = $region47
              $region46: #{medical_foundation_forward.26} parent=31 // pred_region
                loop: start=0, step=1, limit=1
                $region48: #{medical_foundation_forward.26} parent=46 // loop_pre_header
                  _
                $region49: #{medical_foundation_forward.26} parent=46 // loop_header
                  %s230 = sphi 0, %s234
                  %p231 = scmp.ge.s32.totalorder %s230, 1
                  %s235 = sphi %s179, %s179
                  %s236 = sphi %s173, %s173
                $region50: #{medical_foundation_forward.26} parent=46 // loop_header_branch
                  %233 = sbr.rel (%p231) target = $region54
                $region51: #{medical_foundation_forward.26} parent=46 // loop_body
                  %v237 = vld [vmem:[%s235] sm:$0xff]
                  %238 = vst [vmem:[%s236] sm:$0xff] %v237
                  %v239 = vld [vmem:[%s235 + $0x10] sm:$0xff]
                  %240 = vst [vmem:[%s236 + $0x8] sm:$0xff] %v239
                  %v241 = vld [vmem:[%s235 + $0x20] sm:$0xff]
                  %242 = vst [vmem:[%s236 + $0x10] sm:$0xff] %v241
                  %v243 = vld [vmem:[%s235 + $0x30] sm:$0xff]
                  %244 = vst [vmem:[%s236 + $0x18] sm:$0xff] %v243
                  %v245 = vld [vmem:[%s235 + $0x40] sm:$0xff]
                  %246 = vst [vmem:[%s236 + $0x20] sm:$0xff] %v245
                  %v247 = vld [vmem:[%s235 + $0x50] sm:$0xff]
                  %248 = vst [vmem:[%s236 + $0x28] sm:$0xff] %v247
                  %v249 = vld [vmem:[%s235 + $0x60] sm:$0xff]
                  %250 = vst [vmem:[%s236 + $0x30] sm:$0xff] %v249
                  %v251 = vld [vmem:[%s235 + $0x70] sm:$0xff]
                  %252 = vst [vmem:[%s236 + $0x38] sm:$0xff] %v251
                  %v253 = vld [vmem:[%s235 + $0x80] sm:$0xff]
                  %254 = vst [vmem:[%s236 + $0x40] sm:$0xff] %v253
                  %v255 = vld [vmem:[%s235 + $0x90] sm:$0xff]
                  %256 = vst [vmem:[%s236 + $0x48] sm:$0xff] %v255
                  %v257 = vld [vmem:[%s235 + $0xa0] sm:$0xff]
                  %258 = vst [vmem:[%s236 + $0x50] sm:$0xff] %v257
                  %v259 = vld [vmem:[%s235 + $0xb0] sm:$0xff]
                  %260 = vst [vmem:[%s236 + $0x58] sm:$0xff] %v259
                  %v261 = vld [vmem:[%s235 + $0xc0] sm:$0xff]
                  %262 = vst [vmem:[%s236 + $0x60] sm:$0xff] %v261
                  %v263 = vld [vmem:[%s235 + $0xd0] sm:$0xff]
                  %264 = vst [vmem:[%s236 + $0x68] sm:$0xff] %v263
                  %v265 = vld [vmem:[%s235 + $0xe0] sm:$0xff]
                  %266 = vst [vmem:[%s236 + $0x70] sm:$0xff] %v265
                  %v267 = vld [vmem:[%s235 + $0xf0] sm:$0xff]
                  %268 = vst [vmem:[%s236 + $0x78] sm:$0xff] %v267
                $region52: #{medical_foundation_forward.26} parent=46 // loop_footer
                  %s234 = sadd.s32 1, %s230
                $region53: #{medical_foundation_forward.26} parent=46 // loop_footer_branch
                  %229 = sbr.rel target = $region49
                $region54: #{medical_foundation_forward.26} parent=46 // loop_exit
                  _
              $region47: #{medical_foundation_forward.26} parent=31 // pred_fallthru
                _
              // Predicated region
              $region55: #{medical_foundation_forward.26} parent=31 // pred_check
                _
              $region56: #{medical_foundation_forward.26} parent=31 // pred_check_branch
                %270 = sbr.rel target = $region58
              $region57: #{medical_foundation_forward.26} parent=31 // pred_region
                _
              $region58: #{medical_foundation_forward.26} parent=31 // pred_fallthru
                _
            $region32: #{medical_foundation_forward.26} parent=27 // pred_fallthru
              _
            // Predicated region
            $region33: #{medical_foundation_forward.26} parent=27 // pred_check
              _
            $region34: #{medical_foundation_forward.26} parent=27 // pred_check_branch
              %185 = sbr.rel target = $region36
            $region35: #{medical_foundation_forward.26} parent=27 // pred_region
              loop: start=0, step=1, limit=1
              $region37: #{medical_foundation_forward.26} parent=35 // loop_pre_header
                _
              $region38: #{medical_foundation_forward.26} parent=35 // loop_header
                %s188 = sphi 0, %s192
                %p189 = scmp.ge.s32.totalorder %s188, 1
                %s193 = sphi %s179, %s179
                %s194 = sphi %s173, %s173
              $region39: #{medical_foundation_forward.26} parent=35 // loop_header_branch
                %191 = sbr.rel (%p189) target = $region43
              $region40: #{medical_foundation_forward.26} parent=35 // loop_body
                %v195 = vld [vmem:[%s193] sm:$0xff]
                %196 = vst [vmem:[%s194] sm:$0xff] %v195
                %v197 = vld [vmem:[%s193 + $0x10] sm:$0xff]
                %198 = vst [vmem:[%s194 + $0x8] sm:$0xff] %v197
                %v199 = vld [vmem:[%s193 + $0x20] sm:$0xff]
                %200 = vst [vmem:[%s194 + $0x10] sm:$0xff] %v199
                %v201 = vld [vmem:[%s193 + $0x30] sm:$0xff]
                %202 = vst [vmem:[%s194 + $0x18] sm:$0xff] %v201
                %v203 = vld [vmem:[%s193 + $0x40] sm:$0xff]
                %204 = vst [vmem:[%s194 + $0x20] sm:$0xff] %v203
                %v205 = vld [vmem:[%s193 + $0x50] sm:$0xff]
                %206 = vst [vmem:[%s194 + $0x28] sm:$0xff] %v205
                %v207 = vld [vmem:[%s193 + $0x60] sm:$0xff]
                %208 = vst [vmem:[%s194 + $0x30] sm:$0xff] %v207
                %v209 = vld [vmem:[%s193 + $0x70] sm:$0xff]
                %210 = vst [vmem:[%s194 + $0x38] sm:$0xff] %v209
                %v211 = vld [vmem:[%s193 + $0x80] sm:$0xff]
                %212 = vst [vmem:[%s194 + $0x40] sm:$0xff] %v211
                %v213 = vld [vmem:[%s193 + $0x90] sm:$0xff]
                %214 = vst [vmem:[%s194 + $0x48] sm:$0xff] %v213
                %v215 = vld [vmem:[%s193 + $0xa0] sm:$0xff]
                %216 = vst [vmem:[%s194 + $0x50] sm:$0xff] %v215
                %v217 = vld [vmem:[%s193 + $0xb0] sm:$0xff]
                %218 = vst [vmem:[%s194 + $0x58] sm:$0xff] %v217
                %v219 = vld [vmem:[%s193 + $0xc0] sm:$0xff]
                %220 = vst [vmem:[%s194 + $0x60] sm:$0xff] %v219
                %v221 = vld [vmem:[%s193 + $0xd0] sm:$0xff]
                %222 = vst [vmem:[%s194 + $0x68] sm:$0xff] %v221
                %v223 = vld [vmem:[%s193 + $0xe0] sm:$0xff]
                %224 = vst [vmem:[%s194 + $0x70] sm:$0xff] %v223
                %v225 = vld [vmem:[%s193 + $0xf0] sm:$0xff]
                %226 = vst [vmem:[%s194 + $0x78] sm:$0xff] %v225
              $region41: #{medical_foundation_forward.26} parent=35 // loop_footer
                %s192 = sadd.s32 1, %s188
              $region42: #{medical_foundation_forward.26} parent=35 // loop_footer_branch
                %187 = sbr.rel target = $region38
              $region43: #{medical_foundation_forward.26} parent=35 // loop_exit
                _
            $region36: #{medical_foundation_forward.26} parent=27 // pred_fallthru
              _
          $region28: #{medical_foundation_forward.26} parent=23 // pred_fallthru
            _
          %271 = vnop
        $region24: #{medical_foundation_forward.26} parent=19 // pred_fallthru
          _
        // Predicated region
        $region59: #{medical_foundation_forward.26} parent=19 // pred_check
          %p272 = pneg %p104
        $region60: #{medical_foundation_forward.26} parent=19 // pred_check_branch
          %274 = sbr.rel (%p272) target = $region62
        $region61: #{medical_foundation_forward.26} parent=19 // pred_region
          %s275 = smul.u32 2, %s17
          %p276 = scmp.lt.s32.totalorder %s275, 3
          %s277 = scalar_select %p276, %s275, 3
          %s278 = scalar_lea.vmem %s2, %s277
          %s279 = smul.u32 2, %s17
        $region62: #{medical_foundation_forward.26} parent=19 // pred_fallthru
          _
      $region20: #{medical_foundation_forward.26} parent=5 // pred_fallthru
        _
      %p280 = scmp.le.s32.totalorder 1, %s9
      %p281 = scmp.lt.s32.totalorder %s9, 3
      %p282 = pnand %p280, %p281
      %p283 = pneg %p282
      // Predicated region
      $region63: #{medical_foundation_forward.26} parent=5 // pred_check
        _
      $region64: #{medical_foundation_forward.26} parent=5 // pred_check_branch
        %285 = sbr.rel (%p282) target = $region66
      $region65: #{medical_foundation_forward.26} parent=5 // pred_region
        %s286 = ssub.s32 %s9, 1
        %s287 = sand.u32 %s71, 1
        %s288 = sand.u32 %s71, 1
        %s289 = smul.addr %s288, 128
        %s290 = scalar_lea.vmem [#allocation3], %s289
        // Predicated region
        $region67: #{medical_foundation_forward.26} parent=65 // pred_check
          %p291 = pneg %p84
        $region68: #{medical_foundation_forward.26} parent=65 // pred_check_branch
          %293 = sbr.rel (%p291) target = $region70
        $region69: #{medical_foundation_forward.26} parent=65 // pred_region
          _
        $region70: #{medical_foundation_forward.26} parent=65 // pred_fallthru
          _
        %p294 = scmp.lt.s32.totalorder %s19, 0
        %s295 = scalar_select %p294, %s19, 0
        %p296 = scmp.lt.s32.totalorder %s21, 0
        %s297 = scalar_select %p296, %s21, 0
        %s298 = sadd.s32 %s297, %s295
        %s299 = smul.addr %s298, 4
        %s300 = scalar_lea.vmem %s0, %s299
        %p301 = pneg %p56
        %p302 = pneg %p53
        %s303 = sand.u32 %s71, 1
        %s304 = sand.u32 %s71, 1
        %s305 = smul.addr %s304, 128
        %s306 = scalar_lea.vmem [#allocation3], %s305
        %p307 = pneg %p84
        %p308 = pneg %p81
        %s309 = smul.u32 2, %s20
        %p310 = scmp.lt.s32.totalorder %s309, 3
        %s311 = scalar_select %p310, %s309, 3
        %s312 = scalar_lea.vmem %s2, %s311
        %p313 = pneg %p110
        %p314 = pneg %p107
        %p315 = pneg %p138
        %p316 = pneg %p135
        %s317 = smul.u32 2, %s20
        %p318 = scmp.lt.s32.totalorder %s19, 0
        %s319 = scalar_select %p318, %s19, 0
        %p320 = scmp.lt.s32.totalorder %s317, 3
        %s321 = scalar_select %p320, %s317, 3
        %s322 = smul.addr %s319, 4
        %s323 = sadd.s32 %s321, %s322
        %s324 = smul.addr %s323, 8
        %s325 = scalar_lea.vmem %s3, %s324
        %p326 = scmp.lt.s32.totalorder %s19, 0
        %s327 = scalar_select %p326, %s19, 0
        %p328 = scmp.lt.s32.totalorder %s21, 0
        %s329 = scalar_select %p328, %s21, 0
        %s330 = sadd.s32 %s329, %s327
        %s331 = smul.addr %s330, 4
        %s332 = scalar_lea.vmem %s0, %s331
        %s333 = smul.u32 16, %s21
        %s334 = smul.u32 2, %s20
        %s335 = smul.u32 2, %s20
        %p336 = scmp.lt.s32.totalorder %s335, 3
        %s337 = scalar_select %p336, %s335, 3
        %s338 = scalar_lea.vmem %s2, %s337
        %s339 = smul.u32 2, %s20
        %s340 = smul.u32 2, %s20
        %p341 = scmp.lt.s32.totalorder %s19, 0
        %s342 = scalar_select %p341, %s19, 0
        %p343 = scmp.lt.s32.totalorder %s340, 3
        %s344 = scalar_select %p343, %s340, 3
        %s345 = smul.addr %s342, 4
        %s346 = sadd.s32 %s344, %s345
        %s347 = smul.addr %s346, 8
        %s348 = scalar_lea.vmem %s3, %s347
        %s349 = smul.u32 2, %s20
        %p351 = scmp.eq.s32.totalorder %s21, 0
        // Predicated region
        $region71: #{medical_foundation_forward.26} parent=65 // pred_check
          %p352 = pneg %p351
        $region72: #{medical_foundation_forward.26} parent=65 // pred_check_branch
          %354 = sbr.rel (%p352) target = $region74
        $region73: #{medical_foundation_forward.26} parent=65 // pred_region
          %355 = vst [vmem:[#allocation2] sm:$0xff] 0.0
          %356 = vst [vmem:[#allocation2 + $0x8] sm:$0xff] 0.0
        $region74: #{medical_foundation_forward.26} parent=65 // pred_fallthru
          _
        %v357 = vld [vmem:[#allocation2] sm:$0xff]
        %v358 = vld [vmem:[#allocation2 + $0x8] sm:$0xff]
        %v359 = vld [vmem:[%s332] sm:$0xf]
        %v360 = vld [vmem:[%s290] sm:$0xff]
        %v361 = vld [vmem:[%s290 + $0x8] sm:$0xff]
        %v362 = vld [vmem:[%s290 + $0x10] sm:$0xff]
        %v363 = vld [vmem:[%s290 + $0x18] sm:$0xff]
        %v364 = vld [vmem:[%s290 + $0x20] sm:$0xff]
        %v365 = vld [vmem:[%s290 + $0x28] sm:$0xff]
        %v366 = vld [vmem:[%s290 + $0x30] sm:$0xff]
        %v367 = vld [vmem:[%s290 + $0x38] sm:$0xff]
        %v368 = vld [vmem:[%s290 + $0x40] sm:$0xff]
        %v369 = vld [vmem:[%s290 + $0x48] sm:$0xff]
        %v370 = vld [vmem:[%s290 + $0x50] sm:$0xff]
        %v371 = vld [vmem:[%s290 + $0x58] sm:$0xff]
        %v372 = vld [vmem:[%s290 + $0x60] sm:$0xff]
        %v373 = vld [vmem:[%s290 + $0x68] sm:$0xff]
        %v374 = vld [vmem:[%s290 + $0x70] sm:$0xff]
        %v375 = vld [vmem:[%s290 + $0x78] sm:$0xff]
        %v392 = vunpack.c.l.b16 %v360
        %v393 = vunpack.c.h.b16 %v360
        %v394 = vunpack.c.l.b16 %v361
        %v395 = vunpack.c.h.b16 %v361
        %v396 = vunpack.c.l.b16 %v362
        %v397 = vunpack.c.h.b16 %v362
        %v398 = vunpack.c.l.b16 %v363
        %v399 = vunpack.c.h.b16 %v363
        %v400 = vunpack.c.l.b16 %v364
        %v401 = vunpack.c.h.b16 %v364
        %v402 = vunpack.c.l.b16 %v365
        %v403 = vunpack.c.h.b16 %v365
        %v404 = vunpack.c.l.b16 %v366
        %v405 = vunpack.c.h.b16 %v366
        %v406 = vunpack.c.l.b16 %v367
        %v407 = vunpack.c.h.b16 %v367
        %v408 = vunpack.c.l.b16 %v368
        %v409 = vunpack.c.h.b16 %v368
        %v410 = vunpack.c.l.b16 %v369
        %v411 = vunpack.c.h.b16 %v369
        %v412 = vunpack.c.l.b16 %v370
        %v413 = vunpack.c.h.b16 %v370
        %v414 = vunpack.c.l.b16 %v371
        %v415 = vunpack.c.h.b16 %v371
        %v416 = vunpack.c.l.b16 %v372
        %v417 = vunpack.c.h.b16 %v372
        %v418 = vunpack.c.l.b16 %v373
        %v419 = vunpack.c.h.b16 %v373
        %v420 = vunpack.c.l.b16 %v374
        %v421 = vunpack.c.h.b16 %v374
        %v422 = vunpack.c.l.b16 %v375
        %v423 = vunpack.c.h.b16 %v375
        %v424 = vpack.c.b16 %v394, %v392
        %v425 = vpack.c.b16 %v395, %v393
        %v426 = vpack.c.b16 %v398, %v396
        %v427 = vpack.c.b16 %v399, %v397
        %v428 = vpack.c.b16 %v402, %v400
        %v429 = vpack.c.b16 %v403, %v401
        %v430 = vpack.c.b16 %v406, %v404
        %v431 = vpack.c.b16 %v407, %v405
        %v432 = vpack.c.b16 %v410, %v408
        %v433 = vpack.c.b16 %v411, %v409
        %v434 = vpack.c.b16 %v414, %v412
        %v435 = vpack.c.b16 %v415, %v413
        %v436 = vpack.c.b16 %v418, %v416
        %v437 = vpack.c.b16 %v419, %v417
        %v438 = vpack.c.b16 %v422, %v420
        %v439 = vpack.c.b16 %v423, %v421
        %456 = vmatprep.subr.bf16.mxu0 %v425
        %457 = vmatpush1.bf16.msra.mxu0 %v424
        %458 = vmatprep.subr.bf16.mxu0 %v427
        %459 = vmatpush1.bf16.msra.mxu0 %v426
        %460 = vmatprep.subr.bf16.mxu0 %v429
        %461 = vmatpush1.bf16.msra.mxu0 %v428
        %462 = vmatprep.subr.bf16.mxu0 %v431
        %463 = vmatpush1.bf16.msra.mxu0 %v430
        %464 = vmatprep.subr.bf16.mxu0 %v433
        %465 = vmatpush1.bf16.msra.mxu0 %v432
        %466 = vmatprep.subr.bf16.mxu0 %v435
        %467 = vmatpush1.bf16.msra.mxu0 %v434
        %468 = vmatprep.subr.bf16.mxu0 %v437
        %469 = vmatpush1.bf16.msra.mxu0 %v436
        %470 = vmatprep.subr.bf16.mxu0 %v439
        %471 = vmatpush1.bf16.msra.mxu0 %v438
        %472 = vmatprep.subr.bf16.mxu0 0
        %473 = vmatpush1.bf16.msra.mxu0 0
        %474 = vmatprep.subr.bf16.mxu0 0
        %475 = vmatpush1.bf16.msra.mxu0 0
        %476 = vmatprep.subr.bf16.mxu0 0
        %477 = vmatpush1.bf16.msra.mxu0 0
        %478 = vmatprep.subr.bf16.mxu0 0
        %479 = vmatpush1.bf16.msra.mxu0 0
        %480 = vmatprep.subr.bf16.mxu0 0
        %481 = vmatpush1.bf16.msra.mxu0 0
        %482 = vmatprep.subr.bf16.mxu0 0
        %483 = vmatpush1.bf16.msra.mxu0 0
        %484 = vmatprep.subr.bf16.mxu0 0
        %485 = vmatpush1.bf16.msra.mxu0 0
        %486 = vmatprep.subr.bf16.mxu0 0
        %487 = vmatpush1.bf16.msra.mxu0 0
        %488 = vmatprep.mubr.bf16.mxu0 0
        %489 = vmatmul.mubr.bf16.gmra.mrb[0].mxu0 %v359
        %v490 = vpop.f32.mrb[0].mxu0
        %v491 = vadd.f32 0.0, %v490
        %v492 = vpop.f32.mrb[0].mxu0
        %v493 = vadd.f32 0.0, %v492
        %v494 = vpop.f32.mrb[0].mxu0
        %v495 = vpop.f32.mrb[0].mxu0
        %496 = vdwg.mxu0
        %v497 = vadd.f32 %v357, %v491
        %v498 = vadd.f32 %v358, %v493
        %499 = vst [vmem:[#allocation2] sm:$0xff] %v497
        %500 = vst [vmem:[#allocation2 + $0x8] sm:$0xff] %v498
        // Predicated region
        $region75: #{medical_foundation_forward.26} parent=65 // pred_check
          %p501 = pneg %p351
        $region76: #{medical_foundation_forward.26} parent=65 // pred_check_branch
          %503 = sbr.rel (%p501) target = $region78
        $region77: #{medical_foundation_forward.26} parent=65 // pred_region
          %v504 = vld [vmem:[#allocation2] sm:$0xff]
          %v505 = vld [vmem:[#allocation2 + $0x8] sm:$0xff]
          %v506 = vld [vmem:[%s338] sm:$0x3]
          %v508 = vlaneseq
          %v509 = vshrl.u32 %v508, 7
          %v510 = vsub.s32 0, %v509
          %v511 = vrot.slane %v506, %v510
          %v512 = vlaneseq
          %v513 = vshrl.u32 %v512, 7
          %v514 = vsub.s32 1, %v513
          %v515 = vrot.slane %v506, %v514
          %v518 = vadd.f32 %v504, %v511
          %v519 = vadd.f32 %v505, %v515
          %v520 = vmax.f32 %v518, 0.0
          %v521 = vmax.f32 %v519, 0.0
          %522 = vst [vmem:[%s348] sm:$0xff] %v520
          %523 = vst [vmem:[%s348 + $0x8] sm:$0xff] %v521
        $region78: #{medical_foundation_forward.26} parent=65 // pred_fallthru
          _
        %s524 = smul.u32 2, %s20
        %p525 = scmp.lt.s32.totalorder %s19, 0
        %s526 = scalar_select %p525, %s19, 0
        %p527 = scmp.lt.s32.totalorder %s524, 3
        %s528 = scalar_select %p527, %s524, 3
        %s529 = smul.addr %s526, 4
        %s530 = sadd.s32 %s528, %s529
        %s531 = smul.addr %s530, 8
        %s532 = scalar_lea.vmem %s3, %s531
        // Predicated region
        $region79: #{medical_foundation_forward.26} parent=65 // pred_check
          %p533 = pneg %p135
        $region80: #{medical_foundation_forward.26} parent=65 // pred_check_branch
          %535 = sbr.rel (%p533) target = $region82
        $region81: #{medical_foundation_forward.26} parent=65 // pred_region
          %s536 = smul.u32 2, %s20
        $region82: #{medical_foundation_forward.26} parent=65 // pred_fallthru
          _
      $region66: #{medical_foundation_forward.26} parent=5 // pred_fallthru
        _
      %p537 = scmp.le.s32.totalorder 2, %s9
      // Predicated region
      $region83: #{medical_foundation_forward.26} parent=5 // pred_check
        %p538 = pneg %p537
      $region84: #{medical_foundation_forward.26} parent=5 // pred_check_branch
        %540 = sbr.rel (%p538) target = $region86
      $region85: #{medical_foundation_forward.26} parent=5 // pred_region
        %s541 = ssub.s32 %s9, 2
        // Predicated region
        $region87: #{medical_foundation_forward.26} parent=85 // pred_check
          %p542 = pneg %p141
        $region88: #{medical_foundation_forward.26} parent=85 // pred_check_branch
          %544 = sbr.rel (%p542) target = $region90
        $region89: #{medical_foundation_forward.26} parent=85 // pred_region
          %s545 = smul.u32 2, %s23
          %p546 = scmp.lt.s32.totalorder %s22, 0
          %s547 = scalar_select %p546, %s22, 0
          %p548 = scmp.lt.s32.totalorder %s545, 3
          %s549 = scalar_select %p548, %s545, 3
          %s550 = smul.addr %s547, 4
          %s551 = sadd.s32 %s549, %s550
          %s552 = smul.addr %s551, 8
          %s553 = scalar_lea.vmem %s3, %s552
        $region90: #{medical_foundation_forward.26} parent=85 // pred_fallthru
          _
      $region86: #{medical_foundation_forward.26} parent=5 // pred_fallthru
        _
    $region6: #{medical_foundation_forward.26} parent=1 // loop_footer
      %s13 = sadd.s32 1, %s9
    $region7: #{medical_foundation_forward.26} parent=1 // loop_footer_branch
      %8 = sbr.rel target = $region3
    $region8: #{medical_foundation_forward.26} parent=1 // loop_exit
      _

// kernel: medical_foundation_forward.27
$region0: #{medical_foundation_forward.27}
  #allocation0 [shape = 'u32[]', space=smem, size = 0x4, offset = 0x4, fixed_abs, tag = 'smem constant byte address 0x4 - core index']
  #allocation1 [shape = 'u32[144,128]{1,0:T(1,128)}', space=vmem, size = 0x12000, scoped, tag = 'internal scratch']
  #allocation2 [shape = 'f32[8,128]{1,0:T(8,128)}', space=vmem, size = 0x1000, scoped, tag = 'scratch operand']
  %s0 = inlined_call_operand.vmem [shape: bf16[8,512], index: 0, kind: input, shape index: {}]
  %s1 = inlined_call_operand.vmem [shape: bf16[512,128], index: 1, kind: input, shape index: {}]
  %s2 = inlined_call_operand.vmem [shape: f32[1,128], index: 2, kind: input, shape index: {}]
  %s3 = inlined_call_operand.vmem [shape: f32[8,128], index: 3, kind: output, shape index: {}]
  %s4 = sld [smem:[#allocation0]]
  $region30: #{medical_foundation_forward.27} parent=0
    _
  %s6 = ssub.s32 1, %s4
  %s7 = scalar_select 0, %s6, %s4
  // Predicated region
  $region2: #{medical_foundation_forward.27} parent=0 // pred_check
    _
  $region3: #{medical_foundation_forward.27} parent=0 // pred_check_branch
    %9 = sbr.rel (0) target = $region5
  $region4: #{medical_foundation_forward.27} parent=0 // pred_region
    _
  $region5: #{medical_foundation_forward.27} parent=0 // pred_fallthru
    _
  // Predicated region
  $region6: #{medical_foundation_forward.27} parent=0 // pred_check
    _
  $region7: #{medical_foundation_forward.27} parent=0 // pred_check_branch
    %11 = sbr.rel (0) target = $region9
  $region8: #{medical_foundation_forward.27} parent=0 // pred_region
    _
  $region9: #{medical_foundation_forward.27} parent=0 // pred_fallthru
    _
  // Predicated region
  $region10: #{medical_foundation_forward.27} parent=0 // pred_check
    _
  $region11: #{medical_foundation_forward.27} parent=0 // pred_check_branch
    %13 = sbr.rel (0) target = $region13
  $region12: #{medical_foundation_forward.27} parent=0 // pred_region
    _
  $region13: #{medical_foundation_forward.27} parent=0 // pred_fallthru
    _
  %p15 = scmp.eq.s32.totalorder 0, 0
  // Predicated region
  $region14: #{medical_foundation_forward.27} parent=0 // pred_check
    %p16 = pneg %p15
  $region15: #{medical_foundation_forward.27} parent=0 // pred_check_branch
    %18 = sbr.rel (%p16) target = $region17
  $region16: #{medical_foundation_forward.27} parent=0 // pred_region
    %19 = vst [vmem:[#allocation2] sm:$0xff] 0.0
  $region17: #{medical_foundation_forward.27} parent=0 // pred_fallthru
    _
  %v20 = vld [vmem:[#allocation2] sm:$0xff]
  %v21 = vld [vmem:[%s0] sm:$0xff]
  %v22 = vld [vmem:[%s0 + $0x8] sm:$0xff]
  %v23 = vld [vmem:[%s1] sm:$0xf]
  %v24 = vld [vmem:[%s1 + $0x4] sm:$0xf]
  %v25 = vld [vmem:[%s1 + $0x8] sm:$0xf]
  %v26 = vld [vmem:[%s1 + $0xc] sm:$0xf]
  %v27 = vld [vmem:[%s1 + $0x10] sm:$0xf]
  %v28 = vld [vmem:[%s1 + $0x14] sm:$0xf]
  %v29 = vld [vmem:[%s1 + $0x18] sm:$0xf]
  %v30 = vld [vmem:[%s1 + $0x1c] sm:$0xf]
  %v31 = vld [vmem:[%s1 + $0x20] sm:$0xf]
  %v32 = vld [vmem:[%s1 + $0x24] sm:$0xf]
  %v33 = vld [vmem:[%s1 + $0x28] sm:$0xf]
  %v34 = vld [vmem:[%s1 + $0x2c] sm:$0xf]
  %v35 = vld [vmem:[%s1 + $0x30] sm:$0xf]
  %v36 = vld [vmem:[%s1 + $0x34] sm:$0xf]
  %v37 = vld [vmem:[%s1 + $0x38] sm:$0xf]
  %v38 = vld [vmem:[%s1 + $0x3c] sm:$0xf]
  %v39 = vld [vmem:[%s1 + $0x40] sm:$0xf]
  %v40 = vld [vmem:[%s1 + $0x44] sm:$0xf]
  %v41 = vld [vmem:[%s1 + $0x48] sm:$0xf]
  %v42 = vld [vmem:[%s1 + $0x4c] sm:$0xf]
  %v43 = vld [vmem:[%s1 + $0x50] sm:$0xf]
  %v44 = vld [vmem:[%s1 + $0x54] sm:$0xf]
  %v45 = vld [vmem:[%s1 + $0x58] sm:$0xf]
  %v46 = vld [vmem:[%s1 + $0x5c] sm:$0xf]
  %v47 = vld [vmem:[%s1 + $0x60] sm:$0xf]
  %v48 = vld [vmem:[%s1 + $0x64] sm:$0xf]
  %v49 = vld [vmem:[%s1 + $0x68] sm:$0xf]
  %v50 = vld [vmem:[%s1 + $0x6c] sm:$0xf]
  %v51 = vld [vmem:[%s1 + $0x70] sm:$0xf]
  %v52 = vld [vmem:[%s1 + $0x74] sm:$0xf]
  %v53 = vld [vmem:[%s1 + $0x78] sm:$0xf]
  %v54 = vld [vmem:[%s1 + $0x7c] sm:$0xf]
  %v55 = vld [vmem:[%s1 + $0x80] sm:$0xf]
  %v56 = vld [vmem:[%s1 + $0x84] sm:$0xf]
  %v57 = vld [vmem:[%s1 + $0x88] sm:$0xf]
  %v58 = vld [vmem:[%s1 + $0x8c] sm:$0xf]
  %v59 = vld [vmem:[%s1 + $0x90] sm:$0xf]
  %v60 = vld [vmem:[%s1 + $0x94] sm:$0xf]
  %v61 = vld [vmem:[%s1 + $0x98] sm:$0xf]
  %v62 = vld [vmem:[%s1 + $0x9c] sm:$0xf]
  %v63 = vld [vmem:[%s1 + $0xa0] sm:$0xf]
  %v64 = vld [vmem:[%s1 + $0xa4] sm:$0xf]
  %v65 = vld [vmem:[%s1 + $0xa8] sm:$0xf]
  %v66 = vld [vmem:[%s1 + $0xac] sm:$0xf]
  %v67 = vld [vmem:[%s1 + $0xb0] sm:$0xf]
  %v68 = vld [vmem:[%s1 + $0xb4] sm:$0xf]
  %v69 = vld [vmem:[%s1 + $0xb8] sm:$0xf]
  %v70 = vld [vmem:[%s1 + $0xbc] sm:$0xf]
  %v71 = vld [vmem:[%s1 + $0xc0] sm:$0xf]
  %v72 = vld [vmem:[%s1 + $0xc4] sm:$0xf]
  %v73 = vld [vmem:[%s1 + $0xc8] sm:$0xf]
  %v74 = vld [vmem:[%s1 + $0xcc] sm:$0xf]
  %v75 = vld [vmem:[%s1 + $0xd0] sm:$0xf]
  %v76 = vld [vmem:[%s1 + $0xd4] sm:$0xf]
  %v77 = vld [vmem:[%s1 + $0xd8] sm:$0xf]
  %v78 = vld [vmem:[%s1 + $0xdc] sm:$0xf]
  %v79 = vld [vmem:[%s1 + $0xe0] sm:$0xf]
  %v80 = vld [vmem:[%s1 + $0xe4] sm:$0xf]
  %v81 = vld [vmem:[%s1 + $0xe8] sm:$0xf]
  %v82 = vld [vmem:[%s1 + $0xec] sm:$0xf]
  %v83 = vld [vmem:[%s1 + $0xf0] sm:$0xf]
  %v84 = vld [vmem:[%s1 + $0xf4] sm:$0xf]
  %v85 = vld [vmem:[%s1 + $0xf8] sm:$0xf]
  %v86 = vld [vmem:[%s1 + $0xfc] sm:$0xf]
  %v89 = vunpack.c.l.b16 %v21
  %v90 = vunpack.c.h.b16 %v21
  %v91 = vunpack.c.l.b16 %v22
  %v92 = vunpack.c.h.b16 %v22
  %v93 = vpack.c.b16 %v89, %v89
  %v94 = vpack.c.b16 %v90, %v90
  %v95 = vpack.c.b16 %v91, %v91
  %v96 = vpack.c.b16 %v92, %v92
  %v165 = vunpack.c.l.b16 %v23
  %v166 = vunpack.c.l.b16 %v24
  %v167 = vunpack.c.l.b16 %v25
  %v168 = vunpack.c.l.b16 %v26
  %v169 = vunpack.c.l.b16 %v27
  %v170 = vunpack.c.l.b16 %v28
  %v171 = vunpack.c.l.b16 %v29
  %v172 = vunpack.c.l.b16 %v30
  %v173 = vunpack.c.l.b16 %v31
  %v174 = vunpack.c.l.b16 %v32
  %v175 = vunpack.c.l.b16 %v33
  %v176 = vunpack.c.l.b16 %v34
  %v177 = vunpack.c.l.b16 %v35
  %v178 = vunpack.c.l.b16 %v36
  %v179 = vunpack.c.l.b16 %v37
  %v180 = vunpack.c.l.b16 %v38
  %v181 = vunpack.c.l.b16 %v39
  %v182 = vunpack.c.l.b16 %v40
  %v183 = vunpack.c.l.b16 %v41
  %v184 = vunpack.c.l.b16 %v42
  %v185 = vunpack.c.l.b16 %v43
  %v186 = vunpack.c.l.b16 %v44
  %v187 = vunpack.c.l.b16 %v45
  %v188 = vunpack.c.l.b16 %v46
  %v189 = vunpack.c.l.b16 %v47
  %v190 = vunpack.c.l.b16 %v48
  %v191 = vunpack.c.l.b16 %v49
  %v192 = vunpack.c.l.b16 %v50
  %v193 = vunpack.c.l.b16 %v51
  %v194 = vunpack.c.l.b16 %v52
  %v195 = vunpack.c.l.b16 %v53
  %v196 = vunpack.c.l.b16 %v54
  %v197 = vunpack.c.l.b16 %v55
  %v198 = vunpack.c.l.b16 %v56
  %v199 = vunpack.c.l.b16 %v57
  %v200 = vunpack.c.l.b16 %v58
  %v201 = vunpack.c.l.b16 %v59
  %v202 = vunpack.c.l.b16 %v60
  %v203 = vunpack.c.l.b16 %v61
  %v204 = vunpack.c.l.b16 %v62
  %v205 = vunpack.c.l.b16 %v63
  %v206 = vunpack.c.l.b16 %v64
  %v207 = vunpack.c.l.b16 %v65
  %v208 = vunpack.c.l.b16 %v66
  %v209 = vunpack.c.l.b16 %v67
  %v210 = vunpack.c.l.b16 %v68
  %v211 = vunpack.c.l.b16 %v69
  %v212 = vunpack.c.l.b16 %v70
  %v213 = vunpack.c.l.b16 %v71
  %v214 = vunpack.c.l.b16 %v72
  %v215 = vunpack.c.l.b16 %v73
  %v216 = vunpack.c.l.b16 %v74
  %v217 = vunpack.c.l.b16 %v75
  %v218 = vunpack.c.l.b16 %v76
  %v219 = vunpack.c.l.b16 %v77
  %v220 = vunpack.c.l.b16 %v78
  %v221 = vunpack.c.l.b16 %v79
  %v222 = vunpack.c.l.b16 %v80
  %v223 = vunpack.c.l.b16 %v81
  %v224 = vunpack.c.l.b16 %v82
  %v225 = vunpack.c.l.b16 %v83
  %v226 = vunpack.c.l.b16 %v84
  %v227 = vunpack.c.l.b16 %v85
  %v228 = vunpack.c.l.b16 %v86
  %v229 = vpack.c.b16 %v166, %v165
  %v230 = vpack.c.b16 %v168, %v167
  %v231 = vpack.c.b16 %v170, %v169
  %v232 = vpack.c.b16 %v172, %v171
  %v233 = vpack.c.b16 %v174, %v173
  %v234 = vpack.c.b16 %v176, %v175
  %v235 = vpack.c.b16 %v178, %v177
  %v236 = vpack.c.b16 %v180, %v179
  %v237 = vpack.c.b16 %v182, %v181
  %v238 = vpack.c.b16 %v184, %v183
  %v239 = vpack.c.b16 %v186, %v185
  %v240 = vpack.c.b16 %v188, %v187
  %v241 = vpack.c.b16 %v190, %v189
  %v242 = vpack.c.b16 %v192, %v191
  %v243 = vpack.c.b16 %v194, %v193
  %v244 = vpack.c.b16 %v196, %v195
  %v245 = vpack.c.b16 %v198, %v197
  %v246 = vpack.c.b16 %v200, %v199
  %v247 = vpack.c.b16 %v202, %v201
  %v248 = vpack.c.b16 %v204, %v203
  %v249 = vpack.c.b16 %v206, %v205
  %v250 = vpack.c.b16 %v208, %v207
  %v251 = vpack.c.b16 %v210, %v209
  %v252 = vpack.c.b16 %v212, %v211
  %v253 = vpack.c.b16 %v214, %v213
  %v254 = vpack.c.b16 %v216, %v215
  %v255 = vpack.c.b16 %v218, %v217
  %v256 = vpack.c.b16 %v220, %v219
  %v257 = vpack.c.b16 %v222, %v221
  %v258 = vpack.c.b16 %v224, %v223
  %v259 = vpack.c.b16 %v226, %v225
  %v260 = vpack.c.b16 %v228, %v227
  %293 = vmatprep.subr.bf16.mxu0 0
  %294 = vmatpush1.bf16.msra.mxu0 %v229
  %295 = vmatprep.subr.bf16.mxu0 0
  %296 = vmatpush1.bf16.msra.mxu0 %v230
  %297 = vmatprep.subr.bf16.mxu0 0
  %298 = vmatpush1.bf16.msra.mxu0 %v231
  %299 = vmatprep.subr.bf16.mxu0 0
  %300 = vmatpush1.bf16.msra.mxu0 %v232
  %301 = vmatprep.subr.bf16.mxu0 0
  %302 = vmatpush1.bf16.msra.mxu0 %v233
  %303 = vmatprep.subr.bf16.mxu0 0
  %304 = vmatpush1.bf16.msra.mxu0 %v234
  %305 = vmatprep.subr.bf16.mxu0 0
  %306 = vmatpush1.bf16.msra.mxu0 %v235
  %307 = vmatprep.subr.bf16.mxu0 0
  %308 = vmatpush1.bf16.msra.mxu0 %v236
  %309 = vmatprep.subr.bf16.mxu0 0
  %310 = vmatpush1.bf16.msra.mxu0 %v237
  %311 = vmatprep.subr.bf16.mxu0 0
  %312 = vmatpush1.bf16.msra.mxu0 %v238
  %313 = vmatprep.subr.bf16.mxu0 0
  %314 = vmatpush1.bf16.msra.mxu0 %v239
  %315 = vmatprep.subr.bf16.mxu0 0
  %316 = vmatpush1.bf16.msra.mxu0 %v240
  %317 = vmatprep.subr.bf16.mxu0 0
  %318 = vmatpush1.bf16.msra.mxu0 %v241
  %319 = vmatprep.subr.bf16.mxu0 0
  %320 = vmatpush1.bf16.msra.mxu0 %v242
  %321 = vmatprep.subr.bf16.mxu0 0
  %322 = vmatpush1.bf16.msra.mxu0 %v243
  %323 = vmatprep.subr.bf16.mxu0 0
  %324 = vmatpush1.bf16.msra.mxu0 %v244
  %325 = vmatprep.mubr.bf16.mxu0 %v94
  %326 = vmatmul.mubr.bf16.gmra.mrb[0].mxu0 %v93
  %v327 = vpop.f32.mrb[0].mxu0
  %v328 = vadd.f32 0.0, %v327
  %v329 = vpop.f32.mrb[0].mxu0
  %v330 = vpop.f32.mrb[0].mxu0
  %v331 = vpop.f32.mrb[0].mxu0
  %332 = vdwg.mxu0
  %333 = vmatprep.subr.bf16.mxu0 0
  %334 = vmatpush1.bf16.msra.mxu0 %v245
  %335 = vmatprep.subr.bf16.mxu0 0
  %336 = vmatpush1.bf16.msra.mxu0 %v246
  %337 = vmatprep.subr.bf16.mxu0 0
  %338 = vmatpush1.bf16.msra.mxu0 %v247
  %339 = vmatprep.subr.bf16.mxu0 0
  %340 = vmatpush1.bf16.msra.mxu0 %v248
  %341 = vmatprep.subr.bf16.mxu0 0
  %342 = vmatpush1.bf16.msra.mxu0 %v249
  %343 = vmatprep.subr.bf16.mxu0 0
  %344 = vmatpush1.bf16.msra.mxu0 %v250
  %345 = vmatprep.subr.bf16.mxu0 0
  %346 = vmatpush1.bf16.msra.mxu0 %v251
  %347 = vmatprep.subr.bf16.mxu0 0
  %348 = vmatpush1.bf16.msra.mxu0 %v252
  %349 = vmatprep.subr.bf16.mxu0 0
  %350 = vmatpush1.bf16.msra.mxu0 %v253
  %351 = vmatprep.subr.bf16.mxu0 0
  %352 = vmatpush1.bf16.msra.mxu0 %v254
  %353 = vmatprep.subr.bf16.mxu0 0
  %354 = vmatpush1.bf16.msra.mxu0 %v255
  %355 = vmatprep.subr.bf16.mxu0 0
  %356 = vmatpush1.bf16.msra.mxu0 %v256
  %357 = vmatprep.subr.bf16.mxu0 0
  %358 = vmatpush1.bf16.msra.mxu0 %v257
  %359 = vmatprep.subr.bf16.mxu0 0
  %360 = vmatpush1.bf16.msra.mxu0 %v258
  %361 = vmatprep.subr.bf16.mxu0 0
  %362 = vmatpush1.bf16.msra.mxu0 %v259
  %363 = vmatprep.subr.bf16.mxu0 0
  %364 = vmatpush1.bf16.msra.mxu0 %v260
  %365 = vmatprep.mubr.bf16.mxu0 %v96
  %366 = vmatmul.mubr.bf16.gmra.mrb[0].mxu0 %v95
  %v367 = vpop.f32.mrb[0].mxu0
  %v368 = vadd.f32 %v328, %v367
  %v369 = vpop.f32.mrb[0].mxu0
  %v370 = vpop.f32.mrb[0].mxu0
  %v371 = vpop.f32.mrb[0].mxu0
  %372 = vdwg.mxu0
  %v373 = vadd.f32 %v20, %v368
  %374 = vst [vmem:[#allocation2] sm:$0xff] %v373
  // Predicated region
  $region18: #{medical_foundation_forward.27} parent=0 // pred_check
    %p375 = pneg %p15
  $region19: #{medical_foundation_forward.27} parent=0 // pred_check_branch
    %377 = sbr.rel (%p375) target = $region21
  $region20: #{medical_foundation_forward.27} parent=0 // pred_region
    %v378 = vld [vmem:[#allocation2] sm:$0xff]
    %v379 = vld [vmem:[%s2] sm:$0x1]
    %v381 = vlaneseq
    %v382 = vshrl.u32 %v381, 7
    %v383 = vsub.s32 0, %v382
    %v384 = vrot.slane %v379, %v383
    %v386 = vadd.f32 %v378, %v384
    %387 = vst [vmem:[%s3] sm:$0xff] %v386
  $region21: #{medical_foundation_forward.27} parent=0 // pred_fallthru
    _
  // Predicated region
  $region22: #{medical_foundation_forward.27} parent=0 // pred_check
    _
  $region23: #{medical_foundation_forward.27} parent=0 // pred_check_branch
    %389 = sbr.rel (0) target = $region25
  $region24: #{medical_foundation_forward.27} parent=0 // pred_region
    _
  $region25: #{medical_foundation_forward.27} parent=0 // pred_fallthru
    _
  // Predicated region
  $region26: #{medical_foundation_forward.27} parent=0 // pred_check
    _
  $region27: #{medical_foundation_forward.27} parent=0 // pred_check_branch
    %391 = sbr.rel (0) target = $region29
  $region28: #{medical_foundation_forward.27} parent=0 // pred_region
    _
  $region29: #{medical_foundation_forward.27} parent=0 // pred_fallthru
    _

</llo_original>
